<compile_context>
chip_gen: v7x
topology: tpu7x:2x2x1
jax: 0.10.0
libtpu: 0.0.40
codegen_flags: <defaults>
</compile_context>

<pallas_src>
import jax
import jax.numpy as jnp
from jax.experimental import pallas as pl
from jax.experimental.pallas import tpu as pltpu


# ----------------------------- activations (shared by kernel & reference) -----
def _mish(x):
    # x * tanh(softplus(x)), numerically stable softplus.
    sp = jnp.maximum(x, 0.0) + jnp.log(1.0 + jnp.exp(-jnp.abs(x)))
    return x * jnp.tanh(sp)


def _relu(x):
    return jnp.maximum(x, 0.0)


def _hsigmoid(x):
    # relu6(x + 3) / 6
    return jnp.clip(x + 3.0, 0.0, 6.0) * (1.0 / 6.0)


_ACT = {"HS": _mish, "RE": _relu}


# ----------------------------- fully fused InvertedResidual kernel ------------
def _make_fused_kernel(*, k, stride, h, w, cexp, act, use_expand, use_se, use_res):
    pad = k // 2
    ho = (h + 2 * pad - k) // stride + 1
    wo = (w + 2 * pad - k) // stride + 1

    def kern(*refs):
        idx = 0
        x_ref = refs[idx]; idx += 1
        if use_expand:
            w_exp_ref, sc_exp_ref, bi_exp_ref = refs[idx:idx + 3]; idx += 3
        w_dw_ref, sc_dw_ref, bi_dw_ref = refs[idx:idx + 3]; idx += 3
        if use_se:
            w1_ref, b1_ref, w2_ref, b2_ref = refs[idx:idx + 4]; idx += 4
        w_pr_ref, sc_pr_ref, bi_pr_ref = refs[idx:idx + 3]; idx += 3
        o_ref = refs[idx]; idx += 1
        pad_ref = refs[idx]                       # VMEM scratch (hp, wp, cexp) f32

        x = x_ref[0]                              # (h, w, cin)
        cin = x.shape[-1]

        # ---- expand: 1x1 conv (MXU matmul) + folded-BN + activation -----------
        if use_expand:
            y2 = jnp.dot(x.reshape(h * w, cin), w_exp_ref[...],
                         preferred_element_type=jnp.float32)
            y2 = act(y2 * sc_exp_ref[...] + bi_exp_ref[...])
            y = y2.reshape(h, w, cexp)
        else:
            y = x.astype(jnp.float32)

        # ---- zero-pad activation into VMEM scratch (conv 'same' padding) ------
        pad_ref[...] = jnp.zeros_like(pad_ref)
        pad_ref[pad:pad + h, pad:pad + w, :] = y
        xp = pad_ref[...]                         # (hp, wp, cexp)

        # ---- depthwise k x k conv + folded-BN + activation ---------------------
        wdw = w_dw_ref[...]                       # (k*k, cexp)
        acc = jnp.zeros((ho, wo, cexp), jnp.float32)
        for dy in range(k):
            for dx in range(k):
                tap = xp[dy:dy + (ho - 1) * stride + 1:stride,
                         dx:dx + (wo - 1) * stride + 1:stride, :]
                acc = acc + tap * wdw[dy * k + dx].reshape(1, 1, cexp)
        y = act(acc * sc_dw_ref[...].reshape(1, 1, cexp)
                + bi_dw_ref[...].reshape(1, 1, cexp))

        # ---- SE: global avg pool -> fc1/ReLU -> fc2/hsigmoid -> gate -----------
        if use_se:
            pooled = jnp.sum(jnp.sum(y, axis=0), axis=0) * (1.0 / (ho * wo))
            pooled = pooled.reshape(1, cexp)
            hid = _relu(jnp.dot(pooled, w1_ref[...],
                                preferred_element_type=jnp.float32) + b1_ref[...])
            g = jnp.dot(hid, w2_ref[...],
                        preferred_element_type=jnp.float32) + b2_ref[...]
            y = y * _hsigmoid(g).reshape(1, 1, cexp)

        # ---- project: 1x1 conv (MXU matmul) + folded-BN (+ residual) -----------
        out = jnp.dot(y.reshape(ho * wo, cexp), w_pr_ref[...],
                      preferred_element_type=jnp.float32)
        out = out * sc_pr_ref[...] + bi_pr_ref[...]
        if use_res:
            out = out + x.reshape(ho * wo, -1).astype(jnp.float32)
        o_ref[0] = out.reshape(ho, wo, -1).astype(o_ref.dtype)

    return kern


# ------------------------------- full InvertedResidual forward ----------------
def inverted_residual_forward(x_nchw, params, *, k, stride, use_se, nl):
    n, cin, h, w = x_nchw.shape
    act = _ACT["HS" if nl == "HS" else "RE"]
    x = jnp.transpose(x_nchw, (0, 2, 3, 1))       # NHWC (channels = lanes)

    use_expand = "w_exp" in params
    cexp = params["w_dw"].shape[-1]
    cout = params["w_proj"].shape[1]
    pad = k // 2
    ho = (h + 2 * pad - k) // stride + 1
    wo = (w + 2 * pad - k) // stride + 1
    hp, wp = h + 2 * pad, w + 2 * pad
    use_res = (stride == 1 and cin == cout)

    in_specs = [pl.BlockSpec((1, h, w, cin), lambda i: (i, 0, 0, 0))]
    args = [x]

    def add(a):
        nd = a.ndim
        in_specs.append(pl.BlockSpec(a.shape, lambda i, _nd=nd: (0,) * _nd))
        args.append(a)

    if use_expand:
        add(params["w_exp"]); add(params["sc_exp"]); add(params["bi_exp"])
    add(params["w_dw"].reshape(k * k, cexp))
    add(params["sc_dw"]); add(params["bi_dw"])
    if use_se:
        add(params["w_se1"]); add(params["b_se1"])
        add(params["w_se2"]); add(params["b_se2"])
    add(params["w_proj"]); add(params["sc_proj"]); add(params["bi_proj"])

    out = pl.pallas_call(
        _make_fused_kernel(k=k, stride=stride, h=h, w=w, cexp=cexp, act=act,
                           use_expand=use_expand, use_se=use_se, use_res=use_res),
        out_shape=jax.ShapeDtypeStruct((n, ho, wo, cout), x.dtype),
        grid=(n,),
        in_specs=in_specs,
        out_specs=pl.BlockSpec((1, ho, wo, cout), lambda i: (i, 0, 0, 0)),
        scratch_shapes=[pltpu.VMEM((hp, wp, cexp), jnp.float32)],
        compiler_params=pltpu.CompilerParams(dimension_semantics=("parallel",)),
    )(*args)
    return jnp.transpose(out, (0, 3, 1, 2))        # back to NCHW


# ------------------------------- pure-JAX reference ---------------------------
def reference_forward(x_nchw, params, *, k, stride, use_se, nl):
    hp = jax.lax.Precision.HIGHEST
    act = _mish if nl == "HS" else _relu
    x = jnp.transpose(x_nchw, (0, 2, 3, 1))
    n, h, w, cin = x.shape

    if "w_exp" in params:
        y = jnp.einsum("nhwc,ce->nhwe", x, params["w_exp"], precision=hp)
        y = act(y * params["sc_exp"][0] + params["bi_exp"][0])
    else:
        y = x
    c = y.shape[-1]

    pad = k // 2
    yp = jnp.pad(y, ((0, 0), (pad, pad), (pad, pad), (0, 0)))
    ho = (h + 2 * pad - k) // stride + 1
    wo = (w + 2 * pad - k) // stride + 1
    acc = jnp.zeros((n, ho, wo, c), jnp.float32)
    for dy in range(k):
        for dx in range(k):
            tap = yp[:, dy:dy + (ho - 1) * stride + 1:stride,
                     dx:dx + (wo - 1) * stride + 1:stride, :]
            acc = acc + tap * params["w_dw"][dy, dx, :]
    y = act(acc * params["sc_dw"][0] + params["bi_dw"][0])

    if use_se:
        pooled = jnp.mean(y, axis=(1, 2))
        hh = _relu(jnp.dot(pooled, params["w_se1"], precision=hp) + params["b_se1"][0])
        g = _hsigmoid(jnp.dot(hh, params["w_se2"], precision=hp) + params["b_se2"][0])
        y = y * g[:, None, None, :]

    out = jnp.einsum("nhwc,co->nhwo", y, params["w_proj"], precision=hp)
    out = out * params["sc_proj"][0] + params["bi_proj"][0]
    cout = out.shape[-1]
    if stride == 1 and cin == cout:
        out = out + x
    return jnp.transpose(out, (0, 3, 1, 2))


def fold_bn(gamma, beta, mean, var, eps=1e-5):
    scale = gamma / jnp.sqrt(var + eps)
    bias = beta - mean * scale
    return scale.reshape(1, -1), bias.reshape(1, -1)


if __name__ == "__main__":
    f32 = jnp.float32
    key = jax.random.PRNGKey(0)
    keys = jax.random.split(key, 12)

    # InvertedResidual(inp=4, exp=16, oup=4, k=3, s=1, use_se=True, nl='HS')
    N, Cin, H, W = 2, 4, 16, 16
    Cexp, Cout, K, S = 16, 4, 3, 1
    use_se, nl = True, "HS"
    Cr = Cexp // 4

    x = jax.random.normal(keys[0], (N, Cin, H, W), f32)

    def bn_params(kk, c):
        k1, k2, k3, k4 = jax.random.split(kk, 4)
        gamma = jax.random.uniform(k1, (c,), f32, 0.5, 1.5)
        beta = jax.random.normal(k2, (c,), f32) * 0.1
        mean = jax.random.normal(k3, (c,), f32) * 0.1
        var = jax.random.uniform(k4, (c,), f32, 0.5, 1.5)
        return fold_bn(gamma, beta, mean, var)

    params = {}
    params["w_exp"] = jax.random.normal(keys[1], (Cin, Cexp), f32) * 0.3
    params["sc_exp"], params["bi_exp"] = bn_params(keys[2], Cexp)
    params["w_dw"] = jax.random.normal(keys[3], (K, K, Cexp), f32) * 0.3
    params["sc_dw"], params["bi_dw"] = bn_params(keys[4], Cexp)
    params["w_se1"] = jax.random.normal(keys[5], (Cexp, Cr), f32) * 0.3
    params["b_se1"] = (jax.random.normal(keys[6], (Cr,), f32) * 0.1).reshape(1, Cr)
    params["w_se2"] = jax.random.normal(keys[7], (Cr, Cexp), f32) * 0.3
    params["b_se2"] = (jax.random.normal(keys[8], (Cexp,), f32) * 0.1).reshape(1, Cexp)
    params["w_proj"] = jax.random.normal(keys[9], (Cexp, Cout), f32) * 0.3
    params["sc_proj"], params["bi_proj"] = bn_params(keys[10], Cout)

    out = inverted_residual_forward(x, params, k=K, stride=S, use_se=use_se, nl=nl)
    out = jax.block_until_ready(out)

    ref = reference_forward(x, params, k=K, stride=S, use_se=use_se, nl=nl)
    assert out.shape == (N, Cout, H, W) and out.dtype == x.dtype
    assert jnp.allclose(out, ref, atol=2e-3, rtol=2e-3), (
        "mismatch vs reference: max abs diff = %s" % float(jnp.max(jnp.abs(out - ref))))

    print("KERNEL_OK")
</pallas_src>

<mosaic_0001>
module attributes {stable_mosaic.version = 11 : i64} {
  func.func @kern(%arg0: i32, %arg1: memref<1x16x16x4xf32, #tpu.memory_space<vmem>>, %arg2: memref<4x16xf32, #tpu.memory_space<vmem>>, %arg3: memref<1x16xf32, #tpu.memory_space<vmem>>, %arg4: memref<1x16xf32, #tpu.memory_space<vmem>>, %arg5: memref<9x16xf32, #tpu.memory_space<vmem>>, %arg6: memref<1x16xf32, #tpu.memory_space<vmem>>, %arg7: memref<1x16xf32, #tpu.memory_space<vmem>>, %arg8: memref<16x4xf32, #tpu.memory_space<vmem>>, %arg9: memref<1x4xf32, #tpu.memory_space<vmem>>, %arg10: memref<4x16xf32, #tpu.memory_space<vmem>>, %arg11: memref<1x16xf32, #tpu.memory_space<vmem>>, %arg12: memref<16x4xf32, #tpu.memory_space<vmem>>, %arg13: memref<1x4xf32, #tpu.memory_space<vmem>>, %arg14: memref<1x4xf32, #tpu.memory_space<vmem>>, %arg15: memref<1x16x16x4xf32, #tpu.memory_space<vmem>>, %arg16: memref<18x18x16xf32, #tpu.memory_space<vmem>>) attributes {dimension_semantics = [#tpu.dimension_semantics<parallel>], iteration_bounds = array<i64: 2>, scalar_prefetch = 0 : i64, scratch_operands = 1 : i64, tpu.core_type = #tpu.core_type<tc>, window_params = [{transform_indices = @transform_0, window_bounds = array<i64: 1, 16, 16, 4>}, {pipeline_mode = #tpu.pipeline_mode<synchronous>, transform_indices = @transform_1, window_bounds = array<i64: 4, 16>}, {pipeline_mode = #tpu.pipeline_mode<synchronous>, transform_indices = @transform_2, window_bounds = array<i64: 1, 16>}, {pipeline_mode = #tpu.pipeline_mode<synchronous>, transform_indices = @transform_3, window_bounds = array<i64: 1, 16>}, {pipeline_mode = #tpu.pipeline_mode<synchronous>, transform_indices = @transform_4, window_bounds = array<i64: 9, 16>}, {pipeline_mode = #tpu.pipeline_mode<synchronous>, transform_indices = @transform_5, window_bounds = array<i64: 1, 16>}, {pipeline_mode = #tpu.pipeline_mode<synchronous>, transform_indices = @transform_6, window_bounds = array<i64: 1, 16>}, {pipeline_mode = #tpu.pipeline_mode<synchronous>, transform_indices = @transform_7, window_bounds = array<i64: 16, 4>}, {pipeline_mode = #tpu.pipeline_mode<synchronous>, transform_indices = @transform_8, window_bounds = array<i64: 1, 4>}, {pipeline_mode = #tpu.pipeline_mode<synchronous>, transform_indices = @transform_9, window_bounds = array<i64: 4, 16>}, {pipeline_mode = #tpu.pipeline_mode<synchronous>, transform_indices = @transform_10, window_bounds = array<i64: 1, 16>}, {pipeline_mode = #tpu.pipeline_mode<synchronous>, transform_indices = @transform_11, window_bounds = array<i64: 16, 4>}, {pipeline_mode = #tpu.pipeline_mode<synchronous>, transform_indices = @transform_12, window_bounds = array<i64: 1, 4>}, {pipeline_mode = #tpu.pipeline_mode<synchronous>, transform_indices = @transform_13, window_bounds = array<i64: 1, 4>}, {transform_indices = @transform_14, window_bounds = array<i64: 1, 16, 16, 4>}]} {
    %c0 = arith.constant 0 : index
    %c0_0 = arith.constant 0 : index
    %c0_1 = arith.constant 0 : index
    %c0_2 = arith.constant 0 : index
    %0 = vector.load %arg1[%c0, %c0_0, %c0_1, %c0_2] : memref<1x16x16x4xf32, #tpu.memory_space<vmem>>, vector<1x16x16x4xf32>
    %1 = vector.shape_cast %0 : vector<1x16x16x4xf32> to vector<16x16x4xf32>
    %2 = vector.shape_cast %1 : vector<16x16x4xf32> to vector<256x4xf32>
    %c0_3 = arith.constant 0 : index
    %c0_4 = arith.constant 0 : index
    %3 = vector.load %arg2[%c0_3, %c0_4] : memref<4x16xf32, #tpu.memory_space<vmem>>, vector<4x16xf32>
    %cst = arith.constant dense<0.000000e+00> : vector<256x16xf32>
    %4 = tpu.matmul %2, %3, %cst {dimension_numbers = #tpu.dot_dimension_numbers<[1], [0], [0], [1], [0, 0, 1, 1], [], []>} : vector<256x4xf32>, vector<4x16xf32>, vector<256x16xf32> -> vector<256x16xf32>
    %c0_5 = arith.constant 0 : index
    %c0_6 = arith.constant 0 : index
    %5 = vector.load %arg3[%c0_5, %c0_6] : memref<1x16xf32, #tpu.memory_space<vmem>>, vector<1x16xf32>
    %6 = vector.broadcast %5 : vector<1x16xf32> to vector<256x16xf32>
    %7 = arith.mulf %4, %6 : vector<256x16xf32>
    %c0_7 = arith.constant 0 : index
    %c0_8 = arith.constant 0 : index
    %8 = vector.load %arg4[%c0_7, %c0_8] : memref<1x16xf32, #tpu.memory_space<vmem>>, vector<1x16xf32>
    %9 = vector.broadcast %8 : vector<1x16xf32> to vector<256x16xf32>
    %10 = arith.addf %7, %9 : vector<256x16xf32>
    %cst_9 = arith.constant 0.000000e+00 : f32
    %11 = vector.broadcast %cst_9 : f32 to vector<256x16xf32>
    %12 = arith.maximumf %10, %11 : vector<256x16xf32>
    %13 = math.absf %10 : vector<256x16xf32>
    %cst_10 = arith.constant 0.000000e+00 : f32
    %14 = vector.broadcast %cst_10 : f32 to vector<256x16xf32>
    %15 = arith.subf %14, %13 : vector<256x16xf32>
    %16 = math.exp %15 : vector<256x16xf32>
    %cst_11 = arith.constant 1.000000e+00 : f32
    %17 = vector.broadcast %cst_11 : f32 to vector<256x16xf32>
    %18 = arith.addf %17, %16 : vector<256x16xf32>
    %19 = math.log %18 : vector<256x16xf32>
    %20 = arith.addf %12, %19 : vector<256x16xf32>
    %21 = math.tanh %20 : vector<256x16xf32>
    %22 = arith.mulf %10, %21 : vector<256x16xf32>
    %23 = vector.shape_cast %22 : vector<256x16xf32> to vector<16x16x16xf32>
    %cst_12 = arith.constant 0.000000e+00 : f32
    %24 = vector.broadcast %cst_12 : f32 to vector<18x18x16xf32>
    %c0_13 = arith.constant 0 : index
    %c0_14 = arith.constant 0 : index
    %c0_15 = arith.constant 0 : index
    %25 = vector.load %arg16[%c0_13, %c0_14, %c0_15] : memref<18x18x16xf32, #tpu.memory_space<vmem>>, vector<18x18x16xf32>
    tpu.vector_store %arg16[%c0_13, %c0_14, %c0_15], %24 {strides = array<i32>} : memref<18x18x16xf32, #tpu.memory_space<vmem>>, vector<18x18x16xf32>,
    %c1 = arith.constant 1 : index
    %c1_16 = arith.constant 1 : index
    %c0_17 = arith.constant 0 : index
    %26 = vector.load %arg16[%c1, %c1_16, %c0_17] : memref<18x18x16xf32, #tpu.memory_space<vmem>>, vector<16x16x16xf32>
    tpu.vector_store %arg16[%c1, %c1_16, %c0_17], %23 {strides = array<i32>} : memref<18x18x16xf32, #tpu.memory_space<vmem>>, vector<16x16x16xf32>,
    %c0_18 = arith.constant 0 : index
    %c0_19 = arith.constant 0 : index
    %c0_20 = arith.constant 0 : index
    %27 = vector.load %arg16[%c0_18, %c0_19, %c0_20] : memref<18x18x16xf32, #tpu.memory_space<vmem>>, vector<18x18x16xf32>
    %c0_21 = arith.constant 0 : index
    %c0_22 = arith.constant 0 : index
    %28 = vector.load %arg5[%c0_21, %c0_22] : memref<9x16xf32, #tpu.memory_space<vmem>>, vector<9x16xf32>
    %cst_23 = arith.constant 0.000000e+00 : f32
    %29 = vector.broadcast %cst_23 : f32 to vector<16x16x16xf32>
    %30 = vector.extract_strided_slice %27 {offsets = [0, 0, 0], sizes = [16, 16, 16], strides = [1, 1, 1]} : vector<18x18x16xf32> to vector<16x16x16xf32>
    %31 = vector.extract_strided_slice %28 {offsets = [0, 0], sizes = [1, 16], strides = [1, 1]} : vector<9x16xf32> to vector<1x16xf32>
    %32 = vector.shape_cast %31 : vector<1x16xf32> to vector<16xf32>
    %33 = vector.shape_cast %32 : vector<16xf32> to vector<1x1x16xf32>
    %34 = vector.broadcast %33 : vector<1x1x16xf32> to vector<16x16x16xf32>
    %35 = arith.mulf %30, %34 : vector<16x16x16xf32>
    %36 = arith.addf %29, %35 : vector<16x16x16xf32>
    %37 = vector.extract_strided_slice %27 {offsets = [0, 1, 0], sizes = [16, 16, 16], strides = [1, 1, 1]} : vector<18x18x16xf32> to vector<16x16x16xf32>
    %38 = vector.extract_strided_slice %28 {offsets = [1, 0], sizes = [1, 16], strides = [1, 1]} : vector<9x16xf32> to vector<1x16xf32>
    %39 = vector.shape_cast %38 : vector<1x16xf32> to vector<16xf32>
    %40 = vector.shape_cast %39 : vector<16xf32> to vector<1x1x16xf32>
    %41 = vector.broadcast %40 : vector<1x1x16xf32> to vector<16x16x16xf32>
    %42 = arith.mulf %37, %41 : vector<16x16x16xf32>
    %43 = arith.addf %36, %42 : vector<16x16x16xf32>
    %44 = vector.extract_strided_slice %27 {offsets = [0, 2, 0], sizes = [16, 16, 16], strides = [1, 1, 1]} : vector<18x18x16xf32> to vector<16x16x16xf32>
    %45 = vector.extract_strided_slice %28 {offsets = [2, 0], sizes = [1, 16], strides = [1, 1]} : vector<9x16xf32> to vector<1x16xf32>
    %46 = vector.shape_cast %45 : vector<1x16xf32> to vector<16xf32>
    %47 = vector.shape_cast %46 : vector<16xf32> to vector<1x1x16xf32>
    %48 = vector.broadcast %47 : vector<1x1x16xf32> to vector<16x16x16xf32>
    %49 = arith.mulf %44, %48 : vector<16x16x16xf32>
    %50 = arith.addf %43, %49 : vector<16x16x16xf32>
    %51 = vector.extract_strided_slice %27 {offsets = [1, 0, 0], sizes = [16, 16, 16], strides = [1, 1, 1]} : vector<18x18x16xf32> to vector<16x16x16xf32>
    %52 = vector.extract_strided_slice %28 {offsets = [3, 0], sizes = [1, 16], strides = [1, 1]} : vector<9x16xf32> to vector<1x16xf32>
    %53 = vector.shape_cast %52 : vector<1x16xf32> to vector<16xf32>
    %54 = vector.shape_cast %53 : vector<16xf32> to vector<1x1x16xf32>
    %55 = vector.broadcast %54 : vector<1x1x16xf32> to vector<16x16x16xf32>
    %56 = arith.mulf %51, %55 : vector<16x16x16xf32>
    %57 = arith.addf %50, %56 : vector<16x16x16xf32>
    %58 = vector.extract_strided_slice %27 {offsets = [1, 1, 0], sizes = [16, 16, 16], strides = [1, 1, 1]} : vector<18x18x16xf32> to vector<16x16x16xf32>
    %59 = vector.extract_strided_slice %28 {offsets = [4, 0], sizes = [1, 16], strides = [1, 1]} : vector<9x16xf32> to vector<1x16xf32>
    %60 = vector.shape_cast %59 : vector<1x16xf32> to vector<16xf32>
    %61 = vector.shape_cast %60 : vector<16xf32> to vector<1x1x16xf32>
    %62 = vector.broadcast %61 : vector<1x1x16xf32> to vector<16x16x16xf32>
    %63 = arith.mulf %58, %62 : vector<16x16x16xf32>
    %64 = arith.addf %57, %63 : vector<16x16x16xf32>
    %65 = vector.extract_strided_slice %27 {offsets = [1, 2, 0], sizes = [16, 16, 16], strides = [1, 1, 1]} : vector<18x18x16xf32> to vector<16x16x16xf32>
    %66 = vector.extract_strided_slice %28 {offsets = [5, 0], sizes = [1, 16], strides = [1, 1]} : vector<9x16xf32> to vector<1x16xf32>
    %67 = vector.shape_cast %66 : vector<1x16xf32> to vector<16xf32>
    %68 = vector.shape_cast %67 : vector<16xf32> to vector<1x1x16xf32>
    %69 = vector.broadcast %68 : vector<1x1x16xf32> to vector<16x16x16xf32>
    %70 = arith.mulf %65, %69 : vector<16x16x16xf32>
    %71 = arith.addf %64, %70 : vector<16x16x16xf32>
    %72 = vector.extract_strided_slice %27 {offsets = [2, 0, 0], sizes = [16, 16, 16], strides = [1, 1, 1]} : vector<18x18x16xf32> to vector<16x16x16xf32>
    %73 = vector.extract_strided_slice %28 {offsets = [6, 0], sizes = [1, 16], strides = [1, 1]} : vector<9x16xf32> to vector<1x16xf32>
    %74 = vector.shape_cast %73 : vector<1x16xf32> to vector<16xf32>
    %75 = vector.shape_cast %74 : vector<16xf32> to vector<1x1x16xf32>
    %76 = vector.broadcast %75 : vector<1x1x16xf32> to vector<16x16x16xf32>
    %77 = arith.mulf %72, %76 : vector<16x16x16xf32>
    %78 = arith.addf %71, %77 : vector<16x16x16xf32>
    %79 = vector.extract_strided_slice %27 {offsets = [2, 1, 0], sizes = [16, 16, 16], strides = [1, 1, 1]} : vector<18x18x16xf32> to vector<16x16x16xf32>
    %80 = vector.extract_strided_slice %28 {offsets = [7, 0], sizes = [1, 16], strides = [1, 1]} : vector<9x16xf32> to vector<1x16xf32>
    %81 = vector.shape_cast %80 : vector<1x16xf32> to vector<16xf32>
    %82 = vector.shape_cast %81 : vector<16xf32> to vector<1x1x16xf32>
    %83 = vector.broadcast %82 : vector<1x1x16xf32> to vector<16x16x16xf32>
    %84 = arith.mulf %79, %83 : vector<16x16x16xf32>
    %85 = arith.addf %78, %84 : vector<16x16x16xf32>
    %86 = vector.extract_strided_slice %27 {offsets = [2, 2, 0], sizes = [16, 16, 16], strides = [1, 1, 1]} : vector<18x18x16xf32> to vector<16x16x16xf32>
    %87 = vector.extract_strided_slice %28 {offsets = [8, 0], sizes = [1, 16], strides = [1, 1]} : vector<9x16xf32> to vector<1x16xf32>
    %88 = vector.shape_cast %87 : vector<1x16xf32> to vector<16xf32>
    %89 = vector.shape_cast %88 : vector<16xf32> to vector<1x1x16xf32>
    %90 = vector.broadcast %89 : vector<1x1x16xf32> to vector<16x16x16xf32>
    %91 = arith.mulf %86, %90 : vector<16x16x16xf32>
    %92 = arith.addf %85, %91 : vector<16x16x16xf32>
    %c0_24 = arith.constant 0 : index
    %c0_25 = arith.constant 0 : index
    %93 = vector.load %arg6[%c0_24, %c0_25] : memref<1x16xf32, #tpu.memory_space<vmem>>, vector<1x16xf32>
    %94 = vector.shape_cast %93 : vector<1x16xf32> to vector<1x1x16xf32>
    %95 = vector.broadcast %94 : vector<1x1x16xf32> to vector<16x16x16xf32>
    %96 = arith.mulf %92, %95 : vector<16x16x16xf32>
    %c0_26 = arith.constant 0 : index
    %c0_27 = arith.constant 0 : index
    %97 = vector.load %arg7[%c0_26, %c0_27] : memref<1x16xf32, #tpu.memory_space<vmem>>, vector<1x16xf32>
    %98 = vector.shape_cast %97 : vector<1x16xf32> to vector<1x1x16xf32>
    %99 = vector.broadcast %98 : vector<1x1x16xf32> to vector<16x16x16xf32>
    %100 = arith.addf %96, %99 : vector<16x16x16xf32>
    %cst_28 = arith.constant 0.000000e+00 : f32
    %101 = vector.broadcast %cst_28 : f32 to vector<16x16x16xf32>
    %102 = arith.maximumf %100, %101 : vector<16x16x16xf32>
    %103 = math.absf %100 : vector<16x16x16xf32>
    %cst_29 = arith.constant 0.000000e+00 : f32
    %104 = vector.broadcast %cst_29 : f32 to vector<16x16x16xf32>
    %105 = arith.subf %104, %103 : vector<16x16x16xf32>
    %106 = math.exp %105 : vector<16x16x16xf32>
    %cst_30 = arith.constant 1.000000e+00 : f32
    %107 = vector.broadcast %cst_30 : f32 to vector<16x16x16xf32>
    %108 = arith.addf %107, %106 : vector<16x16x16xf32>
    %109 = math.log %108 : vector<16x16x16xf32>
    %110 = arith.addf %102, %109 : vector<16x16x16xf32>
    %111 = math.tanh %110 : vector<16x16x16xf32>
    %112 = arith.mulf %100, %111 : vector<16x16x16xf32>
    %cst_31 = arith.constant dense<0.000000e+00> : vector<16x16xf32>
    %113 = vector.multi_reduction <add>, %112, %cst_31 [0] : vector<16x16x16xf32> to vector<16x16xf32>
    %cst_32 = arith.constant dense<0.000000e+00> : vector<16xf32>
    %114 = vector.multi_reduction <add>, %113, %cst_32 [0] : vector<16x16xf32> to vector<16xf32>
    %cst_33 = arith.constant 3.906250e-03 : f32
    %115 = vector.broadcast %cst_33 : f32 to vector<16xf32>
    %116 = arith.mulf %114, %115 : vector<16xf32>
    %117 = vector.shape_cast %116 : vector<16xf32> to vector<1x16xf32>
    %c0_34 = arith.constant 0 : index
    %c0_35 = arith.constant 0 : index
    %118 = vector.load %arg8[%c0_34, %c0_35] : memref<16x4xf32, #tpu.memory_space<vmem>>, vector<16x4xf32>
    %cst_36 = arith.constant dense<0.000000e+00> : vector<1x4xf32>
    %119 = tpu.matmul %117, %118, %cst_36 {dimension_numbers = #tpu.dot_dimension_numbers<[1], [0], [0], [1], [0, 0, 1, 1], [], []>} : vector<1x16xf32>, vector<16x4xf32>, vector<1x4xf32> -> vector<1x4xf32>
    %c0_37 = arith.constant 0 : index
    %c0_38 = arith.constant 0 : index
    %120 = vector.load %arg9[%c0_37, %c0_38] : memref<1x4xf32, #tpu.memory_space<vmem>>, vector<1x4xf32>
    %121 = arith.addf %119, %120 : vector<1x4xf32>
    %cst_39 = arith.constant 0.000000e+00 : f32
    %122 = vector.broadcast %cst_39 : f32 to vector<1x4xf32>
    %123 = arith.maximumf %121, %122 : vector<1x4xf32>
    %c0_40 = arith.constant 0 : index
    %c0_41 = arith.constant 0 : index
    %124 = vector.load %arg10[%c0_40, %c0_41] : memref<4x16xf32, #tpu.memory_space<vmem>>, vector<4x16xf32>
    %cst_42 = arith.constant dense<0.000000e+00> : vector<1x16xf32>
    %125 = tpu.matmul %123, %124, %cst_42 {dimension_numbers = #tpu.dot_dimension_numbers<[1], [0], [0], [1], [0, 0, 1, 1], [], []>} : vector<1x4xf32>, vector<4x16xf32>, vector<1x16xf32> -> vector<1x16xf32>
    %c0_43 = arith.constant 0 : index
    %c0_44 = arith.constant 0 : index
    %126 = vector.load %arg11[%c0_43, %c0_44] : memref<1x16xf32, #tpu.memory_space<vmem>>, vector<1x16xf32>
    %127 = arith.addf %125, %126 : vector<1x16xf32>
    %cst_45 = arith.constant 3.000000e+00 : f32
    %128 = vector.broadcast %cst_45 : f32 to vector<1x16xf32>
    %129 = arith.addf %127, %128 : vector<1x16xf32>
    %cst_46 = arith.constant 0.000000e+00 : f32
    %cst_47 = arith.constant 6.000000e+00 : f32
    %130 = vector.broadcast %cst_46 : f32 to vector<1x16xf32>
    %131 = arith.maximumf %130, %129 : vector<1x16xf32>
    %132 = vector.broadcast %cst_47 : f32 to vector<1x16xf32>
    %133 = arith.minimumf %132, %131 : vector<1x16xf32>
    %cst_48 = arith.constant 0.166666672 : f32
    %134 = vector.broadcast %cst_48 : f32 to vector<1x16xf32>
    %135 = arith.mulf %133, %134 : vector<1x16xf32>
    %136 = vector.shape_cast %135 : vector<1x16xf32> to vector<1x1x16xf32>
    %137 = vector.broadcast %136 : vector<1x1x16xf32> to vector<16x16x16xf32>
    %138 = arith.mulf %112, %137 : vector<16x16x16xf32>
    %139 = vector.shape_cast %138 : vector<16x16x16xf32> to vector<256x16xf32>
    %c0_49 = arith.constant 0 : index
    %c0_50 = arith.constant 0 : index
    %140 = vector.load %arg12[%c0_49, %c0_50] : memref<16x4xf32, #tpu.memory_space<vmem>>, vector<16x4xf32>
    %cst_51 = arith.constant dense<0.000000e+00> : vector<256x4xf32>
    %141 = tpu.matmul %139, %140, %cst_51 {dimension_numbers = #tpu.dot_dimension_numbers<[1], [0], [0], [1], [0, 0, 1, 1], [], []>} : vector<256x16xf32>, vector<16x4xf32>, vector<256x4xf32> -> vector<256x4xf32>
    %c0_52 = arith.constant 0 : index
    %c0_53 = arith.constant 0 : index
    %142 = vector.load %arg13[%c0_52, %c0_53] : memref<1x4xf32, #tpu.memory_space<vmem>>, vector<1x4xf32>
    %143 = vector.broadcast %142 : vector<1x4xf32> to vector<256x4xf32>
    %144 = arith.mulf %141, %143 : vector<256x4xf32>
    %c0_54 = arith.constant 0 : index
    %c0_55 = arith.constant 0 : index
    %145 = vector.load %arg14[%c0_54, %c0_55] : memref<1x4xf32, #tpu.memory_space<vmem>>, vector<1x4xf32>
    %146 = vector.broadcast %145 : vector<1x4xf32> to vector<256x4xf32>
    %147 = arith.addf %144, %146 : vector<256x4xf32>
    %148 = vector.shape_cast %1 : vector<16x16x4xf32> to vector<256x4xf32>
    %149 = arith.addf %147, %148 : vector<256x4xf32>
    %150 = vector.shape_cast %149 : vector<256x4xf32> to vector<16x16x4xf32>
    %c0_56 = arith.constant 0 : index
    %c0_57 = arith.constant 0 : index
    %c0_58 = arith.constant 0 : index
    %c0_59 = arith.constant 0 : index
    %151 = vector.load %arg15[%c0_56, %c0_57, %c0_58, %c0_59] : memref<1x16x16x4xf32, #tpu.memory_space<vmem>>, vector<1x16x16x4xf32>
    %152 = vector.shape_cast %151 : vector<1x16x16x4xf32> to vector<16x16x4xf32>
    %153 = vector.shape_cast %150 : vector<16x16x4xf32> to vector<1x16x16x4xf32>
    tpu.vector_store %arg15[%c0_56, %c0_57, %c0_58, %c0_59], %153 {strides = array<i32>} : memref<1x16x16x4xf32, #tpu.memory_space<vmem>>, vector<1x16x16x4xf32>,
    return
  }
  func.func @transform_0(%arg0: i32) -> (i32, i32, i32, i32) {
    %c0_i32 = arith.constant 0 : i32
    %c0_i32_0 = arith.constant 0 : i32
    %c0_i32_1 = arith.constant 0 : i32
    %c0_i32_2 = arith.constant 0 : i32
    return %arg0, %c0_i32, %c0_i32_0, %c0_i32_1 : i32, i32, i32, i32
  }
  func.func @transform_1(%arg0: i32) -> (i32, i32) {
    %c0_i32 = arith.constant 0 : i32
    %c0_i32_0 = arith.constant 0 : i32
    %c0_i32_1 = arith.constant 0 : i32
    return %c0_i32, %c0_i32_0 : i32, i32
  }
  func.func @transform_2(%arg0: i32) -> (i32, i32) {
    %c0_i32 = arith.constant 0 : i32
    %c0_i32_0 = arith.constant 0 : i32
    %c0_i32_1 = arith.constant 0 : i32
    return %c0_i32, %c0_i32_0 : i32, i32
  }
  func.func @transform_3(%arg0: i32) -> (i32, i32) {
    %c0_i32 = arith.constant 0 : i32
    %c0_i32_0 = arith.constant 0 : i32
    %c0_i32_1 = arith.constant 0 : i32
    return %c0_i32, %c0_i32_0 : i32, i32
  }
  func.func @transform_4(%arg0: i32) -> (i32, i32) {
    %c0_i32 = arith.constant 0 : i32
    %c0_i32_0 = arith.constant 0 : i32
    %c0_i32_1 = arith.constant 0 : i32
    return %c0_i32, %c0_i32_0 : i32, i32
  }
  func.func @transform_5(%arg0: i32) -> (i32, i32) {
    %c0_i32 = arith.constant 0 : i32
    %c0_i32_0 = arith.constant 0 : i32
    %c0_i32_1 = arith.constant 0 : i32
    return %c0_i32, %c0_i32_0 : i32, i32
  }
  func.func @transform_6(%arg0: i32) -> (i32, i32) {
    %c0_i32 = arith.constant 0 : i32
    %c0_i32_0 = arith.constant 0 : i32
    %c0_i32_1 = arith.constant 0 : i32
    return %c0_i32, %c0_i32_0 : i32, i32
  }
  func.func @transform_7(%arg0: i32) -> (i32, i32) {
    %c0_i32 = arith.constant 0 : i32
    %c0_i32_0 = arith.constant 0 : i32
    %c0_i32_1 = arith.constant 0 : i32
    return %c0_i32, %c0_i32_0 : i32, i32
  }
  func.func @transform_8(%arg0: i32) -> (i32, i32) {
    %c0_i32 = arith.constant 0 : i32
    %c0_i32_0 = arith.constant 0 : i32
    %c0_i32_1 = arith.constant 0 : i32
    return %c0_i32, %c0_i32_0 : i32, i32
  }
  func.func @transform_9(%arg0: i32) -> (i32, i32) {
    %c0_i32 = arith.constant 0 : i32
    %c0_i32_0 = arith.constant 0 : i32
    %c0_i32_1 = arith.constant 0 : i32
    return %c0_i32, %c0_i32_0 : i32, i32
  }
  func.func @transform_10(%arg0: i32) -> (i32, i32) {
    %c0_i32 = arith.constant 0 : i32
    %c0_i32_0 = arith.constant 0 : i32
    %c0_i32_1 = arith.constant 0 : i32
    return %c0_i32, %c0_i32_0 : i32, i32
  }
  func.func @transform_11(%arg0: i32) -> (i32, i32) {
    %c0_i32 = arith.constant 0 : i32
    %c0_i32_0 = arith.constant 0 : i32
    %c0_i32_1 = arith.constant 0 : i32
    return %c0_i32, %c0_i32_0 : i32, i32
  }
  func.func @transform_12(%arg0: i32) -> (i32, i32) {
    %c0_i32 = arith.constant 0 : i32
    %c0_i32_0 = arith.constant 0 : i32
    %c0_i32_1 = arith.constant 0 : i32
    return %c0_i32, %c0_i32_0 : i32, i32
  }
  func.func @transform_13(%arg0: i32) -> (i32, i32) {
    %c0_i32 = arith.constant 0 : i32
    %c0_i32_0 = arith.constant 0 : i32
    %c0_i32_1 = arith.constant 0 : i32
    return %c0_i32, %c0_i32_0 : i32, i32
  }
  func.func @transform_14(%arg0: i32) -> (i32, i32, i32, i32) {
    %c0_i32 = arith.constant 0 : i32
    %c0_i32_0 = arith.constant 0 : i32
    %c0_i32_1 = arith.constant 0 : i32
    %c0_i32_2 = arith.constant 0 : i32
    return %arg0, %c0_i32, %c0_i32_0, %c0_i32_1 : i32, i32, i32, i32
  }
}

</mosaic_0001>

<llo_original>
// kernel: tpu_custom_call.1
$region0: #{tpu_custom_call.1}
  #allocation0 [shape = 'u32[]', space=smem, size = 0x4, offset = 0x4, fixed_abs, tag = 'smem constant byte address 0x4 - core index']
  #allocation1 [shape = 'u32[144,128]{1,0:T(1,128)}', space=vmem, size = 0x12000, scoped, tag = 'internal scratch']
  #allocation2 [shape = 'f32[18,18,16]{2,1,0:T(8,128)}', space=vmem, size = 0x36000, scoped, tag = 'scratch operand']
  %s0 = inlined_call_operand.vmem [shape: f32[2,16,16,4], index: 0, kind: input, shape index: {}]
  %s1 = inlined_call_operand.vmem [shape: f32[4,16], index: 1, kind: input, shape index: {}]
  %s2 = inlined_call_operand.vmem [shape: f32[1,16], index: 2, kind: input, shape index: {}]
  %s3 = inlined_call_operand.vmem [shape: f32[1,16], index: 3, kind: input, shape index: {}]
  %s4 = inlined_call_operand.vmem [shape: f32[9,16], index: 4, kind: input, shape index: {}]
  %s5 = inlined_call_operand.vmem [shape: f32[1,16], index: 5, kind: input, shape index: {}]
  %s6 = inlined_call_operand.vmem [shape: f32[1,16], index: 6, kind: input, shape index: {}]
  %s7 = inlined_call_operand.vmem [shape: f32[16,4], index: 7, kind: input, shape index: {}]
  %s8 = inlined_call_operand.vmem [shape: f32[1,4], index: 8, kind: input, shape index: {}]
  %s9 = inlined_call_operand.vmem [shape: f32[4,16], index: 9, kind: input, shape index: {}]
  %s10 = inlined_call_operand.vmem [shape: f32[1,16], index: 10, kind: input, shape index: {}]
  %s11 = inlined_call_operand.vmem [shape: f32[16,4], index: 11, kind: input, shape index: {}]
  %s12 = inlined_call_operand.vmem [shape: f32[1,4], index: 12, kind: input, shape index: {}]
  %s13 = inlined_call_operand.vmem [shape: f32[1,4], index: 13, kind: input, shape index: {}]
  %s14 = inlined_call_operand.vmem [shape: f32[2,16,16,4], index: 14, kind: output, shape index: {}]
  %s15 = sld [smem:[#allocation0]]
  $region89: #{tpu_custom_call.1} parent=0
    _
  %s17 = ssub.s32 1, %s15
  %s18 = scalar_select 0, %s17, %s15
  loop: start=0, step=1, limit=4
  $region2: #{tpu_custom_call.1} parent=0 // loop_pre_header
    _
  $region3: #{tpu_custom_call.1} parent=0 // loop_header
    %s20 = sphi 0, %s24
    %p21 = scmp.ge.s32.totalorder %s20, 4
    %s30 = sphi 0, %s32
    %s33 = sphi 0, %s30
    %s34 = sphi 0, %s33
    %s50 = sphi 0, %s34
    %s54 = sphi 0, %s54
    %s56 = sphi 0, %s54
    %s57 = sphi 0, %s56
    %s71 = sphi 0, %s57
    %s75 = sphi 0, %s75
    %s77 = sphi 0, %s75
    %s78 = sphi 0, %s77
    %s92 = sphi 0, %s78
    %s96 = sphi 0, %s96
    %s98 = sphi 0, %s96
    %s99 = sphi 0, %s98
    %s113 = sphi 0, %s99
    %s117 = sphi 0, %s117
    %s119 = sphi 0, %s117
    %s120 = sphi 0, %s119
    %s134 = sphi 0, %s120
    %s138 = sphi 0, %s138
    %s140 = sphi 0, %s138
    %s141 = sphi 0, %s140
    %s155 = sphi 0, %s141
    %s159 = sphi 0, %s159
    %s161 = sphi 0, %s159
    %s162 = sphi 0, %s161
    %s176 = sphi 0, %s162
    %s180 = sphi 0, %s180
    %s182 = sphi 0, %s180
    %s183 = sphi 0, %s182
    %s197 = sphi 0, %s183
    %s201 = sphi 0, %s201
    %s203 = sphi 0, %s201
    %s204 = sphi 0, %s203
    %s218 = sphi 0, %s204
    %s222 = sphi 0, %s222
    %s224 = sphi 0, %s222
    %s225 = sphi 0, %s224
    %s239 = sphi 0, %s225
    %s243 = sphi 0, %s243
    %s245 = sphi 0, %s243
    %s246 = sphi 0, %s245
    %s260 = sphi 0, %s246
    %s264 = sphi 0, %s264
    %s266 = sphi 0, %s264
    %s267 = sphi 0, %s266
    %s281 = sphi 0, %s267
    %s285 = sphi 0, %s285
    %s287 = sphi 0, %s285
    %s288 = sphi 0, %s287
    %s302 = sphi 0, %s288
    %s306 = sphi 0, %s306
    %s308 = sphi 0, %s306
    %s309 = sphi 0, %s308
    %s323 = sphi 0, %s309
    %s329 = sphi 0, %s331
    %s332 = sphi 0, %s329
    %s333 = sphi 0, %s332
    %s349 = sphi 0, %s333
  $region4: #{tpu_custom_call.1} parent=0 // loop_header_branch
    %23 = sbr.rel (%p21) target = $region8
  $region5: #{tpu_custom_call.1} parent=0 // loop_body
    %s25 = ssub.s32 %s20, 1
    %s26 = ssub.s32 %s20, 2
    %s27 = sadd.s32 %s20, 1
    %s28 = ssub.s32 %s20, %s27
    %p29 = scmp.eq.s32.totalorder %s28, 0
    %s31 = sadd.s32 %s30, 1
    %s32 = scalar_select %p29, %s30, %s31
    %p35 = pneg %p29
    %p36 = scmp.eq.s32.totalorder %s20, 1
    %p37 = por %p35, %p36
    %p38 = scmp.ne.s32.totalorder %s30, %s33
    %p39 = scmp.eq.s32.totalorder %s20, 0
    %p40 = por %p38, %p39
    %p41 = scmp.ne.s32.totalorder %s30, %s33
    %p42 = scmp.eq.s32.totalorder %s25, 1
    %p43 = por %p41, %p42
    %p44 = scmp.ne.s32.totalorder %s33, %s34
    %p45 = scmp.eq.s32.totalorder %s25, 0
    %p46 = por %p44, %p45
    %p47 = scmp.ne.s32.totalorder %s33, %s34
    %p48 = scmp.eq.s32.totalorder %s26, 1
    %p49 = por %p47, %p48
    %p51 = scmp.ne.s32.totalorder %s34, %s50
    %p52 = scmp.eq.s32.totalorder %s26, 0
    %p53 = por %p51, %p52
    %s55 = sadd.s32 %s54, 1
    %p58 = scmp.eq.s32.totalorder %s20, 1
    %p59 = scmp.ne.s32.totalorder %s54, %s56
    %p60 = scmp.eq.s32.totalorder %s20, 0
    %p61 = por %p59, %p60
    %p62 = scmp.ne.s32.totalorder %s54, %s56
    %p63 = scmp.eq.s32.totalorder %s25, 1
    %p64 = por %p62, %p63
    %p65 = scmp.ne.s32.totalorder %s56, %s57
    %p66 = scmp.eq.s32.totalorder %s25, 0
    %p67 = por %p65, %p66
    %p68 = scmp.ne.s32.totalorder %s56, %s57
    %p69 = scmp.eq.s32.totalorder %s26, 1
    %p70 = por %p68, %p69
    %p72 = scmp.ne.s32.totalorder %s57, %s71
    %p73 = scmp.eq.s32.totalorder %s26, 0
    %p74 = por %p72, %p73
    %s76 = sadd.s32 %s75, 1
    %p79 = scmp.eq.s32.totalorder %s20, 1
    %p80 = scmp.ne.s32.totalorder %s75, %s77
    %p81 = scmp.eq.s32.totalorder %s20, 0
    %p82 = por %p80, %p81
    %p83 = scmp.ne.s32.totalorder %s75, %s77
    %p84 = scmp.eq.s32.totalorder %s25, 1
    %p85 = por %p83, %p84
    %p86 = scmp.ne.s32.totalorder %s77, %s78
    %p87 = scmp.eq.s32.totalorder %s25, 0
    %p88 = por %p86, %p87
    %p89 = scmp.ne.s32.totalorder %s77, %s78
    %p90 = scmp.eq.s32.totalorder %s26, 1
    %p91 = por %p89, %p90
    %p93 = scmp.ne.s32.totalorder %s78, %s92
    %p94 = scmp.eq.s32.totalorder %s26, 0
    %p95 = por %p93, %p94
    %s97 = sadd.s32 %s96, 1
    %p100 = scmp.eq.s32.totalorder %s20, 1
    %p101 = scmp.ne.s32.totalorder %s96, %s98
    %p102 = scmp.eq.s32.totalorder %s20, 0
    %p103 = por %p101, %p102
    %p104 = scmp.ne.s32.totalorder %s96, %s98
    %p105 = scmp.eq.s32.totalorder %s25, 1
    %p106 = por %p104, %p105
    %p107 = scmp.ne.s32.totalorder %s98, %s99
    %p108 = scmp.eq.s32.totalorder %s25, 0
    %p109 = por %p107, %p108
    %p110 = scmp.ne.s32.totalorder %s98, %s99
    %p111 = scmp.eq.s32.totalorder %s26, 1
    %p112 = por %p110, %p111
    %p114 = scmp.ne.s32.totalorder %s99, %s113
    %p115 = scmp.eq.s32.totalorder %s26, 0
    %p116 = por %p114, %p115
    %s118 = sadd.s32 %s117, 1
    %p121 = scmp.eq.s32.totalorder %s20, 1
    %p122 = scmp.ne.s32.totalorder %s117, %s119
    %p123 = scmp.eq.s32.totalorder %s20, 0
    %p124 = por %p122, %p123
    %p125 = scmp.ne.s32.totalorder %s117, %s119
    %p126 = scmp.eq.s32.totalorder %s25, 1
    %p127 = por %p125, %p126
    %p128 = scmp.ne.s32.totalorder %s119, %s120
    %p129 = scmp.eq.s32.totalorder %s25, 0
    %p130 = por %p128, %p129
    %p131 = scmp.ne.s32.totalorder %s119, %s120
    %p132 = scmp.eq.s32.totalorder %s26, 1
    %p133 = por %p131, %p132
    %p135 = scmp.ne.s32.totalorder %s120, %s134
    %p136 = scmp.eq.s32.totalorder %s26, 0
    %p137 = por %p135, %p136
    %s139 = sadd.s32 %s138, 1
    %p142 = scmp.eq.s32.totalorder %s20, 1
    %p143 = scmp.ne.s32.totalorder %s138, %s140
    %p144 = scmp.eq.s32.totalorder %s20, 0
    %p145 = por %p143, %p144
    %p146 = scmp.ne.s32.totalorder %s138, %s140
    %p147 = scmp.eq.s32.totalorder %s25, 1
    %p148 = por %p146, %p147
    %p149 = scmp.ne.s32.totalorder %s140, %s141
    %p150 = scmp.eq.s32.totalorder %s25, 0
    %p151 = por %p149, %p150
    %p152 = scmp.ne.s32.totalorder %s140, %s141
    %p153 = scmp.eq.s32.totalorder %s26, 1
    %p154 = por %p152, %p153
    %p156 = scmp.ne.s32.totalorder %s141, %s155
    %p157 = scmp.eq.s32.totalorder %s26, 0
    %p158 = por %p156, %p157
    %s160 = sadd.s32 %s159, 1
    %p163 = scmp.eq.s32.totalorder %s20, 1
    %p164 = scmp.ne.s32.totalorder %s159, %s161
    %p165 = scmp.eq.s32.totalorder %s20, 0
    %p166 = por %p164, %p165
    %p167 = scmp.ne.s32.totalorder %s159, %s161
    %p168 = scmp.eq.s32.totalorder %s25, 1
    %p169 = por %p167, %p168
    %p170 = scmp.ne.s32.totalorder %s161, %s162
    %p171 = scmp.eq.s32.totalorder %s25, 0
    %p172 = por %p170, %p171
    %p173 = scmp.ne.s32.totalorder %s161, %s162
    %p174 = scmp.eq.s32.totalorder %s26, 1
    %p175 = por %p173, %p174
    %p177 = scmp.ne.s32.totalorder %s162, %s176
    %p178 = scmp.eq.s32.totalorder %s26, 0
    %p179 = por %p177, %p178
    %s181 = sadd.s32 %s180, 1
    %p184 = scmp.eq.s32.totalorder %s20, 1
    %p185 = scmp.ne.s32.totalorder %s180, %s182
    %p186 = scmp.eq.s32.totalorder %s20, 0
    %p187 = por %p185, %p186
    %p188 = scmp.ne.s32.totalorder %s180, %s182
    %p189 = scmp.eq.s32.totalorder %s25, 1
    %p190 = por %p188, %p189
    %p191 = scmp.ne.s32.totalorder %s182, %s183
    %p192 = scmp.eq.s32.totalorder %s25, 0
    %p193 = por %p191, %p192
    %p194 = scmp.ne.s32.totalorder %s182, %s183
    %p195 = scmp.eq.s32.totalorder %s26, 1
    %p196 = por %p194, %p195
    %p198 = scmp.ne.s32.totalorder %s183, %s197
    %p199 = scmp.eq.s32.totalorder %s26, 0
    %p200 = por %p198, %p199
    %s202 = sadd.s32 %s201, 1
    %p205 = scmp.eq.s32.totalorder %s20, 1
    %p206 = scmp.ne.s32.totalorder %s201, %s203
    %p207 = scmp.eq.s32.totalorder %s20, 0
    %p208 = por %p206, %p207
    %p209 = scmp.ne.s32.totalorder %s201, %s203
    %p210 = scmp.eq.s32.totalorder %s25, 1
    %p211 = por %p209, %p210
    %p212 = scmp.ne.s32.totalorder %s203, %s204
    %p213 = scmp.eq.s32.totalorder %s25, 0
    %p214 = por %p212, %p213
    %p215 = scmp.ne.s32.totalorder %s203, %s204
    %p216 = scmp.eq.s32.totalorder %s26, 1
    %p217 = por %p215, %p216
    %p219 = scmp.ne.s32.totalorder %s204, %s218
    %p220 = scmp.eq.s32.totalorder %s26, 0
    %p221 = por %p219, %p220
    %s223 = sadd.s32 %s222, 1
    %p226 = scmp.eq.s32.totalorder %s20, 1
    %p227 = scmp.ne.s32.totalorder %s222, %s224
    %p228 = scmp.eq.s32.totalorder %s20, 0
    %p229 = por %p227, %p228
    %p230 = scmp.ne.s32.totalorder %s222, %s224
    %p231 = scmp.eq.s32.totalorder %s25, 1
    %p232 = por %p230, %p231
    %p233 = scmp.ne.s32.totalorder %s224, %s225
    %p234 = scmp.eq.s32.totalorder %s25, 0
    %p235 = por %p233, %p234
    %p236 = scmp.ne.s32.totalorder %s224, %s225
    %p237 = scmp.eq.s32.totalorder %s26, 1
    %p238 = por %p236, %p237
    %p240 = scmp.ne.s32.totalorder %s225, %s239
    %p241 = scmp.eq.s32.totalorder %s26, 0
    %p242 = por %p240, %p241
    %s244 = sadd.s32 %s243, 1
    %p247 = scmp.eq.s32.totalorder %s20, 1
    %p248 = scmp.ne.s32.totalorder %s243, %s245
    %p249 = scmp.eq.s32.totalorder %s20, 0
    %p250 = por %p248, %p249
    %p251 = scmp.ne.s32.totalorder %s243, %s245
    %p252 = scmp.eq.s32.totalorder %s25, 1
    %p253 = por %p251, %p252
    %p254 = scmp.ne.s32.totalorder %s245, %s246
    %p255 = scmp.eq.s32.totalorder %s25, 0
    %p256 = por %p254, %p255
    %p257 = scmp.ne.s32.totalorder %s245, %s246
    %p258 = scmp.eq.s32.totalorder %s26, 1
    %p259 = por %p257, %p258
    %p261 = scmp.ne.s32.totalorder %s246, %s260
    %p262 = scmp.eq.s32.totalorder %s26, 0
    %p263 = por %p261, %p262
    %s265 = sadd.s32 %s264, 1
    %p268 = scmp.eq.s32.totalorder %s20, 1
    %p269 = scmp.ne.s32.totalorder %s264, %s266
    %p270 = scmp.eq.s32.totalorder %s20, 0
    %p271 = por %p269, %p270
    %p272 = scmp.ne.s32.totalorder %s264, %s266
    %p273 = scmp.eq.s32.totalorder %s25, 1
    %p274 = por %p272, %p273
    %p275 = scmp.ne.s32.totalorder %s266, %s267
    %p276 = scmp.eq.s32.totalorder %s25, 0
    %p277 = por %p275, %p276
    %p278 = scmp.ne.s32.totalorder %s266, %s267
    %p279 = scmp.eq.s32.totalorder %s26, 1
    %p280 = por %p278, %p279
    %p282 = scmp.ne.s32.totalorder %s267, %s281
    %p283 = scmp.eq.s32.totalorder %s26, 0
    %p284 = por %p282, %p283
    %s286 = sadd.s32 %s285, 1
    %p289 = scmp.eq.s32.totalorder %s20, 1
    %p290 = scmp.ne.s32.totalorder %s285, %s287
    %p291 = scmp.eq.s32.totalorder %s20, 0
    %p292 = por %p290, %p291
    %p293 = scmp.ne.s32.totalorder %s285, %s287
    %p294 = scmp.eq.s32.totalorder %s25, 1
    %p295 = por %p293, %p294
    %p296 = scmp.ne.s32.totalorder %s287, %s288
    %p297 = scmp.eq.s32.totalorder %s25, 0
    %p298 = por %p296, %p297
    %p299 = scmp.ne.s32.totalorder %s287, %s288
    %p300 = scmp.eq.s32.totalorder %s26, 1
    %p301 = por %p299, %p300
    %p303 = scmp.ne.s32.totalorder %s288, %s302
    %p304 = scmp.eq.s32.totalorder %s26, 0
    %p305 = por %p303, %p304
    %s307 = sadd.s32 %s306, 1
    %p310 = scmp.eq.s32.totalorder %s20, 1
    %p311 = scmp.ne.s32.totalorder %s306, %s308
    %p312 = scmp.eq.s32.totalorder %s20, 0
    %p313 = por %p311, %p312
    %p314 = scmp.ne.s32.totalorder %s306, %s308
    %p315 = scmp.eq.s32.totalorder %s25, 1
    %p316 = por %p314, %p315
    %p317 = scmp.ne.s32.totalorder %s308, %s309
    %p318 = scmp.eq.s32.totalorder %s25, 0
    %p319 = por %p317, %p318
    %p320 = scmp.ne.s32.totalorder %s308, %s309
    %p321 = scmp.eq.s32.totalorder %s26, 1
    %p322 = por %p320, %p321
    %p324 = scmp.ne.s32.totalorder %s309, %s323
    %p325 = scmp.eq.s32.totalorder %s26, 0
    %p326 = por %p324, %p325
    %s327 = ssub.s32 %s20, %s27
    %p328 = scmp.eq.s32.totalorder %s327, 0
    %s330 = sadd.s32 %s329, 1
    %s331 = scalar_select %p328, %s329, %s330
    %p334 = pneg %p328
    %p335 = scmp.eq.s32.totalorder %s20, 1
    %p336 = por %p334, %p335
    %p337 = scmp.ne.s32.totalorder %s329, %s332
    %p338 = scmp.eq.s32.totalorder %s20, 0
    %p339 = por %p337, %p338
    %p340 = scmp.ne.s32.totalorder %s329, %s332
    %p341 = scmp.eq.s32.totalorder %s25, 1
    %p342 = por %p340, %p341
    %p343 = scmp.ne.s32.totalorder %s332, %s333
    %p344 = scmp.eq.s32.totalorder %s25, 0
    %p345 = por %p343, %p344
    %p346 = scmp.ne.s32.totalorder %s332, %s333
    %p347 = scmp.eq.s32.totalorder %s26, 1
    %p348 = por %p346, %p347
    %p350 = scmp.ne.s32.totalorder %s333, %s349
    %p351 = scmp.eq.s32.totalorder %s26, 0
    %p352 = por %p350, %p351
    %p353 = scmp.le.s32.totalorder 1, %s20
    %p354 = scmp.lt.s32.totalorder %s20, 3
    %p355 = pnand %p353, %p354
    %p356 = pneg %p355
    // Predicated region
    $region9: #{tpu_custom_call.1} parent=5 // pred_check
      _
    $region10: #{tpu_custom_call.1} parent=5 // pred_check_branch
      %358 = sbr.rel (%p355) target = $region12
    $region11: #{tpu_custom_call.1} parent=5 // pred_region
      %s359 = ssub.s32 %s20, 1
      // Predicated region
      $region13: #{tpu_custom_call.1} parent=11 // pred_check
        %p360 = pneg %p67
      $region14: #{tpu_custom_call.1} parent=11 // pred_check_branch
        %362 = sbr.rel (%p360) target = $region16
      $region15: #{tpu_custom_call.1} parent=11 // pred_region
        _
      $region16: #{tpu_custom_call.1} parent=11 // pred_fallthru
        _
      // Predicated region
      $region17: #{tpu_custom_call.1} parent=11 // pred_check
        %p363 = pneg %p88
      $region18: #{tpu_custom_call.1} parent=11 // pred_check_branch
        %365 = sbr.rel (%p363) target = $region20
      $region19: #{tpu_custom_call.1} parent=11 // pred_region
        _
      $region20: #{tpu_custom_call.1} parent=11 // pred_fallthru
        _
      // Predicated region
      $region21: #{tpu_custom_call.1} parent=11 // pred_check
        %p366 = pneg %p109
      $region22: #{tpu_custom_call.1} parent=11 // pred_check_branch
        %368 = sbr.rel (%p366) target = $region24
      $region23: #{tpu_custom_call.1} parent=11 // pred_region
        _
      $region24: #{tpu_custom_call.1} parent=11 // pred_fallthru
        _
      // Predicated region
      $region25: #{tpu_custom_call.1} parent=11 // pred_check
        %p369 = pneg %p130
      $region26: #{tpu_custom_call.1} parent=11 // pred_check_branch
        %371 = sbr.rel (%p369) target = $region28
      $region27: #{tpu_custom_call.1} parent=11 // pred_region
        _
      $region28: #{tpu_custom_call.1} parent=11 // pred_fallthru
        _
      // Predicated region
      $region29: #{tpu_custom_call.1} parent=11 // pred_check
        %p372 = pneg %p151
      $region30: #{tpu_custom_call.1} parent=11 // pred_check_branch
        %374 = sbr.rel (%p372) target = $region32
      $region31: #{tpu_custom_call.1} parent=11 // pred_region
        _
      $region32: #{tpu_custom_call.1} parent=11 // pred_fallthru
        _
      // Predicated region
      $region33: #{tpu_custom_call.1} parent=11 // pred_check
        %p375 = pneg %p172
      $region34: #{tpu_custom_call.1} parent=11 // pred_check_branch
        %377 = sbr.rel (%p375) target = $region36
      $region35: #{tpu_custom_call.1} parent=11 // pred_region
        _
      $region36: #{tpu_custom_call.1} parent=11 // pred_fallthru
        _
      // Predicated region
      $region37: #{tpu_custom_call.1} parent=11 // pred_check
        %p378 = pneg %p193
      $region38: #{tpu_custom_call.1} parent=11 // pred_check_branch
        %380 = sbr.rel (%p378) target = $region40
      $region39: #{tpu_custom_call.1} parent=11 // pred_region
        _
      $region40: #{tpu_custom_call.1} parent=11 // pred_fallthru
        _
      // Predicated region
      $region41: #{tpu_custom_call.1} parent=11 // pred_check
        %p381 = pneg %p214
      $region42: #{tpu_custom_call.1} parent=11 // pred_check_branch
        %383 = sbr.rel (%p381) target = $region44
      $region43: #{tpu_custom_call.1} parent=11 // pred_region
        _
      $region44: #{tpu_custom_call.1} parent=11 // pred_fallthru
        _
      // Predicated region
      $region45: #{tpu_custom_call.1} parent=11 // pred_check
        %p384 = pneg %p235
      $region46: #{tpu_custom_call.1} parent=11 // pred_check_branch
        %386 = sbr.rel (%p384) target = $region48
      $region47: #{tpu_custom_call.1} parent=11 // pred_region
        _
      $region48: #{tpu_custom_call.1} parent=11 // pred_fallthru
        _
      // Predicated region
      $region49: #{tpu_custom_call.1} parent=11 // pred_check
        %p387 = pneg %p256
      $region50: #{tpu_custom_call.1} parent=11 // pred_check_branch
        %389 = sbr.rel (%p387) target = $region52
      $region51: #{tpu_custom_call.1} parent=11 // pred_region
        _
      $region52: #{tpu_custom_call.1} parent=11 // pred_fallthru
        _
      // Predicated region
      $region53: #{tpu_custom_call.1} parent=11 // pred_check
        %p390 = pneg %p277
      $region54: #{tpu_custom_call.1} parent=11 // pred_check_branch
        %392 = sbr.rel (%p390) target = $region56
      $region55: #{tpu_custom_call.1} parent=11 // pred_region
        _
      $region56: #{tpu_custom_call.1} parent=11 // pred_fallthru
        _
      // Predicated region
      $region57: #{tpu_custom_call.1} parent=11 // pred_check
        %p393 = pneg %p298
      $region58: #{tpu_custom_call.1} parent=11 // pred_check_branch
        %395 = sbr.rel (%p393) target = $region60
      $region59: #{tpu_custom_call.1} parent=11 // pred_region
        _
      $region60: #{tpu_custom_call.1} parent=11 // pred_fallthru
        _
      // Predicated region
      $region61: #{tpu_custom_call.1} parent=11 // pred_check
        %p396 = pneg %p319
      $region62: #{tpu_custom_call.1} parent=11 // pred_check_branch
        %398 = sbr.rel (%p396) target = $region64
      $region63: #{tpu_custom_call.1} parent=11 // pred_region
        _
      $region64: #{tpu_custom_call.1} parent=11 // pred_fallthru
        _
    $region12: #{tpu_custom_call.1} parent=5 // pred_fallthru
      _
    %p399 = scmp.lt.s32.totalorder %s20, 2
    // Predicated region
    $region65: #{tpu_custom_call.1} parent=5 // pred_check
      %p400 = pneg %p399
    $region66: #{tpu_custom_call.1} parent=5 // pred_check_branch
      %402 = sbr.rel (%p400) target = $region68
    $region67: #{tpu_custom_call.1} parent=5 // pred_region
      // Predicated region
      $region69: #{tpu_custom_call.1} parent=67 // pred_check
        %p403 = pneg %p40
      $region70: #{tpu_custom_call.1} parent=67 // pred_check_branch
        %405 = sbr.rel (%p403) target = $region72
      $region71: #{tpu_custom_call.1} parent=67 // pred_region
        %p406 = scmp.lt.s32.totalorder %s20, 1
        %s407 = scalar_select %p406, %s20, 1
        %s408 = smul.addr %s407, 32
        %s409 = smul.addr %s408, 8
        %s410 = scalar_lea.vmem %s0, %s409
      $region72: #{tpu_custom_call.1} parent=67 // pred_fallthru
        _
    $region68: #{tpu_custom_call.1} parent=5 // pred_fallthru
      _
    %p411 = scmp.le.s32.totalorder 1, %s20
    %p412 = scmp.lt.s32.totalorder %s20, 3
    %p413 = pnand %p411, %p412
    %p414 = pneg %p413
    // Predicated region
    $region73: #{tpu_custom_call.1} parent=5 // pred_check
      _
    $region74: #{tpu_custom_call.1} parent=5 // pred_check_branch
      %416 = sbr.rel (%p413) target = $region76
    $region75: #{tpu_custom_call.1} parent=5 // pred_region
      %s417 = ssub.s32 %s20, 1
      %p418 = scmp.lt.s32.totalorder %s25, 1
      %s419 = scalar_select %p418, %s25, 1
      %s420 = smul.addr %s419, 32
      %s421 = smul.addr %s420, 8
      %s422 = scalar_lea.vmem %s0, %s421
      %p423 = pneg %p46
      %p424 = pneg %p43
      %p425 = pneg %p67
      %p426 = pneg %p64
      %p427 = pneg %p88
      %p428 = pneg %p85
      %p429 = pneg %p109
      %p430 = pneg %p106
      %p431 = pneg %p130
      %p432 = pneg %p127
      %p433 = pneg %p151
      %p434 = pneg %p148
      %p435 = pneg %p172
      %p436 = pneg %p169
      %p437 = pneg %p193
      %p438 = pneg %p190
      %p439 = pneg %p214
      %p440 = pneg %p211
      %p441 = pneg %p235
      %p442 = pneg %p232
      %p443 = pneg %p256
      %p444 = pneg %p253
      %p445 = pneg %p277
      %p446 = pneg %p274
      %p447 = pneg %p298
      %p448 = pneg %p295
      %p449 = pneg %p319
      %p450 = pneg %p316
      %p451 = pneg %p345
      %p452 = pneg %p342
      %p453 = scmp.lt.s32.totalorder %s25, 1
      %s454 = scalar_select %p453, %s25, 1
      %s455 = smul.addr %s454, 32
      %s456 = smul.addr %s455, 8
      %s457 = scalar_lea.vmem %s14, %s456
      %p458 = scmp.lt.s32.totalorder %s25, 1
      %s459 = scalar_select %p458, %s25, 1
      %s460 = smul.addr %s459, 32
      %s461 = smul.addr %s460, 8
      %s462 = scalar_lea.vmem %s0, %s461
      %p463 = scmp.lt.s32.totalorder %s25, 1
      %s464 = scalar_select %p463, %s25, 1
      %s465 = smul.addr %s464, 32
      %s466 = smul.addr %s465, 8
      %s467 = scalar_lea.vmem %s14, %s466
      %v468 = vld [vmem:[%s462] sm:$0xff]
      %v469 = vld [vmem:[%s462 + $0x8] sm:$0xff]
      %v470 = vld [vmem:[%s462 + $0x10] sm:$0xff]
      %v471 = vld [vmem:[%s462 + $0x18] sm:$0xff]
      %v472 = vld [vmem:[%s462 + $0x20] sm:$0xff]
      %v473 = vld [vmem:[%s462 + $0x28] sm:$0xff]
      %v474 = vld [vmem:[%s462 + $0x30] sm:$0xff]
      %v475 = vld [vmem:[%s462 + $0x38] sm:$0xff]
      %v476 = vld [vmem:[%s462 + $0x40] sm:$0xff]
      %v477 = vld [vmem:[%s462 + $0x48] sm:$0xff]
      %v478 = vld [vmem:[%s462 + $0x50] sm:$0xff]
      %v479 = vld [vmem:[%s462 + $0x58] sm:$0xff]
      %v480 = vld [vmem:[%s462 + $0x60] sm:$0xff]
      %v481 = vld [vmem:[%s462 + $0x68] sm:$0xff]
      %v482 = vld [vmem:[%s462 + $0x70] sm:$0xff]
      %v483 = vld [vmem:[%s462 + $0x78] sm:$0xff]
      %v484 = vld [vmem:[%s462 + $0x80] sm:$0xff]
      %v485 = vld [vmem:[%s462 + $0x88] sm:$0xff]
      %v486 = vld [vmem:[%s462 + $0x90] sm:$0xff]
      %v487 = vld [vmem:[%s462 + $0x98] sm:$0xff]
      %v488 = vld [vmem:[%s462 + $0xa0] sm:$0xff]
      %v489 = vld [vmem:[%s462 + $0xa8] sm:$0xff]
      %v490 = vld [vmem:[%s462 + $0xb0] sm:$0xff]
      %v491 = vld [vmem:[%s462 + $0xb8] sm:$0xff]
      %v492 = vld [vmem:[%s462 + $0xc0] sm:$0xff]
      %v493 = vld [vmem:[%s462 + $0xc8] sm:$0xff]
      %v494 = vld [vmem:[%s462 + $0xd0] sm:$0xff]
      %v495 = vld [vmem:[%s462 + $0xd8] sm:$0xff]
      %v496 = vld [vmem:[%s462 + $0xe0] sm:$0xff]
      %v497 = vld [vmem:[%s462 + $0xe8] sm:$0xff]
      %v498 = vld [vmem:[%s462 + $0xf0] sm:$0xff]
      %v499 = vld [vmem:[%s462 + $0xf8] sm:$0xff]
      %v500 = vld [vmem:[%s1] sm:$0xf]
      %vm501 = vcmask 31744
      %v503 = vsel %vm501, %v468, 0
      %v506 = vsel %vm501, %v469, 0
      %v509 = vsel %vm501, %v470, 0
      %v512 = vsel %vm501, %v471, 0
      %v515 = vsel %vm501, %v472, 0
      %v518 = vsel %vm501, %v473, 0
      %v521 = vsel %vm501, %v474, 0
      %v524 = vsel %vm501, %v475, 0
      %v527 = vsel %vm501, %v476, 0
      %v530 = vsel %vm501, %v477, 0
      %v533 = vsel %vm501, %v478, 0
      %v536 = vsel %vm501, %v479, 0
      %v539 = vsel %vm501, %v480, 0
      %v542 = vsel %vm501, %v481, 0
      %v545 = vsel %vm501, %v482, 0
      %v548 = vsel %vm501, %v483, 0
      %v551 = vsel %vm501, %v484, 0
      %v554 = vsel %vm501, %v485, 0
      %v557 = vsel %vm501, %v486, 0
      %v560 = vsel %vm501, %v487, 0
      %v563 = vsel %vm501, %v488, 0
      %v566 = vsel %vm501, %v489, 0
      %v569 = vsel %vm501, %v490, 0
      %v572 = vsel %vm501, %v491, 0
      %v575 = vsel %vm501, %v492, 0
      %v578 = vsel %vm501, %v493, 0
      %v581 = vsel %vm501, %v494, 0
      %v584 = vsel %vm501, %v495, 0
      %v587 = vsel %vm501, %v496, 0
      %v590 = vsel %vm501, %v497, 0
      %v593 = vsel %vm501, %v498, 0
      %v596 = vsel %vm501, %v499, 0
      %vm598 = vcmask 1043456
      %v600 = vsel %vm598, %v500, 0
      %602 = vmatprep.subr.mxu0 0.0
      %603 = vmatpush1.msra.mxu0 %v600
      %604 = vmatprep.subr.mxu0 0.0
      %605 = vmatpush1.msra.mxu0 0.0
      %606 = vmatprep.subr.mxu0 0.0
      %607 = vmatpush1.msra.mxu0 0.0
      %608 = vmatprep.subr.mxu0 0.0
      %609 = vmatpush1.msra.mxu0 0.0
      %610 = vmatprep.subr.mxu0 0.0
      %611 = vmatpush1.msra.mxu0 0.0
      %612 = vmatprep.subr.mxu0 0.0
      %613 = vmatpush1.msra.mxu0 0.0
      %614 = vmatprep.subr.mxu0 0.0
      %615 = vmatpush1.msra.mxu0 0.0
      %616 = vmatprep.subr.mxu0 0.0
      %617 = vmatpush1.msra.mxu0 0.0
      %618 = vmatprep.subr.mxu0 0.0
      %619 = vmatpush1.msra.mxu0 0.0
      %620 = vmatprep.subr.mxu0 0.0
      %621 = vmatpush1.msra.mxu0 0.0
      %622 = vmatprep.subr.mxu0 0.0
      %623 = vmatpush1.msra.mxu0 0.0
      %624 = vmatprep.subr.mxu0 0.0
      %625 = vmatpush1.msra.mxu0 0.0
      %626 = vmatprep.subr.mxu0 0.0
      %627 = vmatpush1.msra.mxu0 0.0
      %628 = vmatprep.subr.mxu0 0.0
      %629 = vmatpush1.msra.mxu0 0.0
      %630 = vmatprep.subr.mxu0 0.0
      %631 = vmatpush1.msra.mxu0 0.0
      %632 = vmatprep.subr.mxu0 0.0
      %633 = vmatpush1.msra.mxu0 0.0
      %634 = vmatprep.subr.mxu0 0.0
      %635 = vmatpush1.msra.mxu0 0.0
      %636 = vmatprep.subr.mxu0 0.0
      %637 = vmatpush1.msra.mxu0 0.0
      %638 = vmatprep.subr.mxu0 0.0
      %639 = vmatpush1.msra.mxu0 0.0
      %640 = vmatprep.subr.mxu0 0.0
      %641 = vmatpush1.msra.mxu0 0.0
      %642 = vmatprep.subr.mxu0 0.0
      %643 = vmatpush1.msra.mxu0 0.0
      %644 = vmatprep.subr.mxu0 0.0
      %645 = vmatpush1.msra.mxu0 0.0
      %646 = vmatprep.subr.mxu0 0.0
      %647 = vmatpush1.msra.mxu0 0.0
      %648 = vmatprep.subr.mxu0 0.0
      %649 = vmatpush1.msra.mxu0 0.0
      %650 = vmatprep.subr.mxu0 0.0
      %651 = vmatpush1.msra.mxu0 0.0
      %652 = vmatprep.subr.mxu0 0.0
      %653 = vmatpush1.msra.mxu0 0.0
      %654 = vmatprep.subr.mxu0 0.0
      %655 = vmatpush1.msra.mxu0 0.0
      %656 = vmatprep.subr.mxu0 0.0
      %657 = vmatpush1.msra.mxu0 0.0
      %658 = vmatprep.subr.mxu0 0.0
      %659 = vmatpush1.msra.mxu0 0.0
      %660 = vmatprep.subr.mxu0 0.0
      %661 = vmatpush1.msra.mxu0 0.0
      %662 = vmatprep.subr.mxu0 0.0
      %663 = vmatpush1.msra.mxu0 0.0
      %664 = vmatprep.subr.mxu0 0.0
      %665 = vmatpush1.msra.mxu0 0.0
      %666 = vmatprep.mubr.f32.mxu0 0.0
      %667 = vmatmul.mubr.f32.gmra.mrb[0].mxu0 %v503
      %v668 = vpop.f32.mrb[0].mxu0
      %v669 = vadd.f32 0.0, %v668
      %v670 = vpop.f32.mrb[0].mxu0
      %671 = vmatprep.mubr.f32.mxu0 0.0
      %672 = vmatmul.mubr.f32.gmra.mrb[0].mxu0 %v506
      %v673 = vpop.f32.mrb[0].mxu0
      %v674 = vadd.f32 0.0, %v673
      %v675 = vpop.f32.mrb[0].mxu0
      %676 = vmatprep.mubr.f32.mxu0 0.0
      %677 = vmatmul.mubr.f32.gmra.mrb[0].mxu0 %v509
      %v678 = vpop.f32.mrb[0].mxu0
      %v679 = vadd.f32 0.0, %v678
      %v680 = vpop.f32.mrb[0].mxu0
      %681 = vmatprep.mubr.f32.mxu0 0.0
      %682 = vmatmul.mubr.f32.gmra.mrb[0].mxu0 %v512
      %v683 = vpop.f32.mrb[0].mxu0
      %v684 = vadd.f32 0.0, %v683
      %v685 = vpop.f32.mrb[0].mxu0
      %686 = vmatprep.mubr.f32.mxu0 0.0
      %687 = vmatmul.mubr.f32.gmra.mrb[0].mxu0 %v515
      %v688 = vpop.f32.mrb[0].mxu0
      %v689 = vadd.f32 0.0, %v688
      %v690 = vpop.f32.mrb[0].mxu0
      %691 = vmatprep.mubr.f32.mxu0 0.0
      %692 = vmatmul.mubr.f32.gmra.mrb[0].mxu0 %v518
      %v693 = vpop.f32.mrb[0].mxu0
      %v694 = vadd.f32 0.0, %v693
      %v695 = vpop.f32.mrb[0].mxu0
      %696 = vmatprep.mubr.f32.mxu0 0.0
      %697 = vmatmul.mubr.f32.gmra.mrb[0].mxu0 %v521
      %v698 = vpop.f32.mrb[0].mxu0
      %v699 = vadd.f32 0.0, %v698
      %v700 = vpop.f32.mrb[0].mxu0
      %701 = vmatprep.mubr.f32.mxu0 0.0
      %702 = vmatmul.mubr.f32.gmra.mrb[0].mxu0 %v524
      %v703 = vpop.f32.mrb[0].mxu0
      %v704 = vadd.f32 0.0, %v703
      %v705 = vpop.f32.mrb[0].mxu0
      %706 = vmatprep.mubr.f32.mxu0 0.0
      %707 = vmatmul.mubr.f32.gmra.mrb[0].mxu0 %v527
      %v708 = vpop.f32.mrb[0].mxu0
      %v709 = vadd.f32 0.0, %v708
      %v710 = vpop.f32.mrb[0].mxu0
      %711 = vmatprep.mubr.f32.mxu0 0.0
      %712 = vmatmul.mubr.f32.gmra.mrb[0].mxu0 %v530
      %v713 = vpop.f32.mrb[0].mxu0
      %v714 = vadd.f32 0.0, %v713
      %v715 = vpop.f32.mrb[0].mxu0
      %716 = vmatprep.mubr.f32.mxu0 0.0
      %717 = vmatmul.mubr.f32.gmra.mrb[0].mxu0 %v533
      %v718 = vpop.f32.mrb[0].mxu0
      %v719 = vadd.f32 0.0, %v718
      %v720 = vpop.f32.mrb[0].mxu0
      %721 = vmatprep.mubr.f32.mxu0 0.0
      %722 = vmatmul.mubr.f32.gmra.mrb[0].mxu0 %v536
      %v723 = vpop.f32.mrb[0].mxu0
      %v724 = vadd.f32 0.0, %v723
      %v725 = vpop.f32.mrb[0].mxu0
      %726 = vmatprep.mubr.f32.mxu0 0.0
      %727 = vmatmul.mubr.f32.gmra.mrb[0].mxu0 %v539
      %v728 = vpop.f32.mrb[0].mxu0
      %v729 = vadd.f32 0.0, %v728
      %v730 = vpop.f32.mrb[0].mxu0
      %731 = vmatprep.mubr.f32.mxu0 0.0
      %732 = vmatmul.mubr.f32.gmra.mrb[0].mxu0 %v542
      %v733 = vpop.f32.mrb[0].mxu0
      %v734 = vadd.f32 0.0, %v733
      %v735 = vpop.f32.mrb[0].mxu0
      %736 = vmatprep.mubr.f32.mxu0 0.0
      %737 = vmatmul.mubr.f32.gmra.mrb[0].mxu0 %v545
      %v738 = vpop.f32.mrb[0].mxu0
      %v739 = vadd.f32 0.0, %v738
      %v740 = vpop.f32.mrb[0].mxu0
      %741 = vmatprep.mubr.f32.mxu0 0.0
      %742 = vmatmul.mubr.f32.gmra.mrb[0].mxu0 %v548
      %v743 = vpop.f32.mrb[0].mxu0
      %v744 = vadd.f32 0.0, %v743
      %v745 = vpop.f32.mrb[0].mxu0
      %746 = vmatprep.mubr.f32.mxu0 0.0
      %747 = vmatmul.mubr.f32.gmra.mrb[0].mxu0 %v551
      %v748 = vpop.f32.mrb[0].mxu0
      %v749 = vadd.f32 0.0, %v748
      %v750 = vpop.f32.mrb[0].mxu0
      %751 = vmatprep.mubr.f32.mxu0 0.0
      %752 = vmatmul.mubr.f32.gmra.mrb[0].mxu0 %v554
      %v753 = vpop.f32.mrb[0].mxu0
      %v754 = vadd.f32 0.0, %v753
      %v755 = vpop.f32.mrb[0].mxu0
      %756 = vmatprep.mubr.f32.mxu0 0.0
      %757 = vmatmul.mubr.f32.gmra.mrb[0].mxu0 %v557
      %v758 = vpop.f32.mrb[0].mxu0
      %v759 = vadd.f32 0.0, %v758
      %v760 = vpop.f32.mrb[0].mxu0
      %761 = vmatprep.mubr.f32.mxu0 0.0
      %762 = vmatmul.mubr.f32.gmra.mrb[0].mxu0 %v560
      %v763 = vpop.f32.mrb[0].mxu0
      %v764 = vadd.f32 0.0, %v763
      %v765 = vpop.f32.mrb[0].mxu0
      %766 = vmatprep.mubr.f32.mxu0 0.0
      %767 = vmatmul.mubr.f32.gmra.mrb[0].mxu0 %v563
      %v768 = vpop.f32.mrb[0].mxu0
      %v769 = vadd.f32 0.0, %v768
      %v770 = vpop.f32.mrb[0].mxu0
      %771 = vmatprep.mubr.f32.mxu0 0.0
      %772 = vmatmul.mubr.f32.gmra.mrb[0].mxu0 %v566
      %v773 = vpop.f32.mrb[0].mxu0
      %v774 = vadd.f32 0.0, %v773
      %v775 = vpop.f32.mrb[0].mxu0
      %776 = vmatprep.mubr.f32.mxu0 0.0
      %777 = vmatmul.mubr.f32.gmra.mrb[0].mxu0 %v569
      %v778 = vpop.f32.mrb[0].mxu0
      %v779 = vadd.f32 0.0, %v778
      %v780 = vpop.f32.mrb[0].mxu0
      %781 = vmatprep.mubr.f32.mxu0 0.0
      %782 = vmatmul.mubr.f32.gmra.mrb[0].mxu0 %v572
      %v783 = vpop.f32.mrb[0].mxu0
      %v784 = vadd.f32 0.0, %v783
      %v785 = vpop.f32.mrb[0].mxu0
      %786 = vmatprep.mubr.f32.mxu0 0.0
      %787 = vmatmul.mubr.f32.gmra.mrb[0].mxu0 %v575
      %v788 = vpop.f32.mrb[0].mxu0
      %v789 = vadd.f32 0.0, %v788
      %v790 = vpop.f32.mrb[0].mxu0
      %791 = vmatprep.mubr.f32.mxu0 0.0
      %792 = vmatmul.mubr.f32.gmra.mrb[0].mxu0 %v578
      %v793 = vpop.f32.mrb[0].mxu0
      %v794 = vadd.f32 0.0, %v793
      %v795 = vpop.f32.mrb[0].mxu0
      %796 = vmatprep.mubr.f32.mxu0 0.0
      %797 = vmatmul.mubr.f32.gmra.mrb[0].mxu0 %v581
      %v798 = vpop.f32.mrb[0].mxu0
      %v799 = vadd.f32 0.0, %v798
      %v800 = vpop.f32.mrb[0].mxu0
      %801 = vmatprep.mubr.f32.mxu0 0.0
      %802 = vmatmul.mubr.f32.gmra.mrb[0].mxu0 %v584
      %v803 = vpop.f32.mrb[0].mxu0
      %v804 = vadd.f32 0.0, %v803
      %v805 = vpop.f32.mrb[0].mxu0
      %806 = vmatprep.mubr.f32.mxu0 0.0
      %807 = vmatmul.mubr.f32.gmra.mrb[0].mxu0 %v587
      %v808 = vpop.f32.mrb[0].mxu0
      %v809 = vadd.f32 0.0, %v808
      %v810 = vpop.f32.mrb[0].mxu0
      %811 = vmatprep.mubr.f32.mxu0 0.0
      %812 = vmatmul.mubr.f32.gmra.mrb[0].mxu0 %v590
      %v813 = vpop.f32.mrb[0].mxu0
      %v814 = vadd.f32 0.0, %v813
      %v815 = vpop.f32.mrb[0].mxu0
      %816 = vmatprep.mubr.f32.mxu0 0.0
      %817 = vmatmul.mubr.f32.gmra.mrb[0].mxu0 %v593
      %v818 = vpop.f32.mrb[0].mxu0
      %v819 = vadd.f32 0.0, %v818
      %v820 = vpop.f32.mrb[0].mxu0
      %821 = vmatprep.mubr.f32.mxu0 0.0
      %822 = vmatmul.mubr.f32.gmra.mrb[0].mxu0 %v596
      %v823 = vpop.f32.mrb[0].mxu0
      %v824 = vadd.f32 0.0, %v823
      %v825 = vpop.f32.mrb[0].mxu0
      %826 = vdwg.mxu0
      %v827 = vld [vmem:[%s2] sm:$0x1]
      %v829 = vlaneseq
      %v830 = vshrl.u32 %v829, 7
      %v831 = vsub.s32 0, %v830
      %v832 = vrot.slane %v827, %v831
      %v834 = vmul.f32 %v669, %v832
      %v835 = vmul.f32 %v674, %v832
      %v836 = vmul.f32 %v679, %v832
      %v837 = vmul.f32 %v684, %v832
      %v838 = vmul.f32 %v689, %v832
      %v839 = vmul.f32 %v694, %v832
      %v840 = vmul.f32 %v699, %v832
      %v841 = vmul.f32 %v704, %v832
      %v842 = vmul.f32 %v709, %v832
      %v843 = vmul.f32 %v714, %v832
      %v844 = vmul.f32 %v719, %v832
      %v845 = vmul.f32 %v724, %v832
      %v846 = vmul.f32 %v729, %v832
      %v847 = vmul.f32 %v734, %v832
      %v848 = vmul.f32 %v739, %v832
      %v849 = vmul.f32 %v744, %v832
      %v850 = vmul.f32 %v749, %v832
      %v851 = vmul.f32 %v754, %v832
      %v852 = vmul.f32 %v759, %v832
      %v853 = vmul.f32 %v764, %v832
      %v854 = vmul.f32 %v769, %v832
      %v855 = vmul.f32 %v774, %v832
      %v856 = vmul.f32 %v779, %v832
      %v857 = vmul.f32 %v784, %v832
      %v858 = vmul.f32 %v789, %v832
      %v859 = vmul.f32 %v794, %v832
      %v860 = vmul.f32 %v799, %v832
      %v861 = vmul.f32 %v804, %v832
      %v862 = vmul.f32 %v809, %v832
      %v863 = vmul.f32 %v814, %v832
      %v864 = vmul.f32 %v819, %v832
      %v865 = vmul.f32 %v824, %v832
      %v866 = vld [vmem:[%s3] sm:$0x1]
      %v868 = vlaneseq
      %v869 = vshrl.u32 %v868, 7
      %v870 = vsub.s32 0, %v869
      %v871 = vrot.slane %v866, %v870
      %v873 = vadd.f32 %v834, %v871
      %v874 = vadd.f32 %v835, %v871
      %v875 = vadd.f32 %v836, %v871
      %v876 = vadd.f32 %v837, %v871
      %v877 = vadd.f32 %v838, %v871
      %v878 = vadd.f32 %v839, %v871
      %v879 = vadd.f32 %v840, %v871
      %v880 = vadd.f32 %v841, %v871
      %v881 = vadd.f32 %v842, %v871
      %v882 = vadd.f32 %v843, %v871
      %v883 = vadd.f32 %v844, %v871
      %v884 = vadd.f32 %v845, %v871
      %v885 = vadd.f32 %v846, %v871
      %v886 = vadd.f32 %v847, %v871
      %v887 = vadd.f32 %v848, %v871
      %v888 = vadd.f32 %v849, %v871
      %v889 = vadd.f32 %v850, %v871
      %v890 = vadd.f32 %v851, %v871
      %v891 = vadd.f32 %v852, %v871
      %v892 = vadd.f32 %v853, %v871
      %v893 = vadd.f32 %v854, %v871
      %v894 = vadd.f32 %v855, %v871
      %v895 = vadd.f32 %v856, %v871
      %v896 = vadd.f32 %v857, %v871
      %v897 = vadd.f32 %v858, %v871
      %v898 = vadd.f32 %v859, %v871
      %v899 = vadd.f32 %v860, %v871
      %v900 = vadd.f32 %v861, %v871
      %v901 = vadd.f32 %v862, %v871
      %v902 = vadd.f32 %v863, %v871
      %v903 = vadd.f32 %v864, %v871
      %v904 = vadd.f32 %v865, %v871
      %v905 = vmax.f32 %v873, 0.0
      %v906 = vmax.f32 %v874, 0.0
      %v907 = vmax.f32 %v875, 0.0
      %v908 = vmax.f32 %v876, 0.0
      %v909 = vmax.f32 %v877, 0.0
      %v910 = vmax.f32 %v878, 0.0
      %v911 = vmax.f32 %v879, 0.0
      %v912 = vmax.f32 %v880, 0.0
      %v913 = vmax.f32 %v881, 0.0
      %v914 = vmax.f32 %v882, 0.0
      %v915 = vmax.f32 %v883, 0.0
      %v916 = vmax.f32 %v884, 0.0
      %v917 = vmax.f32 %v885, 0.0
      %v918 = vmax.f32 %v886, 0.0
      %v919 = vmax.f32 %v887, 0.0
      %v920 = vmax.f32 %v888, 0.0
      %v921 = vmax.f32 %v889, 0.0
      %v922 = vmax.f32 %v890, 0.0
      %v923 = vmax.f32 %v891, 0.0
      %v924 = vmax.f32 %v892, 0.0
      %v925 = vmax.f32 %v893, 0.0
      %v926 = vmax.f32 %v894, 0.0
      %v927 = vmax.f32 %v895, 0.0
      %v928 = vmax.f32 %v896, 0.0
      %v929 = vmax.f32 %v897, 0.0
      %v930 = vmax.f32 %v898, 0.0
      %v931 = vmax.f32 %v899, 0.0
      %v932 = vmax.f32 %v900, 0.0
      %v933 = vmax.f32 %v901, 0.0
      %v934 = vmax.f32 %v902, 0.0
      %v935 = vmax.f32 %v903, 0.0
      %v936 = vmax.f32 %v904, 0.0
      %v937 = vand.u32 2147483647, %v873
      %v938 = vand.u32 2147483647, %v874
      %v939 = vand.u32 2147483647, %v875
      %v940 = vand.u32 2147483647, %v876
      %v941 = vand.u32 2147483647, %v877
      %v942 = vand.u32 2147483647, %v878
      %v943 = vand.u32 2147483647, %v879
      %v944 = vand.u32 2147483647, %v880
      %v945 = vand.u32 2147483647, %v881
      %v946 = vand.u32 2147483647, %v882
      %v947 = vand.u32 2147483647, %v883
      %v948 = vand.u32 2147483647, %v884
      %v949 = vand.u32 2147483647, %v885
      %v950 = vand.u32 2147483647, %v886
      %v951 = vand.u32 2147483647, %v887
      %v952 = vand.u32 2147483647, %v888
      %v953 = vand.u32 2147483647, %v889
      %v954 = vand.u32 2147483647, %v890
      %v955 = vand.u32 2147483647, %v891
      %v956 = vand.u32 2147483647, %v892
      %v957 = vand.u32 2147483647, %v893
      %v958 = vand.u32 2147483647, %v894
      %v959 = vand.u32 2147483647, %v895
      %v960 = vand.u32 2147483647, %v896
      %v961 = vand.u32 2147483647, %v897
      %v962 = vand.u32 2147483647, %v898
      %v963 = vand.u32 2147483647, %v899
      %v964 = vand.u32 2147483647, %v900
      %v965 = vand.u32 2147483647, %v901
      %v966 = vand.u32 2147483647, %v902
      %v967 = vand.u32 2147483647, %v903
      %v968 = vand.u32 2147483647, %v904
      %v969 = vsub.f32 0.0, %v937
      %v970 = vsub.f32 0.0, %v938
      %v971 = vsub.f32 0.0, %v939
      %v972 = vsub.f32 0.0, %v940
      %v973 = vsub.f32 0.0, %v941
      %v974 = vsub.f32 0.0, %v942
      %v975 = vsub.f32 0.0, %v943
      %v976 = vsub.f32 0.0, %v944
      %v977 = vsub.f32 0.0, %v945
      %v978 = vsub.f32 0.0, %v946
      %v979 = vsub.f32 0.0, %v947
      %v980 = vsub.f32 0.0, %v948
      %v981 = vsub.f32 0.0, %v949
      %v982 = vsub.f32 0.0, %v950
      %v983 = vsub.f32 0.0, %v951
      %v984 = vsub.f32 0.0, %v952
      %v985 = vsub.f32 0.0, %v953
      %v986 = vsub.f32 0.0, %v954
      %v987 = vsub.f32 0.0, %v955
      %v988 = vsub.f32 0.0, %v956
      %v989 = vsub.f32 0.0, %v957
      %v990 = vsub.f32 0.0, %v958
      %v991 = vsub.f32 0.0, %v959
      %v992 = vsub.f32 0.0, %v960
      %v993 = vsub.f32 0.0, %v961
      %v994 = vsub.f32 0.0, %v962
      %v995 = vsub.f32 0.0, %v963
      %v996 = vsub.f32 0.0, %v964
      %v997 = vsub.f32 0.0, %v965
      %v998 = vsub.f32 0.0, %v966
      %v999 = vsub.f32 0.0, %v967
      %v1000 = vsub.f32 0.0, %v968
      %v1001 = vmul.f32 %v969, 1.442695
      %v1002 = vpow.pop %v1001
      %v1003 = vmul.f32 %v970, 1.442695
      %v1004 = vpow.pop %v1003
      %v1005 = vmul.f32 %v971, 1.442695
      %v1006 = vpow.pop %v1005
      %v1007 = vmul.f32 %v972, 1.442695
      %v1008 = vpow.pop %v1007
      %v1009 = vmul.f32 %v973, 1.442695
      %v1010 = vpow.pop %v1009
      %v1011 = vmul.f32 %v974, 1.442695
      %v1012 = vpow.pop %v1011
      %v1013 = vmul.f32 %v975, 1.442695
      %v1014 = vpow.pop %v1013
      %v1015 = vmul.f32 %v976, 1.442695
      %v1016 = vpow.pop %v1015
      %v1017 = vmul.f32 %v977, 1.442695
      %v1018 = vpow.pop %v1017
      %v1019 = vmul.f32 %v978, 1.442695
      %v1020 = vpow.pop %v1019
      %v1021 = vmul.f32 %v979, 1.442695
      %v1022 = vpow.pop %v1021
      %v1023 = vmul.f32 %v980, 1.442695
      %v1024 = vpow.pop %v1023
      %v1025 = vmul.f32 %v981, 1.442695
      %v1026 = vpow.pop %v1025
      %v1027 = vmul.f32 %v982, 1.442695
      %v1028 = vpow.pop %v1027
      %v1029 = vmul.f32 %v983, 1.442695
      %v1030 = vpow.pop %v1029
      %v1031 = vmul.f32 %v984, 1.442695
      %v1032 = vpow.pop %v1031
      %v1033 = vmul.f32 %v985, 1.442695
      %v1034 = vpow.pop %v1033
      %v1035 = vmul.f32 %v986, 1.442695
      %v1036 = vpow.pop %v1035
      %v1037 = vmul.f32 %v987, 1.442695
      %v1038 = vpow.pop %v1037
      %v1039 = vmul.f32 %v988, 1.442695
      %v1040 = vpow.pop %v1039
      %v1041 = vmul.f32 %v989, 1.442695
      %v1042 = vpow.pop %v1041
      %v1043 = vmul.f32 %v990, 1.442695
      %v1044 = vpow.pop %v1043
      %v1045 = vmul.f32 %v991, 1.442695
      %v1046 = vpow.pop %v1045
      %v1047 = vmul.f32 %v992, 1.442695
      %v1048 = vpow.pop %v1047
      %v1049 = vmul.f32 %v993, 1.442695
      %v1050 = vpow.pop %v1049
      %v1051 = vmul.f32 %v994, 1.442695
      %v1052 = vpow.pop %v1051
      %v1053 = vmul.f32 %v995, 1.442695
      %v1054 = vpow.pop %v1053
      %v1055 = vmul.f32 %v996, 1.442695
      %v1056 = vpow.pop %v1055
      %v1057 = vmul.f32 %v997, 1.442695
      %v1058 = vpow.pop %v1057
      %v1059 = vmul.f32 %v998, 1.442695
      %v1060 = vpow.pop %v1059
      %v1061 = vmul.f32 %v999, 1.442695
      %v1062 = vpow.pop %v1061
      %v1063 = vmul.f32 %v1000, 1.442695
      %v1064 = vpow.pop %v1063
      %v1065 = vadd.f32 %v1002, 1.0
      %v1066 = vadd.f32 %v1004, 1.0
      %v1067 = vadd.f32 %v1006, 1.0
      %v1068 = vadd.f32 %v1008, 1.0
      %v1069 = vadd.f32 %v1010, 1.0
      %v1070 = vadd.f32 %v1012, 1.0
      %v1071 = vadd.f32 %v1014, 1.0
      %v1072 = vadd.f32 %v1016, 1.0
      %v1073 = vadd.f32 %v1018, 1.0
      %v1074 = vadd.f32 %v1020, 1.0
      %v1075 = vadd.f32 %v1022, 1.0
      %v1076 = vadd.f32 %v1024, 1.0
      %v1077 = vadd.f32 %v1026, 1.0
      %v1078 = vadd.f32 %v1028, 1.0
      %v1079 = vadd.f32 %v1030, 1.0
      %v1080 = vadd.f32 %v1032, 1.0
      %v1081 = vadd.f32 %v1034, 1.0
      %v1082 = vadd.f32 %v1036, 1.0
      %v1083 = vadd.f32 %v1038, 1.0
      %v1084 = vadd.f32 %v1040, 1.0
      %v1085 = vadd.f32 %v1042, 1.0
      %v1086 = vadd.f32 %v1044, 1.0
      %v1087 = vadd.f32 %v1046, 1.0
      %v1088 = vadd.f32 %v1048, 1.0
      %v1089 = vadd.f32 %v1050, 1.0
      %v1090 = vadd.f32 %v1052, 1.0
      %v1091 = vadd.f32 %v1054, 1.0
      %v1092 = vadd.f32 %v1056, 1.0
      %v1093 = vadd.f32 %v1058, 1.0
      %v1094 = vadd.f32 %v1060, 1.0
      %v1095 = vadd.f32 %v1062, 1.0
      %v1096 = vadd.f32 %v1064, 1.0
      %v1097 = vlog2.pop %v1065
      %v1098 = vmul.f32 %v1097, 0.6931472
      %v1099 = vlog2.pop %v1066
      %v1100 = vmul.f32 %v1099, 0.6931472
      %v1101 = vlog2.pop %v1067
      %v1102 = vmul.f32 %v1101, 0.6931472
      %v1103 = vlog2.pop %v1068
      %v1104 = vmul.f32 %v1103, 0.6931472
      %v1105 = vlog2.pop %v1069
      %v1106 = vmul.f32 %v1105, 0.6931472
      %v1107 = vlog2.pop %v1070
      %v1108 = vmul.f32 %v1107, 0.6931472
      %v1109 = vlog2.pop %v1071
      %v1110 = vmul.f32 %v1109, 0.6931472
      %v1111 = vlog2.pop %v1072
      %v1112 = vmul.f32 %v1111, 0.6931472
      %v1113 = vlog2.pop %v1073
      %v1114 = vmul.f32 %v1113, 0.6931472
      %v1115 = vlog2.pop %v1074
      %v1116 = vmul.f32 %v1115, 0.6931472
      %v1117 = vlog2.pop %v1075
      %v1118 = vmul.f32 %v1117, 0.6931472
      %v1119 = vlog2.pop %v1076
      %v1120 = vmul.f32 %v1119, 0.6931472
      %v1121 = vlog2.pop %v1077
      %v1122 = vmul.f32 %v1121, 0.6931472
      %v1123 = vlog2.pop %v1078
      %v1124 = vmul.f32 %v1123, 0.6931472
      %v1125 = vlog2.pop %v1079
      %v1126 = vmul.f32 %v1125, 0.6931472
      %v1127 = vlog2.pop %v1080
      %v1128 = vmul.f32 %v1127, 0.6931472
      %v1129 = vlog2.pop %v1081
      %v1130 = vmul.f32 %v1129, 0.6931472
      %v1131 = vlog2.pop %v1082
      %v1132 = vmul.f32 %v1131, 0.6931472
      %v1133 = vlog2.pop %v1083
      %v1134 = vmul.f32 %v1133, 0.6931472
      %v1135 = vlog2.pop %v1084
      %v1136 = vmul.f32 %v1135, 0.6931472
      %v1137 = vlog2.pop %v1085
      %v1138 = vmul.f32 %v1137, 0.6931472
      %v1139 = vlog2.pop %v1086
      %v1140 = vmul.f32 %v1139, 0.6931472
      %v1141 = vlog2.pop %v1087
      %v1142 = vmul.f32 %v1141, 0.6931472
      %v1143 = vlog2.pop %v1088
      %v1144 = vmul.f32 %v1143, 0.6931472
      %v1145 = vlog2.pop %v1089
      %v1146 = vmul.f32 %v1145, 0.6931472
      %v1147 = vlog2.pop %v1090
      %v1148 = vmul.f32 %v1147, 0.6931472
      %v1149 = vlog2.pop %v1091
      %v1150 = vmul.f32 %v1149, 0.6931472
      %v1151 = vlog2.pop %v1092
      %v1152 = vmul.f32 %v1151, 0.6931472
      %v1153 = vlog2.pop %v1093
      %v1154 = vmul.f32 %v1153, 0.6931472
      %v1155 = vlog2.pop %v1094
      %v1156 = vmul.f32 %v1155, 0.6931472
      %v1157 = vlog2.pop %v1095
      %v1158 = vmul.f32 %v1157, 0.6931472
      %v1159 = vlog2.pop %v1096
      %v1160 = vmul.f32 %v1159, 0.6931472
      %v1161 = vadd.f32 %v905, %v1098
      %v1162 = vadd.f32 %v906, %v1100
      %v1163 = vadd.f32 %v907, %v1102
      %v1164 = vadd.f32 %v908, %v1104
      %v1165 = vadd.f32 %v909, %v1106
      %v1166 = vadd.f32 %v910, %v1108
      %v1167 = vadd.f32 %v911, %v1110
      %v1168 = vadd.f32 %v912, %v1112
      %v1169 = vadd.f32 %v913, %v1114
      %v1170 = vadd.f32 %v914, %v1116
      %v1171 = vadd.f32 %v915, %v1118
      %v1172 = vadd.f32 %v916, %v1120
      %v1173 = vadd.f32 %v917, %v1122
      %v1174 = vadd.f32 %v918, %v1124
      %v1175 = vadd.f32 %v919, %v1126
      %v1176 = vadd.f32 %v920, %v1128
      %v1177 = vadd.f32 %v921, %v1130
      %v1178 = vadd.f32 %v922, %v1132
      %v1179 = vadd.f32 %v923, %v1134
      %v1180 = vadd.f32 %v924, %v1136
      %v1181 = vadd.f32 %v925, %v1138
      %v1182 = vadd.f32 %v926, %v1140
      %v1183 = vadd.f32 %v927, %v1142
      %v1184 = vadd.f32 %v928, %v1144
      %v1185 = vadd.f32 %v929, %v1146
      %v1186 = vadd.f32 %v930, %v1148
      %v1187 = vadd.f32 %v931, %v1150
      %v1188 = vadd.f32 %v932, %v1152
      %v1189 = vadd.f32 %v933, %v1154
      %v1190 = vadd.f32 %v934, %v1156
      %v1191 = vadd.f32 %v935, %v1158
      %v1192 = vadd.f32 %v936, %v1160
      %v1193 = vtanh.pop %v1161
      %v1194 = vtanh.pop %v1162
      %v1195 = vtanh.pop %v1163
      %v1196 = vtanh.pop %v1164
      %v1197 = vtanh.pop %v1165
      %v1198 = vtanh.pop %v1166
      %v1199 = vtanh.pop %v1167
      %v1200 = vtanh.pop %v1168
      %v1201 = vtanh.pop %v1169
      %v1202 = vtanh.pop %v1170
      %v1203 = vtanh.pop %v1171
      %v1204 = vtanh.pop %v1172
      %v1205 = vtanh.pop %v1173
      %v1206 = vtanh.pop %v1174
      %v1207 = vtanh.pop %v1175
      %v1208 = vtanh.pop %v1176
      %v1209 = vtanh.pop %v1177
      %v1210 = vtanh.pop %v1178
      %v1211 = vtanh.pop %v1179
      %v1212 = vtanh.pop %v1180
      %v1213 = vtanh.pop %v1181
      %v1214 = vtanh.pop %v1182
      %v1215 = vtanh.pop %v1183
      %v1216 = vtanh.pop %v1184
      %v1217 = vtanh.pop %v1185
      %v1218 = vtanh.pop %v1186
      %v1219 = vtanh.pop %v1187
      %v1220 = vtanh.pop %v1188
      %v1221 = vtanh.pop %v1189
      %v1222 = vtanh.pop %v1190
      %v1223 = vtanh.pop %v1191
      %v1224 = vtanh.pop %v1192
      %v1225 = vmul.f32 %v873, %v1193
      %v1226 = vmul.f32 %v874, %v1194
      %v1227 = vmul.f32 %v875, %v1195
      %v1228 = vmul.f32 %v876, %v1196
      %v1229 = vmul.f32 %v877, %v1197
      %v1230 = vmul.f32 %v878, %v1198
      %v1231 = vmul.f32 %v879, %v1199
      %v1232 = vmul.f32 %v880, %v1200
      %v1233 = vmul.f32 %v881, %v1201
      %v1234 = vmul.f32 %v882, %v1202
      %v1235 = vmul.f32 %v883, %v1203
      %v1236 = vmul.f32 %v884, %v1204
      %v1237 = vmul.f32 %v885, %v1205
      %v1238 = vmul.f32 %v886, %v1206
      %v1239 = vmul.f32 %v887, %v1207
      %v1240 = vmul.f32 %v888, %v1208
      %v1241 = vmul.f32 %v889, %v1209
      %v1242 = vmul.f32 %v890, %v1210
      %v1243 = vmul.f32 %v891, %v1211
      %v1244 = vmul.f32 %v892, %v1212
      %v1245 = vmul.f32 %v893, %v1213
      %v1246 = vmul.f32 %v894, %v1214
      %v1247 = vmul.f32 %v895, %v1215
      %v1248 = vmul.f32 %v896, %v1216
      %v1249 = vmul.f32 %v897, %v1217
      %v1250 = vmul.f32 %v898, %v1218
      %v1251 = vmul.f32 %v899, %v1219
      %v1252 = vmul.f32 %v900, %v1220
      %v1253 = vmul.f32 %v901, %v1221
      %v1254 = vmul.f32 %v902, %v1222
      %v1255 = vmul.f32 %v903, %v1223
      %v1256 = vmul.f32 %v904, %v1224
      %vm1257 = vcmask 130048
      %1258 = vst.msk [vmem:[#allocation2] sm:$0xff] %vm1257, 0.0
      %1259 = vst.msk [vmem:[#allocation2 + $0x8] sm:$0xff] %vm1257, 0.0
      %vm1260 = vcmask 123904
      %1261 = vst.msk [vmem:[#allocation2 + $0x10] sm:$0x3] %vm1260, 0.0
      %1262 = vst.msk [vmem:[#allocation2 + $0x18] sm:$0xff] %vm1257, 0.0
      %1263 = vst.msk [vmem:[#allocation2 + $0x20] sm:$0xff] %vm1257, 0.0
      %1264 = vst.msk [vmem:[#allocation2 + $0x28] sm:$0x3] %vm1260, 0.0
      %1265 = vst.msk [vmem:[#allocation2 + $0x30] sm:$0xff] %vm1257, 0.0
      %1266 = vst.msk [vmem:[#allocation2 + $0x38] sm:$0xff] %vm1257, 0.0
      %1267 = vst.msk [vmem:[#allocation2 + $0x40] sm:$0x3] %vm1260, 0.0
      %1268 = vst.msk [vmem:[#allocation2 + $0x48] sm:$0xff] %vm1257, 0.0
      %1269 = vst.msk [vmem:[#allocation2 + $0x50] sm:$0xff] %vm1257, 0.0
      %1270 = vst.msk [vmem:[#allocation2 + $0x58] sm:$0x3] %vm1260, 0.0
      %1271 = vst.msk [vmem:[#allocation2 + $0x60] sm:$0xff] %vm1257, 0.0
      %1272 = vst.msk [vmem:[#allocation2 + $0x68] sm:$0xff] %vm1257, 0.0
      %1273 = vst.msk [vmem:[#allocation2 + $0x70] sm:$0x3] %vm1260, 0.0
      %1274 = vst.msk [vmem:[#allocation2 + $0x78] sm:$0xff] %vm1257, 0.0
      %1275 = vst.msk [vmem:[#allocation2 + $0x80] sm:$0xff] %vm1257, 0.0
      %1276 = vst.msk [vmem:[#allocation2 + $0x88] sm:$0x3] %vm1260, 0.0
      %1277 = vst.msk [vmem:[#allocation2 + $0x90] sm:$0xff] %vm1257, 0.0
      %1278 = vst.msk [vmem:[#allocation2 + $0x98] sm:$0xff] %vm1257, 0.0
      %1279 = vst.msk [vmem:[#allocation2 + $0xa0] sm:$0x3] %vm1260, 0.0
      %1280 = vst.msk [vmem:[#allocation2 + $0xa8] sm:$0xff] %vm1257, 0.0
      %1281 = vst.msk [vmem:[#allocation2 + $0xb0] sm:$0xff] %vm1257, 0.0
      %1282 = vst.msk [vmem:[#allocation2 + $0xb8] sm:$0x3] %vm1260, 0.0
      %1283 = vst.msk [vmem:[#allocation2 + $0xc0] sm:$0xff] %vm1257, 0.0
      %1284 = vst.msk [vmem:[#allocation2 + $0xc8] sm:$0xff] %vm1257, 0.0
      %1285 = vst.msk [vmem:[#allocation2 + $0xd0] sm:$0x3] %vm1260, 0.0
      %1286 = vst.msk [vmem:[#allocation2 + $0xd8] sm:$0xff] %vm1257, 0.0
      %1287 = vst.msk [vmem:[#allocation2 + $0xe0] sm:$0xff] %vm1257, 0.0
      %1288 = vst.msk [vmem:[#allocation2 + $0xe8] sm:$0x3] %vm1260, 0.0
      %1289 = vst.msk [vmem:[#allocation2 + $0xf0] sm:$0xff] %vm1257, 0.0
      %1290 = vst.msk [vmem:[#allocation2 + $0xf8] sm:$0xff] %vm1257, 0.0
      %1291 = vst.msk [vmem:[#allocation2 + $0x100] sm:$0x3] %vm1260, 0.0
      %1292 = vst.msk [vmem:[#allocation2 + $0x108] sm:$0xff] %vm1257, 0.0
      %1293 = vst.msk [vmem:[#allocation2 + $0x110] sm:$0xff] %vm1257, 0.0
      %1294 = vst.msk [vmem:[#allocation2 + $0x118] sm:$0x3] %vm1260, 0.0
      %1295 = vst.msk [vmem:[#allocation2 + $0x120] sm:$0xff] %vm1257, 0.0
      %1296 = vst.msk [vmem:[#allocation2 + $0x128] sm:$0xff] %vm1257, 0.0
      %1297 = vst.msk [vmem:[#allocation2 + $0x130] sm:$0x3] %vm1260, 0.0
      %1298 = vst.msk [vmem:[#allocation2 + $0x138] sm:$0xff] %vm1257, 0.0
      %1299 = vst.msk [vmem:[#allocation2 + $0x140] sm:$0xff] %vm1257, 0.0
      %1300 = vst.msk [vmem:[#allocation2 + $0x148] sm:$0x3] %vm1260, 0.0
      %1301 = vst.msk [vmem:[#allocation2 + $0x150] sm:$0xff] %vm1257, 0.0
      %1302 = vst.msk [vmem:[#allocation2 + $0x158] sm:$0xff] %vm1257, 0.0
      %1303 = vst.msk [vmem:[#allocation2 + $0x160] sm:$0x3] %vm1260, 0.0
      %1304 = vst.msk [vmem:[#allocation2 + $0x168] sm:$0xff] %vm1257, 0.0
      %1305 = vst.msk [vmem:[#allocation2 + $0x170] sm:$0xff] %vm1257, 0.0
      %1306 = vst.msk [vmem:[#allocation2 + $0x178] sm:$0x3] %vm1260, 0.0
      %1307 = vst.msk [vmem:[#allocation2 + $0x180] sm:$0xff] %vm1257, 0.0
      %1308 = vst.msk [vmem:[#allocation2 + $0x188] sm:$0xff] %vm1257, 0.0
      %1309 = vst.msk [vmem:[#allocation2 + $0x190] sm:$0x3] %vm1260, 0.0
      %1310 = vst.msk [vmem:[#allocation2 + $0x198] sm:$0xff] %vm1257, 0.0
      %1311 = vst.msk [vmem:[#allocation2 + $0x1a0] sm:$0xff] %vm1257, 0.0
      %1312 = vst.msk [vmem:[#allocation2 + $0x1a8] sm:$0x3] %vm1260, 0.0
      %s1313 = scalar_lea.vmem [#allocation2], 24
      %1314 = vst.msk [vmem:[%s1313 + $0x1] sm:$0xff] %vm1257, %v1225
      %1315 = vst.msk [vmem:[%s1313 + $0x9] sm:$0xff] %vm1257, %v1226
      %1316 = vst.msk [vmem:[%s1313 + $0x19] sm:$0xff] %vm1257, %v1227
      %1317 = vst.msk [vmem:[%s1313 + $0x21] sm:$0xff] %vm1257, %v1228
      %1318 = vst.msk [vmem:[%s1313 + $0x31] sm:$0xff] %vm1257, %v1229
      %1319 = vst.msk [vmem:[%s1313 + $0x39] sm:$0xff] %vm1257, %v1230
      %1320 = vst.msk [vmem:[%s1313 + $0x49] sm:$0xff] %vm1257, %v1231
      %1321 = vst.msk [vmem:[%s1313 + $0x51] sm:$0xff] %vm1257, %v1232
      %1322 = vst.msk [vmem:[%s1313 + $0x61] sm:$0xff] %vm1257, %v1233
      %1323 = vst.msk [vmem:[%s1313 + $0x69] sm:$0xff] %vm1257, %v1234
      %1324 = vst.msk [vmem:[%s1313 + $0x79] sm:$0xff] %vm1257, %v1235
      %1325 = vst.msk [vmem:[%s1313 + $0x81] sm:$0xff] %vm1257, %v1236
      %1326 = vst.msk [vmem:[%s1313 + $0x91] sm:$0xff] %vm1257, %v1237
      %1327 = vst.msk [vmem:[%s1313 + $0x99] sm:$0xff] %vm1257, %v1238
      %1328 = vst.msk [vmem:[%s1313 + $0xa9] sm:$0xff] %vm1257, %v1239
      %1329 = vst.msk [vmem:[%s1313 + $0xb1] sm:$0xff] %vm1257, %v1240
      %1330 = vst.msk [vmem:[%s1313 + $0xc1] sm:$0xff] %vm1257, %v1241
      %1331 = vst.msk [vmem:[%s1313 + $0xc9] sm:$0xff] %vm1257, %v1242
      %1332 = vst.msk [vmem:[%s1313 + $0xd9] sm:$0xff] %vm1257, %v1243
      %1333 = vst.msk [vmem:[%s1313 + $0xe1] sm:$0xff] %vm1257, %v1244
      %1334 = vst.msk [vmem:[%s1313 + $0xf1] sm:$0xff] %vm1257, %v1245
      %1335 = vst.msk [vmem:[%s1313 + $0xf9] sm:$0xff] %vm1257, %v1246
      %1336 = vst.msk [vmem:[%s1313 + $0x109] sm:$0xff] %vm1257, %v1247
      %1337 = vst.msk [vmem:[%s1313 + $0x111] sm:$0xff] %vm1257, %v1248
      %1338 = vst.msk [vmem:[%s1313 + $0x121] sm:$0xff] %vm1257, %v1249
      %1339 = vst.msk [vmem:[%s1313 + $0x129] sm:$0xff] %vm1257, %v1250
      %1340 = vst.msk [vmem:[%s1313 + $0x139] sm:$0xff] %vm1257, %v1251
      %1341 = vst.msk [vmem:[%s1313 + $0x141] sm:$0xff] %vm1257, %v1252
      %1342 = vst.msk [vmem:[%s1313 + $0x151] sm:$0xff] %vm1257, %v1253
      %1343 = vst.msk [vmem:[%s1313 + $0x159] sm:$0xff] %vm1257, %v1254
      %1344 = vst.msk [vmem:[%s1313 + $0x169] sm:$0xff] %vm1257, %v1255
      %1345 = vst.msk [vmem:[%s1313 + $0x171] sm:$0xff] %vm1257, %v1256
      %v1346 = vld [vmem:[#allocation2] sm:$0xff]
      %v1347 = vld [vmem:[#allocation2 + $0x8] sm:$0xff]
      %v1348 = vld [vmem:[#allocation2 + $0x10] sm:$0x3]
      %v1349 = vld [vmem:[#allocation2 + $0x18] sm:$0xff]
      %v1350 = vld [vmem:[#allocation2 + $0x20] sm:$0xff]
      %v1351 = vld [vmem:[#allocation2 + $0x28] sm:$0x3]
      %v1352 = vld [vmem:[#allocation2 + $0x30] sm:$0xff]
      %v1353 = vld [vmem:[#allocation2 + $0x38] sm:$0xff]
      %v1354 = vld [vmem:[#allocation2 + $0x40] sm:$0x3]
      %v1355 = vld [vmem:[#allocation2 + $0x48] sm:$0xff]
      %v1356 = vld [vmem:[#allocation2 + $0x50] sm:$0xff]
      %v1357 = vld [vmem:[#allocation2 + $0x58] sm:$0x3]
      %v1358 = vld [vmem:[#allocation2 + $0x60] sm:$0xff]
      %v1359 = vld [vmem:[#allocation2 + $0x68] sm:$0xff]
      %v1360 = vld [vmem:[#allocation2 + $0x70] sm:$0x3]
      %v1361 = vld [vmem:[#allocation2 + $0x78] sm:$0xff]
      %v1362 = vld [vmem:[#allocation2 + $0x80] sm:$0xff]
      %v1363 = vld [vmem:[#allocation2 + $0x88] sm:$0x3]
      %v1364 = vld [vmem:[#allocation2 + $0x90] sm:$0xff]
      %v1365 = vld [vmem:[#allocation2 + $0x98] sm:$0xff]
      %v1366 = vld [vmem:[#allocation2 + $0xa0] sm:$0x3]
      %v1367 = vld [vmem:[#allocation2 + $0xa8] sm:$0xff]
      %v1368 = vld [vmem:[#allocation2 + $0xb0] sm:$0xff]
      %v1369 = vld [vmem:[#allocation2 + $0xb8] sm:$0x3]
      %v1370 = vld [vmem:[#allocation2 + $0xc0] sm:$0xff]
      %v1371 = vld [vmem:[#allocation2 + $0xc8] sm:$0xff]
      %v1372 = vld [vmem:[#allocation2 + $0xd0] sm:$0x3]
      %v1373 = vld [vmem:[#allocation2 + $0xd8] sm:$0xff]
      %v1374 = vld [vmem:[#allocation2 + $0xe0] sm:$0xff]
      %v1375 = vld [vmem:[#allocation2 + $0xe8] sm:$0x3]
      %v1376 = vld [vmem:[#allocation2 + $0xf0] sm:$0xff]
      %v1377 = vld [vmem:[#allocation2 + $0xf8] sm:$0xff]
      %v1378 = vld [vmem:[#allocation2 + $0x100] sm:$0x3]
      %v1379 = vld [vmem:[#allocation2 + $0x108] sm:$0xff]
      %v1380 = vld [vmem:[#allocation2 + $0x110] sm:$0xff]
      %v1381 = vld [vmem:[#allocation2 + $0x118] sm:$0x3]
      %v1382 = vld [vmem:[#allocation2 + $0x120] sm:$0xff]
      %v1383 = vld [vmem:[#allocation2 + $0x128] sm:$0xff]
      %v1384 = vld [vmem:[#allocation2 + $0x130] sm:$0x3]
      %v1385 = vld [vmem:[#allocation2 + $0x138] sm:$0xff]
      %v1386 = vld [vmem:[#allocation2 + $0x140] sm:$0xff]
      %v1387 = vld [vmem:[#allocation2 + $0x148] sm:$0x3]
      %v1388 = vld [vmem:[#allocation2 + $0x150] sm:$0xff]
      %v1389 = vld [vmem:[#allocation2 + $0x158] sm:$0xff]
      %v1390 = vld [vmem:[#allocation2 + $0x160] sm:$0x3]
      %v1391 = vld [vmem:[#allocation2 + $0x168] sm:$0xff]
      %v1392 = vld [vmem:[#allocation2 + $0x170] sm:$0xff]
      %v1393 = vld [vmem:[#allocation2 + $0x178] sm:$0x3]
      %v1394 = vld [vmem:[#allocation2 + $0x180] sm:$0xff]
      %v1395 = vld [vmem:[#allocation2 + $0x188] sm:$0xff]
      %v1396 = vld [vmem:[#allocation2 + $0x190] sm:$0x3]
      %v1397 = vld [vmem:[#allocation2 + $0x198] sm:$0xff]
      %v1398 = vld [vmem:[#allocation2 + $0x1a0] sm:$0xff]
      %v1399 = vld [vmem:[#allocation2 + $0x1a8] sm:$0x3]
      %v1400 = vld [vmem:[%s4] sm:$0xff]
      %v1401 = vld [vmem:[%s4 + $0x8] sm:$0x1]
      %v1402 = vlaneseq
      %v1403 = vshrl.u32 %v1402, 7
      %v1404 = vsub.s32 0, %v1403
      %v1405 = vrot.slane %v1400, %v1404
      %v1406 = vmul.f32 %v1346, %v1405
      %v1407 = vmul.f32 %v1347, %v1405
      %v1408 = vmul.f32 %v1349, %v1405
      %v1409 = vmul.f32 %v1350, %v1405
      %v1410 = vmul.f32 %v1352, %v1405
      %v1411 = vmul.f32 %v1353, %v1405
      %v1412 = vmul.f32 %v1355, %v1405
      %v1413 = vmul.f32 %v1356, %v1405
      %v1414 = vmul.f32 %v1358, %v1405
      %v1415 = vmul.f32 %v1359, %v1405
      %v1416 = vmul.f32 %v1361, %v1405
      %v1417 = vmul.f32 %v1362, %v1405
      %v1418 = vmul.f32 %v1364, %v1405
      %v1419 = vmul.f32 %v1365, %v1405
      %v1420 = vmul.f32 %v1367, %v1405
      %v1421 = vmul.f32 %v1368, %v1405
      %v1422 = vmul.f32 %v1370, %v1405
      %v1423 = vmul.f32 %v1371, %v1405
      %v1424 = vmul.f32 %v1373, %v1405
      %v1425 = vmul.f32 %v1374, %v1405
      %v1426 = vmul.f32 %v1376, %v1405
      %v1427 = vmul.f32 %v1377, %v1405
      %v1428 = vmul.f32 %v1379, %v1405
      %v1429 = vmul.f32 %v1380, %v1405
      %v1430 = vmul.f32 %v1382, %v1405
      %v1431 = vmul.f32 %v1383, %v1405
      %v1432 = vmul.f32 %v1385, %v1405
      %v1433 = vmul.f32 %v1386, %v1405
      %v1434 = vmul.f32 %v1388, %v1405
      %v1435 = vmul.f32 %v1389, %v1405
      %v1436 = vmul.f32 %v1391, %v1405
      %v1437 = vmul.f32 %v1392, %v1405
      %v1438 = vadd.f32 %v1406, 0.0
      %v1439 = vadd.f32 %v1407, 0.0
      %v1440 = vadd.f32 %v1408, 0.0
      %v1441 = vadd.f32 %v1409, 0.0
      %v1442 = vadd.f32 %v1410, 0.0
      %v1443 = vadd.f32 %v1411, 0.0
      %v1444 = vadd.f32 %v1412, 0.0
      %v1445 = vadd.f32 %v1413, 0.0
      %v1446 = vadd.f32 %v1414, 0.0
      %v1447 = vadd.f32 %v1415, 0.0
      %v1448 = vadd.f32 %v1416, 0.0
      %v1449 = vadd.f32 %v1417, 0.0
      %v1450 = vadd.f32 %v1418, 0.0
      %v1451 = vadd.f32 %v1419, 0.0
      %v1452 = vadd.f32 %v1420, 0.0
      %v1453 = vadd.f32 %v1421, 0.0
      %v1454 = vadd.f32 %v1422, 0.0
      %v1455 = vadd.f32 %v1423, 0.0
      %v1456 = vadd.f32 %v1424, 0.0
      %v1457 = vadd.f32 %v1425, 0.0
      %v1458 = vadd.f32 %v1426, 0.0
      %v1459 = vadd.f32 %v1427, 0.0
      %v1460 = vadd.f32 %v1428, 0.0
      %v1461 = vadd.f32 %v1429, 0.0
      %v1462 = vadd.f32 %v1430, 0.0
      %v1463 = vadd.f32 %v1431, 0.0
      %v1464 = vadd.f32 %v1432, 0.0
      %v1465 = vadd.f32 %v1433, 0.0
      %v1466 = vadd.f32 %v1434, 0.0
      %v1467 = vadd.f32 %v1435, 0.0
      %v1468 = vadd.f32 %v1436, 0.0
      %v1469 = vadd.f32 %v1437, 0.0
      %v1470 = vlaneseq
      %v1471 = vshrl.u32 %v1470, 7
      %v1472 = vsub.s32 1, %v1471
      %v1473 = vrot.slane %v1400, %v1472
      %v1474 = vmul.f32 %v1346, %v1473
      %v1475 = vmul.f32 %v1347, %v1473
      %v1476 = vmul.f32 %v1348, %v1473
      %v1477 = vmul.f32 %v1349, %v1473
      %v1478 = vmul.f32 %v1350, %v1473
      %v1479 = vmul.f32 %v1351, %v1473
      %v1480 = vmul.f32 %v1352, %v1473
      %v1481 = vmul.f32 %v1353, %v1473
      %v1482 = vmul.f32 %v1354, %v1473
      %v1483 = vmul.f32 %v1355, %v1473
      %v1484 = vmul.f32 %v1356, %v1473
      %v1485 = vmul.f32 %v1357, %v1473
      %v1486 = vmul.f32 %v1358, %v1473
      %v1487 = vmul.f32 %v1359, %v1473
      %v1488 = vmul.f32 %v1360, %v1473
      %v1489 = vmul.f32 %v1361, %v1473
      %v1490 = vmul.f32 %v1362, %v1473
      %v1491 = vmul.f32 %v1363, %v1473
      %v1492 = vmul.f32 %v1364, %v1473
      %v1493 = vmul.f32 %v1365, %v1473
      %v1494 = vmul.f32 %v1366, %v1473
      %v1495 = vmul.f32 %v1367, %v1473
      %v1496 = vmul.f32 %v1368, %v1473
      %v1497 = vmul.f32 %v1369, %v1473
      %v1498 = vmul.f32 %v1370, %v1473
      %v1499 = vmul.f32 %v1371, %v1473
      %v1500 = vmul.f32 %v1372, %v1473
      %v1501 = vmul.f32 %v1373, %v1473
      %v1502 = vmul.f32 %v1374, %v1473
      %v1503 = vmul.f32 %v1375, %v1473
      %v1504 = vmul.f32 %v1376, %v1473
      %v1505 = vmul.f32 %v1377, %v1473
      %v1506 = vmul.f32 %v1378, %v1473
      %v1507 = vmul.f32 %v1379, %v1473
      %v1508 = vmul.f32 %v1380, %v1473
      %v1509 = vmul.f32 %v1381, %v1473
      %v1510 = vmul.f32 %v1382, %v1473
      %v1511 = vmul.f32 %v1383, %v1473
      %v1512 = vmul.f32 %v1384, %v1473
      %v1513 = vmul.f32 %v1385, %v1473
      %v1514 = vmul.f32 %v1386, %v1473
      %v1515 = vmul.f32 %v1387, %v1473
      %v1516 = vmul.f32 %v1388, %v1473
      %v1517 = vmul.f32 %v1389, %v1473
      %v1518 = vmul.f32 %v1390, %v1473
      %v1519 = vmul.f32 %v1391, %v1473
      %v1520 = vmul.f32 %v1392, %v1473
      %v1521 = vmul.f32 %v1393, %v1473
      %vm1570 = vcmask 1046528
      %v1571 = vrot.slane %v1474, 1
      %v1572 = vrot.slane %v1475, 1
      %v1573 = vsel %vm1570, %v1571, %v1572
      %v1574 = vrot.slane %v1476, 1
      %v1575 = vsel %vm1570, %v1572, %v1574
      %v1576 = vrot.slane %v1477, 1
      %v1577 = vrot.slane %v1478, 1
      %v1578 = vsel %vm1570, %v1576, %v1577
      %v1579 = vrot.slane %v1479, 1
      %v1580 = vsel %vm1570, %v1577, %v1579
      %v1581 = vrot.slane %v1480, 1
      %v1582 = vrot.slane %v1481, 1
      %v1583 = vsel %vm1570, %v1581, %v1582
      %v1584 = vrot.slane %v1482, 1
      %v1585 = vsel %vm1570, %v1582, %v1584
      %v1586 = vrot.slane %v1483, 1
      %v1587 = vrot.slane %v1484, 1
      %v1588 = vsel %vm1570, %v1586, %v1587
      %v1589 = vrot.slane %v1485, 1
      %v1590 = vsel %vm1570, %v1587, %v1589
      %v1591 = vrot.slane %v1486, 1
      %v1592 = vrot.slane %v1487, 1
      %v1593 = vsel %vm1570, %v1591, %v1592
      %v1594 = vrot.slane %v1488, 1
      %v1595 = vsel %vm1570, %v1592, %v1594
      %v1596 = vrot.slane %v1489, 1
      %v1597 = vrot.slane %v1490, 1
      %v1598 = vsel %vm1570, %v1596, %v1597
      %v1599 = vrot.slane %v1491, 1
      %v1600 = vsel %vm1570, %v1597, %v1599
      %v1601 = vrot.slane %v1492, 1
      %v1602 = vrot.slane %v1493, 1
      %v1603 = vsel %vm1570, %v1601, %v1602
      %v1604 = vrot.slane %v1494, 1
      %v1605 = vsel %vm1570, %v1602, %v1604
      %v1606 = vrot.slane %v1495, 1
      %v1607 = vrot.slane %v1496, 1
      %v1608 = vsel %vm1570, %v1606, %v1607
      %v1609 = vrot.slane %v1497, 1
      %v1610 = vsel %vm1570, %v1607, %v1609
      %v1611 = vrot.slane %v1498, 1
      %v1612 = vrot.slane %v1499, 1
      %v1613 = vsel %vm1570, %v1611, %v1612
      %v1614 = vrot.slane %v1500, 1
      %v1615 = vsel %vm1570, %v1612, %v1614
      %v1616 = vrot.slane %v1501, 1
      %v1617 = vrot.slane %v1502, 1
      %v1618 = vsel %vm1570, %v1616, %v1617
      %v1619 = vrot.slane %v1503, 1
      %v1620 = vsel %vm1570, %v1617, %v1619
      %v1621 = vrot.slane %v1504, 1
      %v1622 = vrot.slane %v1505, 1
      %v1623 = vsel %vm1570, %v1621, %v1622
      %v1624 = vrot.slane %v1506, 1
      %v1625 = vsel %vm1570, %v1622, %v1624
      %v1626 = vrot.slane %v1507, 1
      %v1627 = vrot.slane %v1508, 1
      %v1628 = vsel %vm1570, %v1626, %v1627
      %v1629 = vrot.slane %v1509, 1
      %v1630 = vsel %vm1570, %v1627, %v1629
      %v1631 = vrot.slane %v1510, 1
      %v1632 = vrot.slane %v1511, 1
      %v1633 = vsel %vm1570, %v1631, %v1632
      %v1634 = vrot.slane %v1512, 1
      %v1635 = vsel %vm1570, %v1632, %v1634
      %v1636 = vrot.slane %v1513, 1
      %v1637 = vrot.slane %v1514, 1
      %v1638 = vsel %vm1570, %v1636, %v1637
      %v1639 = vrot.slane %v1515, 1
      %v1640 = vsel %vm1570, %v1637, %v1639
      %v1641 = vrot.slane %v1516, 1
      %v1642 = vrot.slane %v1517, 1
      %v1643 = vsel %vm1570, %v1641, %v1642
      %v1644 = vrot.slane %v1518, 1
      %v1645 = vsel %vm1570, %v1642, %v1644
      %v1646 = vrot.slane %v1519, 1
      %v1647 = vrot.slane %v1520, 1
      %v1648 = vsel %vm1570, %v1646, %v1647
      %v1649 = vrot.slane %v1521, 1
      %v1650 = vsel %vm1570, %v1647, %v1649
      %v1683 = vadd.f32 %v1438, %v1573
      %v1684 = vadd.f32 %v1439, %v1575
      %v1685 = vadd.f32 %v1440, %v1578
      %v1686 = vadd.f32 %v1441, %v1580
      %v1687 = vadd.f32 %v1442, %v1583
      %v1688 = vadd.f32 %v1443, %v1585
      %v1689 = vadd.f32 %v1444, %v1588
      %v1690 = vadd.f32 %v1445, %v1590
      %v1691 = vadd.f32 %v1446, %v1593
      %v1692 = vadd.f32 %v1447, %v1595
      %v1693 = vadd.f32 %v1448, %v1598
      %v1694 = vadd.f32 %v1449, %v1600
      %v1695 = vadd.f32 %v1450, %v1603
      %v1696 = vadd.f32 %v1451, %v1605
      %v1697 = vadd.f32 %v1452, %v1608
      %v1698 = vadd.f32 %v1453, %v1610
      %v1699 = vadd.f32 %v1454, %v1613
      %v1700 = vadd.f32 %v1455, %v1615
      %v1701 = vadd.f32 %v1456, %v1618
      %v1702 = vadd.f32 %v1457, %v1620
      %v1703 = vadd.f32 %v1458, %v1623
      %v1704 = vadd.f32 %v1459, %v1625
      %v1705 = vadd.f32 %v1460, %v1628
      %v1706 = vadd.f32 %v1461, %v1630
      %v1707 = vadd.f32 %v1462, %v1633
      %v1708 = vadd.f32 %v1463, %v1635
      %v1709 = vadd.f32 %v1464, %v1638
      %v1710 = vadd.f32 %v1465, %v1640
      %v1711 = vadd.f32 %v1466, %v1643
      %v1712 = vadd.f32 %v1467, %v1645
      %v1713 = vadd.f32 %v1468, %v1648
      %v1714 = vadd.f32 %v1469, %v1650
      %v1715 = vlaneseq
      %v1716 = vshrl.u32 %v1715, 7
      %v1717 = vsub.s32 2, %v1716
      %v1718 = vrot.slane %v1400, %v1717
      %v1719 = vmul.f32 %v1346, %v1718
      %v1720 = vmul.f32 %v1347, %v1718
      %v1721 = vmul.f32 %v1348, %v1718
      %v1722 = vmul.f32 %v1349, %v1718
      %v1723 = vmul.f32 %v1350, %v1718
      %v1724 = vmul.f32 %v1351, %v1718
      %v1725 = vmul.f32 %v1352, %v1718
      %v1726 = vmul.f32 %v1353, %v1718
      %v1727 = vmul.f32 %v1354, %v1718
      %v1728 = vmul.f32 %v1355, %v1718
      %v1729 = vmul.f32 %v1356, %v1718
      %v1730 = vmul.f32 %v1357, %v1718
      %v1731 = vmul.f32 %v1358, %v1718
      %v1732 = vmul.f32 %v1359, %v1718
      %v1733 = vmul.f32 %v1360, %v1718
      %v1734 = vmul.f32 %v1361, %v1718
      %v1735 = vmul.f32 %v1362, %v1718
      %v1736 = vmul.f32 %v1363, %v1718
      %v1737 = vmul.f32 %v1364, %v1718
      %v1738 = vmul.f32 %v1365, %v1718
      %v1739 = vmul.f32 %v1366, %v1718
      %v1740 = vmul.f32 %v1367, %v1718
      %v1741 = vmul.f32 %v1368, %v1718
      %v1742 = vmul.f32 %v1369, %v1718
      %v1743 = vmul.f32 %v1370, %v1718
      %v1744 = vmul.f32 %v1371, %v1718
      %v1745 = vmul.f32 %v1372, %v1718
      %v1746 = vmul.f32 %v1373, %v1718
      %v1747 = vmul.f32 %v1374, %v1718
      %v1748 = vmul.f32 %v1375, %v1718
      %v1749 = vmul.f32 %v1376, %v1718
      %v1750 = vmul.f32 %v1377, %v1718
      %v1751 = vmul.f32 %v1378, %v1718
      %v1752 = vmul.f32 %v1379, %v1718
      %v1753 = vmul.f32 %v1380, %v1718
      %v1754 = vmul.f32 %v1381, %v1718
      %v1755 = vmul.f32 %v1382, %v1718
      %v1756 = vmul.f32 %v1383, %v1718
      %v1757 = vmul.f32 %v1384, %v1718
      %v1758 = vmul.f32 %v1385, %v1718
      %v1759 = vmul.f32 %v1386, %v1718
      %v1760 = vmul.f32 %v1387, %v1718
      %v1761 = vmul.f32 %v1388, %v1718
      %v1762 = vmul.f32 %v1389, %v1718
      %v1763 = vmul.f32 %v1390, %v1718
      %v1764 = vmul.f32 %v1391, %v1718
      %v1765 = vmul.f32 %v1392, %v1718
      %v1766 = vmul.f32 %v1393, %v1718
      %vm1815 = vcmask 1045504
      %v1816 = vrot.slane %v1719, 2
      %v1817 = vrot.slane %v1720, 2
      %v1818 = vsel %vm1815, %v1816, %v1817
      %v1819 = vrot.slane %v1721, 2
      %v1820 = vsel %vm1815, %v1817, %v1819
      %v1821 = vrot.slane %v1722, 2
      %v1822 = vrot.slane %v1723, 2
      %v1823 = vsel %vm1815, %v1821, %v1822
      %v1824 = vrot.slane %v1724, 2
      %v1825 = vsel %vm1815, %v1822, %v1824
      %v1826 = vrot.slane %v1725, 2
      %v1827 = vrot.slane %v1726, 2
      %v1828 = vsel %vm1815, %v1826, %v1827
      %v1829 = vrot.slane %v1727, 2
      %v1830 = vsel %vm1815, %v1827, %v1829
      %v1831 = vrot.slane %v1728, 2
      %v1832 = vrot.slane %v1729, 2
      %v1833 = vsel %vm1815, %v1831, %v1832
      %v1834 = vrot.slane %v1730, 2
      %v1835 = vsel %vm1815, %v1832, %v1834
      %v1836 = vrot.slane %v1731, 2
      %v1837 = vrot.slane %v1732, 2
      %v1838 = vsel %vm1815, %v1836, %v1837
      %v1839 = vrot.slane %v1733, 2
      %v1840 = vsel %vm1815, %v1837, %v1839
      %v1841 = vrot.slane %v1734, 2
      %v1842 = vrot.slane %v1735, 2
      %v1843 = vsel %vm1815, %v1841, %v1842
      %v1844 = vrot.slane %v1736, 2
      %v1845 = vsel %vm1815, %v1842, %v1844
      %v1846 = vrot.slane %v1737, 2
      %v1847 = vrot.slane %v1738, 2
      %v1848 = vsel %vm1815, %v1846, %v1847
      %v1849 = vrot.slane %v1739, 2
      %v1850 = vsel %vm1815, %v1847, %v1849
      %v1851 = vrot.slane %v1740, 2
      %v1852 = vrot.slane %v1741, 2
      %v1853 = vsel %vm1815, %v1851, %v1852
      %v1854 = vrot.slane %v1742, 2
      %v1855 = vsel %vm1815, %v1852, %v1854
      %v1856 = vrot.slane %v1743, 2
      %v1857 = vrot.slane %v1744, 2
      %v1858 = vsel %vm1815, %v1856, %v1857
      %v1859 = vrot.slane %v1745, 2
      %v1860 = vsel %vm1815, %v1857, %v1859
      %v1861 = vrot.slane %v1746, 2
      %v1862 = vrot.slane %v1747, 2
      %v1863 = vsel %vm1815, %v1861, %v1862
      %v1864 = vrot.slane %v1748, 2
      %v1865 = vsel %vm1815, %v1862, %v1864
      %v1866 = vrot.slane %v1749, 2
      %v1867 = vrot.slane %v1750, 2
      %v1868 = vsel %vm1815, %v1866, %v1867
      %v1869 = vrot.slane %v1751, 2
      %v1870 = vsel %vm1815, %v1867, %v1869
      %v1871 = vrot.slane %v1752, 2
      %v1872 = vrot.slane %v1753, 2
      %v1873 = vsel %vm1815, %v1871, %v1872
      %v1874 = vrot.slane %v1754, 2
      %v1875 = vsel %vm1815, %v1872, %v1874
      %v1876 = vrot.slane %v1755, 2
      %v1877 = vrot.slane %v1756, 2
      %v1878 = vsel %vm1815, %v1876, %v1877
      %v1879 = vrot.slane %v1757, 2
      %v1880 = vsel %vm1815, %v1877, %v1879
      %v1881 = vrot.slane %v1758, 2
      %v1882 = vrot.slane %v1759, 2
      %v1883 = vsel %vm1815, %v1881, %v1882
      %v1884 = vrot.slane %v1760, 2
      %v1885 = vsel %vm1815, %v1882, %v1884
      %v1886 = vrot.slane %v1761, 2
      %v1887 = vrot.slane %v1762, 2
      %v1888 = vsel %vm1815, %v1886, %v1887
      %v1889 = vrot.slane %v1763, 2
      %v1890 = vsel %vm1815, %v1887, %v1889
      %v1891 = vrot.slane %v1764, 2
      %v1892 = vrot.slane %v1765, 2
      %v1893 = vsel %vm1815, %v1891, %v1892
      %v1894 = vrot.slane %v1766, 2
      %v1895 = vsel %vm1815, %v1892, %v1894
      %v1928 = vadd.f32 %v1683, %v1818
      %v1929 = vadd.f32 %v1684, %v1820
      %v1930 = vadd.f32 %v1685, %v1823
      %v1931 = vadd.f32 %v1686, %v1825
      %v1932 = vadd.f32 %v1687, %v1828
      %v1933 = vadd.f32 %v1688, %v1830
      %v1934 = vadd.f32 %v1689, %v1833
      %v1935 = vadd.f32 %v1690, %v1835
      %v1936 = vadd.f32 %v1691, %v1838
      %v1937 = vadd.f32 %v1692, %v1840
      %v1938 = vadd.f32 %v1693, %v1843
      %v1939 = vadd.f32 %v1694, %v1845
      %v1940 = vadd.f32 %v1695, %v1848
      %v1941 = vadd.f32 %v1696, %v1850
      %v1942 = vadd.f32 %v1697, %v1853
      %v1943 = vadd.f32 %v1698, %v1855
      %v1944 = vadd.f32 %v1699, %v1858
      %v1945 = vadd.f32 %v1700, %v1860
      %v1946 = vadd.f32 %v1701, %v1863
      %v1947 = vadd.f32 %v1702, %v1865
      %v1948 = vadd.f32 %v1703, %v1868
      %v1949 = vadd.f32 %v1704, %v1870
      %v1950 = vadd.f32 %v1705, %v1873
      %v1951 = vadd.f32 %v1706, %v1875
      %v1952 = vadd.f32 %v1707, %v1878
      %v1953 = vadd.f32 %v1708, %v1880
      %v1954 = vadd.f32 %v1709, %v1883
      %v1955 = vadd.f32 %v1710, %v1885
      %v1956 = vadd.f32 %v1711, %v1888
      %v1957 = vadd.f32 %v1712, %v1890
      %v1958 = vadd.f32 %v1713, %v1893
      %v1959 = vadd.f32 %v1714, %v1895
      %v1960 = vlaneseq
      %v1961 = vshrl.u32 %v1960, 7
      %v1962 = vsub.s32 3, %v1961
      %v1963 = vrot.slane %v1400, %v1962
      %v1964 = vmul.f32 %v1349, %v1963
      %v1965 = vmul.f32 %v1350, %v1963
      %v1966 = vmul.f32 %v1352, %v1963
      %v1967 = vmul.f32 %v1353, %v1963
      %v1968 = vmul.f32 %v1355, %v1963
      %v1969 = vmul.f32 %v1356, %v1963
      %v1970 = vmul.f32 %v1358, %v1963
      %v1971 = vmul.f32 %v1359, %v1963
      %v1972 = vmul.f32 %v1361, %v1963
      %v1973 = vmul.f32 %v1362, %v1963
      %v1974 = vmul.f32 %v1364, %v1963
      %v1975 = vmul.f32 %v1365, %v1963
      %v1976 = vmul.f32 %v1367, %v1963
      %v1977 = vmul.f32 %v1368, %v1963
      %v1978 = vmul.f32 %v1370, %v1963
      %v1979 = vmul.f32 %v1371, %v1963
      %v1980 = vmul.f32 %v1373, %v1963
      %v1981 = vmul.f32 %v1374, %v1963
      %v1982 = vmul.f32 %v1376, %v1963
      %v1983 = vmul.f32 %v1377, %v1963
      %v1984 = vmul.f32 %v1379, %v1963
      %v1985 = vmul.f32 %v1380, %v1963
      %v1986 = vmul.f32 %v1382, %v1963
      %v1987 = vmul.f32 %v1383, %v1963
      %v1988 = vmul.f32 %v1385, %v1963
      %v1989 = vmul.f32 %v1386, %v1963
      %v1990 = vmul.f32 %v1388, %v1963
      %v1991 = vmul.f32 %v1389, %v1963
      %v1992 = vmul.f32 %v1391, %v1963
      %v1993 = vmul.f32 %v1392, %v1963
      %v1994 = vmul.f32 %v1394, %v1963
      %v1995 = vmul.f32 %v1395, %v1963
      %v1996 = vadd.f32 %v1928, %v1964
      %v1997 = vadd.f32 %v1929, %v1965
      %v1998 = vadd.f32 %v1930, %v1966
      %v1999 = vadd.f32 %v1931, %v1967
      %v2000 = vadd.f32 %v1932, %v1968
      %v2001 = vadd.f32 %v1933, %v1969
      %v2002 = vadd.f32 %v1934, %v1970
      %v2003 = vadd.f32 %v1935, %v1971
      %v2004 = vadd.f32 %v1936, %v1972
      %v2005 = vadd.f32 %v1937, %v1973
      %v2006 = vadd.f32 %v1938, %v1974
      %v2007 = vadd.f32 %v1939, %v1975
      %v2008 = vadd.f32 %v1940, %v1976
      %v2009 = vadd.f32 %v1941, %v1977
      %v2010 = vadd.f32 %v1942, %v1978
      %v2011 = vadd.f32 %v1943, %v1979
      %v2012 = vadd.f32 %v1944, %v1980
      %v2013 = vadd.f32 %v1945, %v1981
      %v2014 = vadd.f32 %v1946, %v1982
      %v2015 = vadd.f32 %v1947, %v1983
      %v2016 = vadd.f32 %v1948, %v1984
      %v2017 = vadd.f32 %v1949, %v1985
      %v2018 = vadd.f32 %v1950, %v1986
      %v2019 = vadd.f32 %v1951, %v1987
      %v2020 = vadd.f32 %v1952, %v1988
      %v2021 = vadd.f32 %v1953, %v1989
      %v2022 = vadd.f32 %v1954, %v1990
      %v2023 = vadd.f32 %v1955, %v1991
      %v2024 = vadd.f32 %v1956, %v1992
      %v2025 = vadd.f32 %v1957, %v1993
      %v2026 = vadd.f32 %v1958, %v1994
      %v2027 = vadd.f32 %v1959, %v1995
      %v2028 = vlaneseq
      %v2029 = vshrl.u32 %v2028, 7
      %v2030 = vsub.s32 4, %v2029
      %v2031 = vrot.slane %v1400, %v2030
      %v2032 = vmul.f32 %v1349, %v2031
      %v2033 = vmul.f32 %v1350, %v2031
      %v2034 = vmul.f32 %v1351, %v2031
      %v2035 = vmul.f32 %v1352, %v2031
      %v2036 = vmul.f32 %v1353, %v2031
      %v2037 = vmul.f32 %v1354, %v2031
      %v2038 = vmul.f32 %v1355, %v2031
      %v2039 = vmul.f32 %v1356, %v2031
      %v2040 = vmul.f32 %v1357, %v2031
      %v2041 = vmul.f32 %v1358, %v2031
      %v2042 = vmul.f32 %v1359, %v2031
      %v2043 = vmul.f32 %v1360, %v2031
      %v2044 = vmul.f32 %v1361, %v2031
      %v2045 = vmul.f32 %v1362, %v2031
      %v2046 = vmul.f32 %v1363, %v2031
      %v2047 = vmul.f32 %v1364, %v2031
      %v2048 = vmul.f32 %v1365, %v2031
      %v2049 = vmul.f32 %v1366, %v2031
      %v2050 = vmul.f32 %v1367, %v2031
      %v2051 = vmul.f32 %v1368, %v2031
      %v2052 = vmul.f32 %v1369, %v2031
      %v2053 = vmul.f32 %v1370, %v2031
      %v2054 = vmul.f32 %v1371, %v2031
      %v2055 = vmul.f32 %v1372, %v2031
      %v2056 = vmul.f32 %v1373, %v2031
      %v2057 = vmul.f32 %v1374, %v2031
      %v2058 = vmul.f32 %v1375, %v2031
      %v2059 = vmul.f32 %v1376, %v2031
      %v2060 = vmul.f32 %v1377, %v2031
      %v2061 = vmul.f32 %v1378, %v2031
      %v2062 = vmul.f32 %v1379, %v2031
      %v2063 = vmul.f32 %v1380, %v2031
      %v2064 = vmul.f32 %v1381, %v2031
      %v2065 = vmul.f32 %v1382, %v2031
      %v2066 = vmul.f32 %v1383, %v2031
      %v2067 = vmul.f32 %v1384, %v2031
      %v2068 = vmul.f32 %v1385, %v2031
      %v2069 = vmul.f32 %v1386, %v2031
      %v2070 = vmul.f32 %v1387, %v2031
      %v2071 = vmul.f32 %v1388, %v2031
      %v2072 = vmul.f32 %v1389, %v2031
      %v2073 = vmul.f32 %v1390, %v2031
      %v2074 = vmul.f32 %v1391, %v2031
      %v2075 = vmul.f32 %v1392, %v2031
      %v2076 = vmul.f32 %v1393, %v2031
      %v2077 = vmul.f32 %v1394, %v2031
      %v2078 = vmul.f32 %v1395, %v2031
      %v2079 = vmul.f32 %v1396, %v2031
      %v2128 = vrot.slane %v2032, 1
      %v2129 = vrot.slane %v2033, 1
      %v2130 = vsel %vm1570, %v2128, %v2129
      %v2131 = vrot.slane %v2034, 1
      %v2132 = vsel %vm1570, %v2129, %v2131
      %v2133 = vrot.slane %v2035, 1
      %v2134 = vrot.slane %v2036, 1
      %v2135 = vsel %vm1570, %v2133, %v2134
      %v2136 = vrot.slane %v2037, 1
      %v2137 = vsel %vm1570, %v2134, %v2136
      %v2138 = vrot.slane %v2038, 1
      %v2139 = vrot.slane %v2039, 1
      %v2140 = vsel %vm1570, %v2138, %v2139
      %v2141 = vrot.slane %v2040, 1
      %v2142 = vsel %vm1570, %v2139, %v2141
      %v2143 = vrot.slane %v2041, 1
      %v2144 = vrot.slane %v2042, 1
      %v2145 = vsel %vm1570, %v2143, %v2144
      %v2146 = vrot.slane %v2043, 1
      %v2147 = vsel %vm1570, %v2144, %v2146
      %v2148 = vrot.slane %v2044, 1
      %v2149 = vrot.slane %v2045, 1
      %v2150 = vsel %vm1570, %v2148, %v2149
      %v2151 = vrot.slane %v2046, 1
      %v2152 = vsel %vm1570, %v2149, %v2151
      %v2153 = vrot.slane %v2047, 1
      %v2154 = vrot.slane %v2048, 1
      %v2155 = vsel %vm1570, %v2153, %v2154
      %v2156 = vrot.slane %v2049, 1
      %v2157 = vsel %vm1570, %v2154, %v2156
      %v2158 = vrot.slane %v2050, 1
      %v2159 = vrot.slane %v2051, 1
      %v2160 = vsel %vm1570, %v2158, %v2159
      %v2161 = vrot.slane %v2052, 1
      %v2162 = vsel %vm1570, %v2159, %v2161
      %v2163 = vrot.slane %v2053, 1
      %v2164 = vrot.slane %v2054, 1
      %v2165 = vsel %vm1570, %v2163, %v2164
      %v2166 = vrot.slane %v2055, 1
      %v2167 = vsel %vm1570, %v2164, %v2166
      %v2168 = vrot.slane %v2056, 1
      %v2169 = vrot.slane %v2057, 1
      %v2170 = vsel %vm1570, %v2168, %v2169
      %v2171 = vrot.slane %v2058, 1
      %v2172 = vsel %vm1570, %v2169, %v2171
      %v2173 = vrot.slane %v2059, 1
      %v2174 = vrot.slane %v2060, 1
      %v2175 = vsel %vm1570, %v2173, %v2174
      %v2176 = vrot.slane %v2061, 1
      %v2177 = vsel %vm1570, %v2174, %v2176
      %v2178 = vrot.slane %v2062, 1
      %v2179 = vrot.slane %v2063, 1
      %v2180 = vsel %vm1570, %v2178, %v2179
      %v2181 = vrot.slane %v2064, 1
      %v2182 = vsel %vm1570, %v2179, %v2181
      %v2183 = vrot.slane %v2065, 1
      %v2184 = vrot.slane %v2066, 1
      %v2185 = vsel %vm1570, %v2183, %v2184
      %v2186 = vrot.slane %v2067, 1
      %v2187 = vsel %vm1570, %v2184, %v2186
      %v2188 = vrot.slane %v2068, 1
      %v2189 = vrot.slane %v2069, 1
      %v2190 = vsel %vm1570, %v2188, %v2189
      %v2191 = vrot.slane %v2070, 1
      %v2192 = vsel %vm1570, %v2189, %v2191
      %v2193 = vrot.slane %v2071, 1
      %v2194 = vrot.slane %v2072, 1
      %v2195 = vsel %vm1570, %v2193, %v2194
      %v2196 = vrot.slane %v2073, 1
      %v2197 = vsel %vm1570, %v2194, %v2196
      %v2198 = vrot.slane %v2074, 1
      %v2199 = vrot.slane %v2075, 1
      %v2200 = vsel %vm1570, %v2198, %v2199
      %v2201 = vrot.slane %v2076, 1
      %v2202 = vsel %vm1570, %v2199, %v2201
      %v2203 = vrot.slane %v2077, 1
      %v2204 = vrot.slane %v2078, 1
      %v2205 = vsel %vm1570, %v2203, %v2204
      %v2206 = vrot.slane %v2079, 1
      %v2207 = vsel %vm1570, %v2204, %v2206
      %v2240 = vadd.f32 %v1996, %v2130
      %v2241 = vadd.f32 %v1997, %v2132
      %v2242 = vadd.f32 %v1998, %v2135
      %v2243 = vadd.f32 %v1999, %v2137
      %v2244 = vadd.f32 %v2000, %v2140
      %v2245 = vadd.f32 %v2001, %v2142
      %v2246 = vadd.f32 %v2002, %v2145
      %v2247 = vadd.f32 %v2003, %v2147
      %v2248 = vadd.f32 %v2004, %v2150
      %v2249 = vadd.f32 %v2005, %v2152
      %v2250 = vadd.f32 %v2006, %v2155
      %v2251 = vadd.f32 %v2007, %v2157
      %v2252 = vadd.f32 %v2008, %v2160
      %v2253 = vadd.f32 %v2009, %v2162
      %v2254 = vadd.f32 %v2010, %v2165
      %v2255 = vadd.f32 %v2011, %v2167
      %v2256 = vadd.f32 %v2012, %v2170
      %v2257 = vadd.f32 %v2013, %v2172
      %v2258 = vadd.f32 %v2014, %v2175
      %v2259 = vadd.f32 %v2015, %v2177
      %v2260 = vadd.f32 %v2016, %v2180
      %v2261 = vadd.f32 %v2017, %v2182
      %v2262 = vadd.f32 %v2018, %v2185
      %v2263 = vadd.f32 %v2019, %v2187
      %v2264 = vadd.f32 %v2020, %v2190
      %v2265 = vadd.f32 %v2021, %v2192
      %v2266 = vadd.f32 %v2022, %v2195
      %v2267 = vadd.f32 %v2023, %v2197
      %v2268 = vadd.f32 %v2024, %v2200
      %v2269 = vadd.f32 %v2025, %v2202
      %v2270 = vadd.f32 %v2026, %v2205
      %v2271 = vadd.f32 %v2027, %v2207
      %v2272 = vlaneseq
      %v2273 = vshrl.u32 %v2272, 7
      %v2274 = vsub.s32 5, %v2273
      %v2275 = vrot.slane %v1400, %v2274
      %v2276 = vmul.f32 %v1349, %v2275
      %v2277 = vmul.f32 %v1350, %v2275
      %v2278 = vmul.f32 %v1351, %v2275
      %v2279 = vmul.f32 %v1352, %v2275
      %v2280 = vmul.f32 %v1353, %v2275
      %v2281 = vmul.f32 %v1354, %v2275
      %v2282 = vmul.f32 %v1355, %v2275
      %v2283 = vmul.f32 %v1356, %v2275
      %v2284 = vmul.f32 %v1357, %v2275
      %v2285 = vmul.f32 %v1358, %v2275
      %v2286 = vmul.f32 %v1359, %v2275
      %v2287 = vmul.f32 %v1360, %v2275
      %v2288 = vmul.f32 %v1361, %v2275
      %v2289 = vmul.f32 %v1362, %v2275
      %v2290 = vmul.f32 %v1363, %v2275
      %v2291 = vmul.f32 %v1364, %v2275
      %v2292 = vmul.f32 %v1365, %v2275
      %v2293 = vmul.f32 %v1366, %v2275
      %v2294 = vmul.f32 %v1367, %v2275
      %v2295 = vmul.f32 %v1368, %v2275
      %v2296 = vmul.f32 %v1369, %v2275
      %v2297 = vmul.f32 %v1370, %v2275
      %v2298 = vmul.f32 %v1371, %v2275
      %v2299 = vmul.f32 %v1372, %v2275
      %v2300 = vmul.f32 %v1373, %v2275
      %v2301 = vmul.f32 %v1374, %v2275
      %v2302 = vmul.f32 %v1375, %v2275
      %v2303 = vmul.f32 %v1376, %v2275
      %v2304 = vmul.f32 %v1377, %v2275
      %v2305 = vmul.f32 %v1378, %v2275
      %v2306 = vmul.f32 %v1379, %v2275
      %v2307 = vmul.f32 %v1380, %v2275
      %v2308 = vmul.f32 %v1381, %v2275
      %v2309 = vmul.f32 %v1382, %v2275
      %v2310 = vmul.f32 %v1383, %v2275
      %v2311 = vmul.f32 %v1384, %v2275
      %v2312 = vmul.f32 %v1385, %v2275
      %v2313 = vmul.f32 %v1386, %v2275
      %v2314 = vmul.f32 %v1387, %v2275
      %v2315 = vmul.f32 %v1388, %v2275
      %v2316 = vmul.f32 %v1389, %v2275
      %v2317 = vmul.f32 %v1390, %v2275
      %v2318 = vmul.f32 %v1391, %v2275
      %v2319 = vmul.f32 %v1392, %v2275
      %v2320 = vmul.f32 %v1393, %v2275
      %v2321 = vmul.f32 %v1394, %v2275
      %v2322 = vmul.f32 %v1395, %v2275
      %v2323 = vmul.f32 %v1396, %v2275
      %v2372 = vrot.slane %v2276, 2
      %v2373 = vrot.slane %v2277, 2
      %v2374 = vsel %vm1815, %v2372, %v2373
      %v2375 = vrot.slane %v2278, 2
      %v2376 = vsel %vm1815, %v2373, %v2375
      %v2377 = vrot.slane %v2279, 2
      %v2378 = vrot.slane %v2280, 2
      %v2379 = vsel %vm1815, %v2377, %v2378
      %v2380 = vrot.slane %v2281, 2
      %v2381 = vsel %vm1815, %v2378, %v2380
      %v2382 = vrot.slane %v2282, 2
      %v2383 = vrot.slane %v2283, 2
      %v2384 = vsel %vm1815, %v2382, %v2383
      %v2385 = vrot.slane %v2284, 2
      %v2386 = vsel %vm1815, %v2383, %v2385
      %v2387 = vrot.slane %v2285, 2
      %v2388 = vrot.slane %v2286, 2
      %v2389 = vsel %vm1815, %v2387, %v2388
      %v2390 = vrot.slane %v2287, 2
      %v2391 = vsel %vm1815, %v2388, %v2390
      %v2392 = vrot.slane %v2288, 2
      %v2393 = vrot.slane %v2289, 2
      %v2394 = vsel %vm1815, %v2392, %v2393
      %v2395 = vrot.slane %v2290, 2
      %v2396 = vsel %vm1815, %v2393, %v2395
      %v2397 = vrot.slane %v2291, 2
      %v2398 = vrot.slane %v2292, 2
      %v2399 = vsel %vm1815, %v2397, %v2398
      %v2400 = vrot.slane %v2293, 2
      %v2401 = vsel %vm1815, %v2398, %v2400
      %v2402 = vrot.slane %v2294, 2
      %v2403 = vrot.slane %v2295, 2
      %v2404 = vsel %vm1815, %v2402, %v2403
      %v2405 = vrot.slane %v2296, 2
      %v2406 = vsel %vm1815, %v2403, %v2405
      %v2407 = vrot.slane %v2297, 2
      %v2408 = vrot.slane %v2298, 2
      %v2409 = vsel %vm1815, %v2407, %v2408
      %v2410 = vrot.slane %v2299, 2
      %v2411 = vsel %vm1815, %v2408, %v2410
      %v2412 = vrot.slane %v2300, 2
      %v2413 = vrot.slane %v2301, 2
      %v2414 = vsel %vm1815, %v2412, %v2413
      %v2415 = vrot.slane %v2302, 2
      %v2416 = vsel %vm1815, %v2413, %v2415
      %v2417 = vrot.slane %v2303, 2
      %v2418 = vrot.slane %v2304, 2
      %v2419 = vsel %vm1815, %v2417, %v2418
      %v2420 = vrot.slane %v2305, 2
      %v2421 = vsel %vm1815, %v2418, %v2420
      %v2422 = vrot.slane %v2306, 2
      %v2423 = vrot.slane %v2307, 2
      %v2424 = vsel %vm1815, %v2422, %v2423
      %v2425 = vrot.slane %v2308, 2
      %v2426 = vsel %vm1815, %v2423, %v2425
      %v2427 = vrot.slane %v2309, 2
      %v2428 = vrot.slane %v2310, 2
      %v2429 = vsel %vm1815, %v2427, %v2428
      %v2430 = vrot.slane %v2311, 2
      %v2431 = vsel %vm1815, %v2428, %v2430
      %v2432 = vrot.slane %v2312, 2
      %v2433 = vrot.slane %v2313, 2
      %v2434 = vsel %vm1815, %v2432, %v2433
      %v2435 = vrot.slane %v2314, 2
      %v2436 = vsel %vm1815, %v2433, %v2435
      %v2437 = vrot.slane %v2315, 2
      %v2438 = vrot.slane %v2316, 2
      %v2439 = vsel %vm1815, %v2437, %v2438
      %v2440 = vrot.slane %v2317, 2
      %v2441 = vsel %vm1815, %v2438, %v2440
      %v2442 = vrot.slane %v2318, 2
      %v2443 = vrot.slane %v2319, 2
      %v2444 = vsel %vm1815, %v2442, %v2443
      %v2445 = vrot.slane %v2320, 2
      %v2446 = vsel %vm1815, %v2443, %v2445
      %v2447 = vrot.slane %v2321, 2
      %v2448 = vrot.slane %v2322, 2
      %v2449 = vsel %vm1815, %v2447, %v2448
      %v2450 = vrot.slane %v2323, 2
      %v2451 = vsel %vm1815, %v2448, %v2450
      %v2484 = vadd.f32 %v2240, %v2374
      %v2485 = vadd.f32 %v2241, %v2376
      %v2486 = vadd.f32 %v2242, %v2379
      %v2487 = vadd.f32 %v2243, %v2381
      %v2488 = vadd.f32 %v2244, %v2384
      %v2489 = vadd.f32 %v2245, %v2386
      %v2490 = vadd.f32 %v2246, %v2389
      %v2491 = vadd.f32 %v2247, %v2391
      %v2492 = vadd.f32 %v2248, %v2394
      %v2493 = vadd.f32 %v2249, %v2396
      %v2494 = vadd.f32 %v2250, %v2399
      %v2495 = vadd.f32 %v2251, %v2401
      %v2496 = vadd.f32 %v2252, %v2404
      %v2497 = vadd.f32 %v2253, %v2406
      %v2498 = vadd.f32 %v2254, %v2409
      %v2499 = vadd.f32 %v2255, %v2411
      %v2500 = vadd.f32 %v2256, %v2414
      %v2501 = vadd.f32 %v2257, %v2416
      %v2502 = vadd.f32 %v2258, %v2419
      %v2503 = vadd.f32 %v2259, %v2421
      %v2504 = vadd.f32 %v2260, %v2424
      %v2505 = vadd.f32 %v2261, %v2426
      %v2506 = vadd.f32 %v2262, %v2429
      %v2507 = vadd.f32 %v2263, %v2431
      %v2508 = vadd.f32 %v2264, %v2434
      %v2509 = vadd.f32 %v2265, %v2436
      %v2510 = vadd.f32 %v2266, %v2439
      %v2511 = vadd.f32 %v2267, %v2441
      %v2512 = vadd.f32 %v2268, %v2444
      %v2513 = vadd.f32 %v2269, %v2446
      %v2514 = vadd.f32 %v2270, %v2449
      %v2515 = vadd.f32 %v2271, %v2451
      %v2516 = vlaneseq
      %v2517 = vshrl.u32 %v2516, 7
      %v2518 = vsub.s32 6, %v2517
      %v2519 = vrot.slane %v1400, %v2518
      %v2520 = vmul.f32 %v1352, %v2519
      %v2521 = vmul.f32 %v1353, %v2519
      %v2522 = vmul.f32 %v1355, %v2519
      %v2523 = vmul.f32 %v1356, %v2519
      %v2524 = vmul.f32 %v1358, %v2519
      %v2525 = vmul.f32 %v1359, %v2519
      %v2526 = vmul.f32 %v1361, %v2519
      %v2527 = vmul.f32 %v1362, %v2519
      %v2528 = vmul.f32 %v1364, %v2519
      %v2529 = vmul.f32 %v1365, %v2519
      %v2530 = vmul.f32 %v1367, %v2519
      %v2531 = vmul.f32 %v1368, %v2519
      %v2532 = vmul.f32 %v1370, %v2519
      %v2533 = vmul.f32 %v1371, %v2519
      %v2534 = vmul.f32 %v1373, %v2519
      %v2535 = vmul.f32 %v1374, %v2519
      %v2536 = vmul.f32 %v1376, %v2519
      %v2537 = vmul.f32 %v1377, %v2519
      %v2538 = vmul.f32 %v1379, %v2519
      %v2539 = vmul.f32 %v1380, %v2519
      %v2540 = vmul.f32 %v1382, %v2519
      %v2541 = vmul.f32 %v1383, %v2519
      %v2542 = vmul.f32 %v1385, %v2519
      %v2543 = vmul.f32 %v1386, %v2519
      %v2544 = vmul.f32 %v1388, %v2519
      %v2545 = vmul.f32 %v1389, %v2519
      %v2546 = vmul.f32 %v1391, %v2519
      %v2547 = vmul.f32 %v1392, %v2519
      %v2548 = vmul.f32 %v1394, %v2519
      %v2549 = vmul.f32 %v1395, %v2519
      %v2550 = vmul.f32 %v1397, %v2519
      %v2551 = vmul.f32 %v1398, %v2519
      %v2552 = vadd.f32 %v2484, %v2520
      %v2553 = vadd.f32 %v2485, %v2521
      %v2554 = vadd.f32 %v2486, %v2522
      %v2555 = vadd.f32 %v2487, %v2523
      %v2556 = vadd.f32 %v2488, %v2524
      %v2557 = vadd.f32 %v2489, %v2525
      %v2558 = vadd.f32 %v2490, %v2526
      %v2559 = vadd.f32 %v2491, %v2527
      %v2560 = vadd.f32 %v2492, %v2528
      %v2561 = vadd.f32 %v2493, %v2529
      %v2562 = vadd.f32 %v2494, %v2530
      %v2563 = vadd.f32 %v2495, %v2531
      %v2564 = vadd.f32 %v2496, %v2532
      %v2565 = vadd.f32 %v2497, %v2533
      %v2566 = vadd.f32 %v2498, %v2534
      %v2567 = vadd.f32 %v2499, %v2535
      %v2568 = vadd.f32 %v2500, %v2536
      %v2569 = vadd.f32 %v2501, %v2537
      %v2570 = vadd.f32 %v2502, %v2538
      %v2571 = vadd.f32 %v2503, %v2539
      %v2572 = vadd.f32 %v2504, %v2540
      %v2573 = vadd.f32 %v2505, %v2541
      %v2574 = vadd.f32 %v2506, %v2542
      %v2575 = vadd.f32 %v2507, %v2543
      %v2576 = vadd.f32 %v2508, %v2544
      %v2577 = vadd.f32 %v2509, %v2545
      %v2578 = vadd.f32 %v2510, %v2546
      %v2579 = vadd.f32 %v2511, %v2547
      %v2580 = vadd.f32 %v2512, %v2548
      %v2581 = vadd.f32 %v2513, %v2549
      %v2582 = vadd.f32 %v2514, %v2550
      %v2583 = vadd.f32 %v2515, %v2551
      %v2584 = vlaneseq
      %v2585 = vshrl.u32 %v2584, 7
      %v2586 = vsub.s32 7, %v2585
      %v2587 = vrot.slane %v1400, %v2586
      %v2588 = vmul.f32 %v1352, %v2587
      %v2589 = vmul.f32 %v1353, %v2587
      %v2590 = vmul.f32 %v1354, %v2587
      %v2591 = vmul.f32 %v1355, %v2587
      %v2592 = vmul.f32 %v1356, %v2587
      %v2593 = vmul.f32 %v1357, %v2587
      %v2594 = vmul.f32 %v1358, %v2587
      %v2595 = vmul.f32 %v1359, %v2587
      %v2596 = vmul.f32 %v1360, %v2587
      %v2597 = vmul.f32 %v1361, %v2587
      %v2598 = vmul.f32 %v1362, %v2587
      %v2599 = vmul.f32 %v1363, %v2587
      %v2600 = vmul.f32 %v1364, %v2587
      %v2601 = vmul.f32 %v1365, %v2587
      %v2602 = vmul.f32 %v1366, %v2587
      %v2603 = vmul.f32 %v1367, %v2587
      %v2604 = vmul.f32 %v1368, %v2587
      %v2605 = vmul.f32 %v1369, %v2587
      %v2606 = vmul.f32 %v1370, %v2587
      %v2607 = vmul.f32 %v1371, %v2587
      %v2608 = vmul.f32 %v1372, %v2587
      %v2609 = vmul.f32 %v1373, %v2587
      %v2610 = vmul.f32 %v1374, %v2587
      %v2611 = vmul.f32 %v1375, %v2587
      %v2612 = vmul.f32 %v1376, %v2587
      %v2613 = vmul.f32 %v1377, %v2587
      %v2614 = vmul.f32 %v1378, %v2587
      %v2615 = vmul.f32 %v1379, %v2587
      %v2616 = vmul.f32 %v1380, %v2587
      %v2617 = vmul.f32 %v1381, %v2587
      %v2618 = vmul.f32 %v1382, %v2587
      %v2619 = vmul.f32 %v1383, %v2587
      %v2620 = vmul.f32 %v1384, %v2587
      %v2621 = vmul.f32 %v1385, %v2587
      %v2622 = vmul.f32 %v1386, %v2587
      %v2623 = vmul.f32 %v1387, %v2587
      %v2624 = vmul.f32 %v1388, %v2587
      %v2625 = vmul.f32 %v1389, %v2587
      %v2626 = vmul.f32 %v1390, %v2587
      %v2627 = vmul.f32 %v1391, %v2587
      %v2628 = vmul.f32 %v1392, %v2587
      %v2629 = vmul.f32 %v1393, %v2587
      %v2630 = vmul.f32 %v1394, %v2587
      %v2631 = vmul.f32 %v1395, %v2587
      %v2632 = vmul.f32 %v1396, %v2587
      %v2633 = vmul.f32 %v1397, %v2587
      %v2634 = vmul.f32 %v1398, %v2587
      %v2635 = vmul.f32 %v1399, %v2587
      %v2684 = vrot.slane %v2588, 1
      %v2685 = vrot.slane %v2589, 1
      %v2686 = vsel %vm1570, %v2684, %v2685
      %v2687 = vrot.slane %v2590, 1
      %v2688 = vsel %vm1570, %v2685, %v2687
      %v2689 = vrot.slane %v2591, 1
      %v2690 = vrot.slane %v2592, 1
      %v2691 = vsel %vm1570, %v2689, %v2690
      %v2692 = vrot.slane %v2593, 1
      %v2693 = vsel %vm1570, %v2690, %v2692
      %v2694 = vrot.slane %v2594, 1
      %v2695 = vrot.slane %v2595, 1
      %v2696 = vsel %vm1570, %v2694, %v2695
      %v2697 = vrot.slane %v2596, 1
      %v2698 = vsel %vm1570, %v2695, %v2697
      %v2699 = vrot.slane %v2597, 1
      %v2700 = vrot.slane %v2598, 1
      %v2701 = vsel %vm1570, %v2699, %v2700
      %v2702 = vrot.slane %v2599, 1
      %v2703 = vsel %vm1570, %v2700, %v2702
      %v2704 = vrot.slane %v2600, 1
      %v2705 = vrot.slane %v2601, 1
      %v2706 = vsel %vm1570, %v2704, %v2705
      %v2707 = vrot.slane %v2602, 1
      %v2708 = vsel %vm1570, %v2705, %v2707
      %v2709 = vrot.slane %v2603, 1
      %v2710 = vrot.slane %v2604, 1
      %v2711 = vsel %vm1570, %v2709, %v2710
      %v2712 = vrot.slane %v2605, 1
      %v2713 = vsel %vm1570, %v2710, %v2712
      %v2714 = vrot.slane %v2606, 1
      %v2715 = vrot.slane %v2607, 1
      %v2716 = vsel %vm1570, %v2714, %v2715
      %v2717 = vrot.slane %v2608, 1
      %v2718 = vsel %vm1570, %v2715, %v2717
      %v2719 = vrot.slane %v2609, 1
      %v2720 = vrot.slane %v2610, 1
      %v2721 = vsel %vm1570, %v2719, %v2720
      %v2722 = vrot.slane %v2611, 1
      %v2723 = vsel %vm1570, %v2720, %v2722
      %v2724 = vrot.slane %v2612, 1
      %v2725 = vrot.slane %v2613, 1
      %v2726 = vsel %vm1570, %v2724, %v2725
      %v2727 = vrot.slane %v2614, 1
      %v2728 = vsel %vm1570, %v2725, %v2727
      %v2729 = vrot.slane %v2615, 1
      %v2730 = vrot.slane %v2616, 1
      %v2731 = vsel %vm1570, %v2729, %v2730
      %v2732 = vrot.slane %v2617, 1
      %v2733 = vsel %vm1570, %v2730, %v2732
      %v2734 = vrot.slane %v2618, 1
      %v2735 = vrot.slane %v2619, 1
      %v2736 = vsel %vm1570, %v2734, %v2735
      %v2737 = vrot.slane %v2620, 1
      %v2738 = vsel %vm1570, %v2735, %v2737
      %v2739 = vrot.slane %v2621, 1
      %v2740 = vrot.slane %v2622, 1
      %v2741 = vsel %vm1570, %v2739, %v2740
      %v2742 = vrot.slane %v2623, 1
      %v2743 = vsel %vm1570, %v2740, %v2742
      %v2744 = vrot.slane %v2624, 1
      %v2745 = vrot.slane %v2625, 1
      %v2746 = vsel %vm1570, %v2744, %v2745
      %v2747 = vrot.slane %v2626, 1
      %v2748 = vsel %vm1570, %v2745, %v2747
      %v2749 = vrot.slane %v2627, 1
      %v2750 = vrot.slane %v2628, 1
      %v2751 = vsel %vm1570, %v2749, %v2750
      %v2752 = vrot.slane %v2629, 1
      %v2753 = vsel %vm1570, %v2750, %v2752
      %v2754 = vrot.slane %v2630, 1
      %v2755 = vrot.slane %v2631, 1
      %v2756 = vsel %vm1570, %v2754, %v2755
      %v2757 = vrot.slane %v2632, 1
      %v2758 = vsel %vm1570, %v2755, %v2757
      %v2759 = vrot.slane %v2633, 1
      %v2760 = vrot.slane %v2634, 1
      %v2761 = vsel %vm1570, %v2759, %v2760
      %v2762 = vrot.slane %v2635, 1
      %v2763 = vsel %vm1570, %v2760, %v2762
      %v2796 = vadd.f32 %v2552, %v2686
      %v2797 = vadd.f32 %v2553, %v2688
      %v2798 = vadd.f32 %v2554, %v2691
      %v2799 = vadd.f32 %v2555, %v2693
      %v2800 = vadd.f32 %v2556, %v2696
      %v2801 = vadd.f32 %v2557, %v2698
      %v2802 = vadd.f32 %v2558, %v2701
      %v2803 = vadd.f32 %v2559, %v2703
      %v2804 = vadd.f32 %v2560, %v2706
      %v2805 = vadd.f32 %v2561, %v2708
      %v2806 = vadd.f32 %v2562, %v2711
      %v2807 = vadd.f32 %v2563, %v2713
      %v2808 = vadd.f32 %v2564, %v2716
      %v2809 = vadd.f32 %v2565, %v2718
      %v2810 = vadd.f32 %v2566, %v2721
      %v2811 = vadd.f32 %v2567, %v2723
      %v2812 = vadd.f32 %v2568, %v2726
      %v2813 = vadd.f32 %v2569, %v2728
      %v2814 = vadd.f32 %v2570, %v2731
      %v2815 = vadd.f32 %v2571, %v2733
      %v2816 = vadd.f32 %v2572, %v2736
      %v2817 = vadd.f32 %v2573, %v2738
      %v2818 = vadd.f32 %v2574, %v2741
      %v2819 = vadd.f32 %v2575, %v2743
      %v2820 = vadd.f32 %v2576, %v2746
      %v2821 = vadd.f32 %v2577, %v2748
      %v2822 = vadd.f32 %v2578, %v2751
      %v2823 = vadd.f32 %v2579, %v2753
      %v2824 = vadd.f32 %v2580, %v2756
      %v2825 = vadd.f32 %v2581, %v2758
      %v2826 = vadd.f32 %v2582, %v2761
      %v2827 = vadd.f32 %v2583, %v2763
      %v2828 = vlaneseq
      %v2829 = vshrl.u32 %v2828, 7
      %v2830 = vsub.s32 0, %v2829
      %v2831 = vrot.slane %v1401, %v2830
      %v2832 = vmul.f32 %v1352, %v2831
      %v2833 = vmul.f32 %v1353, %v2831
      %v2834 = vmul.f32 %v1354, %v2831
      %v2835 = vmul.f32 %v1355, %v2831
      %v2836 = vmul.f32 %v1356, %v2831
      %v2837 = vmul.f32 %v1357, %v2831
      %v2838 = vmul.f32 %v1358, %v2831
      %v2839 = vmul.f32 %v1359, %v2831
      %v2840 = vmul.f32 %v1360, %v2831
      %v2841 = vmul.f32 %v1361, %v2831
      %v2842 = vmul.f32 %v1362, %v2831
      %v2843 = vmul.f32 %v1363, %v2831
      %v2844 = vmul.f32 %v1364, %v2831
      %v2845 = vmul.f32 %v1365, %v2831
      %v2846 = vmul.f32 %v1366, %v2831
      %v2847 = vmul.f32 %v1367, %v2831
      %v2848 = vmul.f32 %v1368, %v2831
      %v2849 = vmul.f32 %v1369, %v2831
      %v2850 = vmul.f32 %v1370, %v2831
      %v2851 = vmul.f32 %v1371, %v2831
      %v2852 = vmul.f32 %v1372, %v2831
      %v2853 = vmul.f32 %v1373, %v2831
      %v2854 = vmul.f32 %v1374, %v2831
      %v2855 = vmul.f32 %v1375, %v2831
      %v2856 = vmul.f32 %v1376, %v2831
      %v2857 = vmul.f32 %v1377, %v2831
      %v2858 = vmul.f32 %v1378, %v2831
      %v2859 = vmul.f32 %v1379, %v2831
      %v2860 = vmul.f32 %v1380, %v2831
      %v2861 = vmul.f32 %v1381, %v2831
      %v2862 = vmul.f32 %v1382, %v2831
      %v2863 = vmul.f32 %v1383, %v2831
      %v2864 = vmul.f32 %v1384, %v2831
      %v2865 = vmul.f32 %v1385, %v2831
      %v2866 = vmul.f32 %v1386, %v2831
      %v2867 = vmul.f32 %v1387, %v2831
      %v2868 = vmul.f32 %v1388, %v2831
      %v2869 = vmul.f32 %v1389, %v2831
      %v2870 = vmul.f32 %v1390, %v2831
      %v2871 = vmul.f32 %v1391, %v2831
      %v2872 = vmul.f32 %v1392, %v2831
      %v2873 = vmul.f32 %v1393, %v2831
      %v2874 = vmul.f32 %v1394, %v2831
      %v2875 = vmul.f32 %v1395, %v2831
      %v2876 = vmul.f32 %v1396, %v2831
      %v2877 = vmul.f32 %v1397, %v2831
      %v2878 = vmul.f32 %v1398, %v2831
      %v2879 = vmul.f32 %v1399, %v2831
      %v2928 = vrot.slane %v2832, 2
      %v2929 = vrot.slane %v2833, 2
      %v2930 = vsel %vm1815, %v2928, %v2929
      %v2931 = vrot.slane %v2834, 2
      %v2932 = vsel %vm1815, %v2929, %v2931
      %v2933 = vrot.slane %v2835, 2
      %v2934 = vrot.slane %v2836, 2
      %v2935 = vsel %vm1815, %v2933, %v2934
      %v2936 = vrot.slane %v2837, 2
      %v2937 = vsel %vm1815, %v2934, %v2936
      %v2938 = vrot.slane %v2838, 2
      %v2939 = vrot.slane %v2839, 2
      %v2940 = vsel %vm1815, %v2938, %v2939
      %v2941 = vrot.slane %v2840, 2
      %v2942 = vsel %vm1815, %v2939, %v2941
      %v2943 = vrot.slane %v2841, 2
      %v2944 = vrot.slane %v2842, 2
      %v2945 = vsel %vm1815, %v2943, %v2944
      %v2946 = vrot.slane %v2843, 2
      %v2947 = vsel %vm1815, %v2944, %v2946
      %v2948 = vrot.slane %v2844, 2
      %v2949 = vrot.slane %v2845, 2
      %v2950 = vsel %vm1815, %v2948, %v2949
      %v2951 = vrot.slane %v2846, 2
      %v2952 = vsel %vm1815, %v2949, %v2951
      %v2953 = vrot.slane %v2847, 2
      %v2954 = vrot.slane %v2848, 2
      %v2955 = vsel %vm1815, %v2953, %v2954
      %v2956 = vrot.slane %v2849, 2
      %v2957 = vsel %vm1815, %v2954, %v2956
      %v2958 = vrot.slane %v2850, 2
      %v2959 = vrot.slane %v2851, 2
      %v2960 = vsel %vm1815, %v2958, %v2959
      %v2961 = vrot.slane %v2852, 2
      %v2962 = vsel %vm1815, %v2959, %v2961
      %v2963 = vrot.slane %v2853, 2
      %v2964 = vrot.slane %v2854, 2
      %v2965 = vsel %vm1815, %v2963, %v2964
      %v2966 = vrot.slane %v2855, 2
      %v2967 = vsel %vm1815, %v2964, %v2966
      %v2968 = vrot.slane %v2856, 2
      %v2969 = vrot.slane %v2857, 2
      %v2970 = vsel %vm1815, %v2968, %v2969
      %v2971 = vrot.slane %v2858, 2
      %v2972 = vsel %vm1815, %v2969, %v2971
      %v2973 = vrot.slane %v2859, 2
      %v2974 = vrot.slane %v2860, 2
      %v2975 = vsel %vm1815, %v2973, %v2974
      %v2976 = vrot.slane %v2861, 2
      %v2977 = vsel %vm1815, %v2974, %v2976
      %v2978 = vrot.slane %v2862, 2
      %v2979 = vrot.slane %v2863, 2
      %v2980 = vsel %vm1815, %v2978, %v2979
      %v2981 = vrot.slane %v2864, 2
      %v2982 = vsel %vm1815, %v2979, %v2981
      %v2983 = vrot.slane %v2865, 2
      %v2984 = vrot.slane %v2866, 2
      %v2985 = vsel %vm1815, %v2983, %v2984
      %v2986 = vrot.slane %v2867, 2
      %v2987 = vsel %vm1815, %v2984, %v2986
      %v2988 = vrot.slane %v2868, 2
      %v2989 = vrot.slane %v2869, 2
      %v2990 = vsel %vm1815, %v2988, %v2989
      %v2991 = vrot.slane %v2870, 2
      %v2992 = vsel %vm1815, %v2989, %v2991
      %v2993 = vrot.slane %v2871, 2
      %v2994 = vrot.slane %v2872, 2
      %v2995 = vsel %vm1815, %v2993, %v2994
      %v2996 = vrot.slane %v2873, 2
      %v2997 = vsel %vm1815, %v2994, %v2996
      %v2998 = vrot.slane %v2874, 2
      %v2999 = vrot.slane %v2875, 2
      %v3000 = vsel %vm1815, %v2998, %v2999
      %v3001 = vrot.slane %v2876, 2
      %v3002 = vsel %vm1815, %v2999, %v3001
      %v3003 = vrot.slane %v2877, 2
      %v3004 = vrot.slane %v2878, 2
      %v3005 = vsel %vm1815, %v3003, %v3004
      %v3006 = vrot.slane %v2879, 2
      %v3007 = vsel %vm1815, %v3004, %v3006
      %v3040 = vadd.f32 %v2796, %v2930
      %v3041 = vadd.f32 %v2797, %v2932
      %v3042 = vadd.f32 %v2798, %v2935
      %v3043 = vadd.f32 %v2799, %v2937
      %v3044 = vadd.f32 %v2800, %v2940
      %v3045 = vadd.f32 %v2801, %v2942
      %v3046 = vadd.f32 %v2802, %v2945
      %v3047 = vadd.f32 %v2803, %v2947
      %v3048 = vadd.f32 %v2804, %v2950
      %v3049 = vadd.f32 %v2805, %v2952
      %v3050 = vadd.f32 %v2806, %v2955
      %v3051 = vadd.f32 %v2807, %v2957
      %v3052 = vadd.f32 %v2808, %v2960
      %v3053 = vadd.f32 %v2809, %v2962
      %v3054 = vadd.f32 %v2810, %v2965
      %v3055 = vadd.f32 %v2811, %v2967
      %v3056 = vadd.f32 %v2812, %v2970
      %v3057 = vadd.f32 %v2813, %v2972
      %v3058 = vadd.f32 %v2814, %v2975
      %v3059 = vadd.f32 %v2815, %v2977
      %v3060 = vadd.f32 %v2816, %v2980
      %v3061 = vadd.f32 %v2817, %v2982
      %v3062 = vadd.f32 %v2818, %v2985
      %v3063 = vadd.f32 %v2819, %v2987
      %v3064 = vadd.f32 %v2820, %v2990
      %v3065 = vadd.f32 %v2821, %v2992
      %v3066 = vadd.f32 %v2822, %v2995
      %v3067 = vadd.f32 %v2823, %v2997
      %v3068 = vadd.f32 %v2824, %v3000
      %v3069 = vadd.f32 %v2825, %v3002
      %v3070 = vadd.f32 %v2826, %v3005
      %v3071 = vadd.f32 %v2827, %v3007
      %v3072 = vld [vmem:[%s5] sm:$0x1]
      %v3074 = vlaneseq
      %v3075 = vshrl.u32 %v3074, 7
      %v3076 = vsub.s32 0, %v3075
      %v3077 = vrot.slane %v3072, %v3076
      %v3079 = vmul.f32 %v3040, %v3077
      %v3080 = vmul.f32 %v3041, %v3077
      %v3081 = vmul.f32 %v3042, %v3077
      %v3082 = vmul.f32 %v3043, %v3077
      %v3083 = vmul.f32 %v3044, %v3077
      %v3084 = vmul.f32 %v3045, %v3077
      %v3085 = vmul.f32 %v3046, %v3077
      %v3086 = vmul.f32 %v3047, %v3077
      %v3087 = vmul.f32 %v3048, %v3077
      %v3088 = vmul.f32 %v3049, %v3077
      %v3089 = vmul.f32 %v3050, %v3077
      %v3090 = vmul.f32 %v3051, %v3077
      %v3091 = vmul.f32 %v3052, %v3077
      %v3092 = vmul.f32 %v3053, %v3077
      %v3093 = vmul.f32 %v3054, %v3077
      %v3094 = vmul.f32 %v3055, %v3077
      %v3095 = vmul.f32 %v3056, %v3077
      %v3096 = vmul.f32 %v3057, %v3077
      %v3097 = vmul.f32 %v3058, %v3077
      %v3098 = vmul.f32 %v3059, %v3077
      %v3099 = vmul.f32 %v3060, %v3077
      %v3100 = vmul.f32 %v3061, %v3077
      %v3101 = vmul.f32 %v3062, %v3077
      %v3102 = vmul.f32 %v3063, %v3077
      %v3103 = vmul.f32 %v3064, %v3077
      %v3104 = vmul.f32 %v3065, %v3077
      %v3105 = vmul.f32 %v3066, %v3077
      %v3106 = vmul.f32 %v3067, %v3077
      %v3107 = vmul.f32 %v3068, %v3077
      %v3108 = vmul.f32 %v3069, %v3077
      %v3109 = vmul.f32 %v3070, %v3077
      %v3110 = vmul.f32 %v3071, %v3077
      %v3111 = vld [vmem:[%s6] sm:$0x1]
      %v3113 = vlaneseq
      %v3114 = vshrl.u32 %v3113, 7
      %v3115 = vsub.s32 0, %v3114
      %v3116 = vrot.slane %v3111, %v3115
      %v3118 = vadd.f32 %v3079, %v3116
      %v3119 = vadd.f32 %v3080, %v3116
      %v3120 = vadd.f32 %v3081, %v3116
      %v3121 = vadd.f32 %v3082, %v3116
      %v3122 = vadd.f32 %v3083, %v3116
      %v3123 = vadd.f32 %v3084, %v3116
      %v3124 = vadd.f32 %v3085, %v3116
      %v3125 = vadd.f32 %v3086, %v3116
      %v3126 = vadd.f32 %v3087, %v3116
      %v3127 = vadd.f32 %v3088, %v3116
      %v3128 = vadd.f32 %v3089, %v3116
      %v3129 = vadd.f32 %v3090, %v3116
      %v3130 = vadd.f32 %v3091, %v3116
      %v3131 = vadd.f32 %v3092, %v3116
      %v3132 = vadd.f32 %v3093, %v3116
      %v3133 = vadd.f32 %v3094, %v3116
      %v3134 = vadd.f32 %v3095, %v3116
      %v3135 = vadd.f32 %v3096, %v3116
      %v3136 = vadd.f32 %v3097, %v3116
      %v3137 = vadd.f32 %v3098, %v3116
      %v3138 = vadd.f32 %v3099, %v3116
      %v3139 = vadd.f32 %v3100, %v3116
      %v3140 = vadd.f32 %v3101, %v3116
      %v3141 = vadd.f32 %v3102, %v3116
      %v3142 = vadd.f32 %v3103, %v3116
      %v3143 = vadd.f32 %v3104, %v3116
      %v3144 = vadd.f32 %v3105, %v3116
      %v3145 = vadd.f32 %v3106, %v3116
      %v3146 = vadd.f32 %v3107, %v3116
      %v3147 = vadd.f32 %v3108, %v3116
      %v3148 = vadd.f32 %v3109, %v3116
      %v3149 = vadd.f32 %v3110, %v3116
      %v3150 = vmax.f32 %v3118, 0.0
      %v3151 = vmax.f32 %v3119, 0.0
      %v3152 = vmax.f32 %v3120, 0.0
      %v3153 = vmax.f32 %v3121, 0.0
      %v3154 = vmax.f32 %v3122, 0.0
      %v3155 = vmax.f32 %v3123, 0.0
      %v3156 = vmax.f32 %v3124, 0.0
      %v3157 = vmax.f32 %v3125, 0.0
      %v3158 = vmax.f32 %v3126, 0.0
      %v3159 = vmax.f32 %v3127, 0.0
      %v3160 = vmax.f32 %v3128, 0.0
      %v3161 = vmax.f32 %v3129, 0.0
      %v3162 = vmax.f32 %v3130, 0.0
      %v3163 = vmax.f32 %v3131, 0.0
      %v3164 = vmax.f32 %v3132, 0.0
      %v3165 = vmax.f32 %v3133, 0.0
      %v3166 = vmax.f32 %v3134, 0.0
      %v3167 = vmax.f32 %v3135, 0.0
      %v3168 = vmax.f32 %v3136, 0.0
      %v3169 = vmax.f32 %v3137, 0.0
      %v3170 = vmax.f32 %v3138, 0.0
      %v3171 = vmax.f32 %v3139, 0.0
      %v3172 = vmax.f32 %v3140, 0.0
      %v3173 = vmax.f32 %v3141, 0.0
      %v3174 = vmax.f32 %v3142, 0.0
      %v3175 = vmax.f32 %v3143, 0.0
      %v3176 = vmax.f32 %v3144, 0.0
      %v3177 = vmax.f32 %v3145, 0.0
      %v3178 = vmax.f32 %v3146, 0.0
      %v3179 = vmax.f32 %v3147, 0.0
      %v3180 = vmax.f32 %v3148, 0.0
      %v3181 = vmax.f32 %v3149, 0.0
      %v3182 = vand.u32 2147483647, %v3118
      %v3183 = vand.u32 2147483647, %v3119
      %v3184 = vand.u32 2147483647, %v3120
      %v3185 = vand.u32 2147483647, %v3121
      %v3186 = vand.u32 2147483647, %v3122
      %v3187 = vand.u32 2147483647, %v3123
      %v3188 = vand.u32 2147483647, %v3124
      %v3189 = vand.u32 2147483647, %v3125
      %v3190 = vand.u32 2147483647, %v3126
      %v3191 = vand.u32 2147483647, %v3127
      %v3192 = vand.u32 2147483647, %v3128
      %v3193 = vand.u32 2147483647, %v3129
      %v3194 = vand.u32 2147483647, %v3130
      %v3195 = vand.u32 2147483647, %v3131
      %v3196 = vand.u32 2147483647, %v3132
      %v3197 = vand.u32 2147483647, %v3133
      %v3198 = vand.u32 2147483647, %v3134
      %v3199 = vand.u32 2147483647, %v3135
      %v3200 = vand.u32 2147483647, %v3136
      %v3201 = vand.u32 2147483647, %v3137
      %v3202 = vand.u32 2147483647, %v3138
      %v3203 = vand.u32 2147483647, %v3139
      %v3204 = vand.u32 2147483647, %v3140
      %v3205 = vand.u32 2147483647, %v3141
      %v3206 = vand.u32 2147483647, %v3142
      %v3207 = vand.u32 2147483647, %v3143
      %v3208 = vand.u32 2147483647, %v3144
      %v3209 = vand.u32 2147483647, %v3145
      %v3210 = vand.u32 2147483647, %v3146
      %v3211 = vand.u32 2147483647, %v3147
      %v3212 = vand.u32 2147483647, %v3148
      %v3213 = vand.u32 2147483647, %v3149
      %v3214 = vsub.f32 0.0, %v3182
      %v3215 = vsub.f32 0.0, %v3183
      %v3216 = vsub.f32 0.0, %v3184
      %v3217 = vsub.f32 0.0, %v3185
      %v3218 = vsub.f32 0.0, %v3186
      %v3219 = vsub.f32 0.0, %v3187
      %v3220 = vsub.f32 0.0, %v3188
      %v3221 = vsub.f32 0.0, %v3189
      %v3222 = vsub.f32 0.0, %v3190
      %v3223 = vsub.f32 0.0, %v3191
      %v3224 = vsub.f32 0.0, %v3192
      %v3225 = vsub.f32 0.0, %v3193
      %v3226 = vsub.f32 0.0, %v3194
      %v3227 = vsub.f32 0.0, %v3195
      %v3228 = vsub.f32 0.0, %v3196
      %v3229 = vsub.f32 0.0, %v3197
      %v3230 = vsub.f32 0.0, %v3198
      %v3231 = vsub.f32 0.0, %v3199
      %v3232 = vsub.f32 0.0, %v3200
      %v3233 = vsub.f32 0.0, %v3201
      %v3234 = vsub.f32 0.0, %v3202
      %v3235 = vsub.f32 0.0, %v3203
      %v3236 = vsub.f32 0.0, %v3204
      %v3237 = vsub.f32 0.0, %v3205
      %v3238 = vsub.f32 0.0, %v3206
      %v3239 = vsub.f32 0.0, %v3207
      %v3240 = vsub.f32 0.0, %v3208
      %v3241 = vsub.f32 0.0, %v3209
      %v3242 = vsub.f32 0.0, %v3210
      %v3243 = vsub.f32 0.0, %v3211
      %v3244 = vsub.f32 0.0, %v3212
      %v3245 = vsub.f32 0.0, %v3213
      %v3246 = vmul.f32 %v3214, 1.442695
      %v3247 = vpow.pop %v3246
      %v3248 = vmul.f32 %v3215, 1.442695
      %v3249 = vpow.pop %v3248
      %v3250 = vmul.f32 %v3216, 1.442695
      %v3251 = vpow.pop %v3250
      %v3252 = vmul.f32 %v3217, 1.442695
      %v3253 = vpow.pop %v3252
      %v3254 = vmul.f32 %v3218, 1.442695
      %v3255 = vpow.pop %v3254
      %v3256 = vmul.f32 %v3219, 1.442695
      %v3257 = vpow.pop %v3256
      %v3258 = vmul.f32 %v3220, 1.442695
      %v3259 = vpow.pop %v3258
      %v3260 = vmul.f32 %v3221, 1.442695
      %v3261 = vpow.pop %v3260
      %v3262 = vmul.f32 %v3222, 1.442695
      %v3263 = vpow.pop %v3262
      %v3264 = vmul.f32 %v3223, 1.442695
      %v3265 = vpow.pop %v3264
      %v3266 = vmul.f32 %v3224, 1.442695
      %v3267 = vpow.pop %v3266
      %v3268 = vmul.f32 %v3225, 1.442695
      %v3269 = vpow.pop %v3268
      %v3270 = vmul.f32 %v3226, 1.442695
      %v3271 = vpow.pop %v3270
      %v3272 = vmul.f32 %v3227, 1.442695
      %v3273 = vpow.pop %v3272
      %v3274 = vmul.f32 %v3228, 1.442695
      %v3275 = vpow.pop %v3274
      %v3276 = vmul.f32 %v3229, 1.442695
      %v3277 = vpow.pop %v3276
      %v3278 = vmul.f32 %v3230, 1.442695
      %v3279 = vpow.pop %v3278
      %v3280 = vmul.f32 %v3231, 1.442695
      %v3281 = vpow.pop %v3280
      %v3282 = vmul.f32 %v3232, 1.442695
      %v3283 = vpow.pop %v3282
      %v3284 = vmul.f32 %v3233, 1.442695
      %v3285 = vpow.pop %v3284
      %v3286 = vmul.f32 %v3234, 1.442695
      %v3287 = vpow.pop %v3286
      %v3288 = vmul.f32 %v3235, 1.442695
      %v3289 = vpow.pop %v3288
      %v3290 = vmul.f32 %v3236, 1.442695
      %v3291 = vpow.pop %v3290
      %v3292 = vmul.f32 %v3237, 1.442695
      %v3293 = vpow.pop %v3292
      %v3294 = vmul.f32 %v3238, 1.442695
      %v3295 = vpow.pop %v3294
      %v3296 = vmul.f32 %v3239, 1.442695
      %v3297 = vpow.pop %v3296
      %v3298 = vmul.f32 %v3240, 1.442695
      %v3299 = vpow.pop %v3298
      %v3300 = vmul.f32 %v3241, 1.442695
      %v3301 = vpow.pop %v3300
      %v3302 = vmul.f32 %v3242, 1.442695
      %v3303 = vpow.pop %v3302
      %v3304 = vmul.f32 %v3243, 1.442695
      %v3305 = vpow.pop %v3304
      %v3306 = vmul.f32 %v3244, 1.442695
      %v3307 = vpow.pop %v3306
      %v3308 = vmul.f32 %v3245, 1.442695
      %v3309 = vpow.pop %v3308
      %v3310 = vadd.f32 %v3247, 1.0
      %v3311 = vadd.f32 %v3249, 1.0
      %v3312 = vadd.f32 %v3251, 1.0
      %v3313 = vadd.f32 %v3253, 1.0
      %v3314 = vadd.f32 %v3255, 1.0
      %v3315 = vadd.f32 %v3257, 1.0
      %v3316 = vadd.f32 %v3259, 1.0
      %v3317 = vadd.f32 %v3261, 1.0
      %v3318 = vadd.f32 %v3263, 1.0
      %v3319 = vadd.f32 %v3265, 1.0
      %v3320 = vadd.f32 %v3267, 1.0
      %v3321 = vadd.f32 %v3269, 1.0
      %v3322 = vadd.f32 %v3271, 1.0
      %v3323 = vadd.f32 %v3273, 1.0
      %v3324 = vadd.f32 %v3275, 1.0
      %v3325 = vadd.f32 %v3277, 1.0
      %v3326 = vadd.f32 %v3279, 1.0
      %v3327 = vadd.f32 %v3281, 1.0
      %v3328 = vadd.f32 %v3283, 1.0
      %v3329 = vadd.f32 %v3285, 1.0
      %v3330 = vadd.f32 %v3287, 1.0
      %v3331 = vadd.f32 %v3289, 1.0
      %v3332 = vadd.f32 %v3291, 1.0
      %v3333 = vadd.f32 %v3293, 1.0
      %v3334 = vadd.f32 %v3295, 1.0
      %v3335 = vadd.f32 %v3297, 1.0
      %v3336 = vadd.f32 %v3299, 1.0
      %v3337 = vadd.f32 %v3301, 1.0
      %v3338 = vadd.f32 %v3303, 1.0
      %v3339 = vadd.f32 %v3305, 1.0
      %v3340 = vadd.f32 %v3307, 1.0
      %v3341 = vadd.f32 %v3309, 1.0
      %v3342 = vlog2.pop %v3310
      %v3343 = vmul.f32 %v3342, 0.6931472
      %v3344 = vlog2.pop %v3311
      %v3345 = vmul.f32 %v3344, 0.6931472
      %v3346 = vlog2.pop %v3312
      %v3347 = vmul.f32 %v3346, 0.6931472
      %v3348 = vlog2.pop %v3313
      %v3349 = vmul.f32 %v3348, 0.6931472
      %v3350 = vlog2.pop %v3314
      %v3351 = vmul.f32 %v3350, 0.6931472
      %v3352 = vlog2.pop %v3315
      %v3353 = vmul.f32 %v3352, 0.6931472
      %v3354 = vlog2.pop %v3316
      %v3355 = vmul.f32 %v3354, 0.6931472
      %v3356 = vlog2.pop %v3317
      %v3357 = vmul.f32 %v3356, 0.6931472
      %v3358 = vlog2.pop %v3318
      %v3359 = vmul.f32 %v3358, 0.6931472
      %v3360 = vlog2.pop %v3319
      %v3361 = vmul.f32 %v3360, 0.6931472
      %v3362 = vlog2.pop %v3320
      %v3363 = vmul.f32 %v3362, 0.6931472
      %v3364 = vlog2.pop %v3321
      %v3365 = vmul.f32 %v3364, 0.6931472
      %v3366 = vlog2.pop %v3322
      %v3367 = vmul.f32 %v3366, 0.6931472
      %v3368 = vlog2.pop %v3323
      %v3369 = vmul.f32 %v3368, 0.6931472
      %v3370 = vlog2.pop %v3324
      %v3371 = vmul.f32 %v3370, 0.6931472
      %v3372 = vlog2.pop %v3325
      %v3373 = vmul.f32 %v3372, 0.6931472
      %v3374 = vlog2.pop %v3326
      %v3375 = vmul.f32 %v3374, 0.6931472
      %v3376 = vlog2.pop %v3327
      %v3377 = vmul.f32 %v3376, 0.6931472
      %v3378 = vlog2.pop %v3328
      %v3379 = vmul.f32 %v3378, 0.6931472
      %v3380 = vlog2.pop %v3329
      %v3381 = vmul.f32 %v3380, 0.6931472
      %v3382 = vlog2.pop %v3330
      %v3383 = vmul.f32 %v3382, 0.6931472
      %v3384 = vlog2.pop %v3331
      %v3385 = vmul.f32 %v3384, 0.6931472
      %v3386 = vlog2.pop %v3332
      %v3387 = vmul.f32 %v3386, 0.6931472
      %v3388 = vlog2.pop %v3333
      %v3389 = vmul.f32 %v3388, 0.6931472
      %v3390 = vlog2.pop %v3334
      %v3391 = vmul.f32 %v3390, 0.6931472
      %v3392 = vlog2.pop %v3335
      %v3393 = vmul.f32 %v3392, 0.6931472
      %v3394 = vlog2.pop %v3336
      %v3395 = vmul.f32 %v3394, 0.6931472
      %v3396 = vlog2.pop %v3337
      %v3397 = vmul.f32 %v3396, 0.6931472
      %v3398 = vlog2.pop %v3338
      %v3399 = vmul.f32 %v3398, 0.6931472
      %v3400 = vlog2.pop %v3339
      %v3401 = vmul.f32 %v3400, 0.6931472
      %v3402 = vlog2.pop %v3340
      %v3403 = vmul.f32 %v3402, 0.6931472
      %v3404 = vlog2.pop %v3341
      %v3405 = vmul.f32 %v3404, 0.6931472
      %v3406 = vadd.f32 %v3150, %v3343
      %v3407 = vadd.f32 %v3151, %v3345
      %v3408 = vadd.f32 %v3152, %v3347
      %v3409 = vadd.f32 %v3153, %v3349
      %v3410 = vadd.f32 %v3154, %v3351
      %v3411 = vadd.f32 %v3155, %v3353
      %v3412 = vadd.f32 %v3156, %v3355
      %v3413 = vadd.f32 %v3157, %v3357
      %v3414 = vadd.f32 %v3158, %v3359
      %v3415 = vadd.f32 %v3159, %v3361
      %v3416 = vadd.f32 %v3160, %v3363
      %v3417 = vadd.f32 %v3161, %v3365
      %v3418 = vadd.f32 %v3162, %v3367
      %v3419 = vadd.f32 %v3163, %v3369
      %v3420 = vadd.f32 %v3164, %v3371
      %v3421 = vadd.f32 %v3165, %v3373
      %v3422 = vadd.f32 %v3166, %v3375
      %v3423 = vadd.f32 %v3167, %v3377
      %v3424 = vadd.f32 %v3168, %v3379
      %v3425 = vadd.f32 %v3169, %v3381
      %v3426 = vadd.f32 %v3170, %v3383
      %v3427 = vadd.f32 %v3171, %v3385
      %v3428 = vadd.f32 %v3172, %v3387
      %v3429 = vadd.f32 %v3173, %v3389
      %v3430 = vadd.f32 %v3174, %v3391
      %v3431 = vadd.f32 %v3175, %v3393
      %v3432 = vadd.f32 %v3176, %v3395
      %v3433 = vadd.f32 %v3177, %v3397
      %v3434 = vadd.f32 %v3178, %v3399
      %v3435 = vadd.f32 %v3179, %v3401
      %v3436 = vadd.f32 %v3180, %v3403
      %v3437 = vadd.f32 %v3181, %v3405
      %v3438 = vtanh.pop %v3406
      %v3439 = vtanh.pop %v3407
      %v3440 = vtanh.pop %v3408
      %v3441 = vtanh.pop %v3409
      %v3442 = vtanh.pop %v3410
      %v3443 = vtanh.pop %v3411
      %v3444 = vtanh.pop %v3412
      %v3445 = vtanh.pop %v3413
      %v3446 = vtanh.pop %v3414
      %v3447 = vtanh.pop %v3415
      %v3448 = vtanh.pop %v3416
      %v3449 = vtanh.pop %v3417
      %v3450 = vtanh.pop %v3418
      %v3451 = vtanh.pop %v3419
      %v3452 = vtanh.pop %v3420
      %v3453 = vtanh.pop %v3421
      %v3454 = vtanh.pop %v3422
      %v3455 = vtanh.pop %v3423
      %v3456 = vtanh.pop %v3424
      %v3457 = vtanh.pop %v3425
      %v3458 = vtanh.pop %v3426
      %v3459 = vtanh.pop %v3427
      %v3460 = vtanh.pop %v3428
      %v3461 = vtanh.pop %v3429
      %v3462 = vtanh.pop %v3430
      %v3463 = vtanh.pop %v3431
      %v3464 = vtanh.pop %v3432
      %v3465 = vtanh.pop %v3433
      %v3466 = vtanh.pop %v3434
      %v3467 = vtanh.pop %v3435
      %v3468 = vtanh.pop %v3436
      %v3469 = vtanh.pop %v3437
      %v3470 = vmul.f32 %v3118, %v3438
      %v3471 = vmul.f32 %v3119, %v3439
      %v3472 = vmul.f32 %v3120, %v3440
      %v3473 = vmul.f32 %v3121, %v3441
      %v3474 = vmul.f32 %v3122, %v3442
      %v3475 = vmul.f32 %v3123, %v3443
      %v3476 = vmul.f32 %v3124, %v3444
      %v3477 = vmul.f32 %v3125, %v3445
      %v3478 = vmul.f32 %v3126, %v3446
      %v3479 = vmul.f32 %v3127, %v3447
      %v3480 = vmul.f32 %v3128, %v3448
      %v3481 = vmul.f32 %v3129, %v3449
      %v3482 = vmul.f32 %v3130, %v3450
      %v3483 = vmul.f32 %v3131, %v3451
      %v3484 = vmul.f32 %v3132, %v3452
      %v3485 = vmul.f32 %v3133, %v3453
      %v3486 = vmul.f32 %v3134, %v3454
      %v3487 = vmul.f32 %v3135, %v3455
      %v3488 = vmul.f32 %v3136, %v3456
      %v3489 = vmul.f32 %v3137, %v3457
      %v3490 = vmul.f32 %v3138, %v3458
      %v3491 = vmul.f32 %v3139, %v3459
      %v3492 = vmul.f32 %v3140, %v3460
      %v3493 = vmul.f32 %v3141, %v3461
      %v3494 = vmul.f32 %v3142, %v3462
      %v3495 = vmul.f32 %v3143, %v3463
      %v3496 = vmul.f32 %v3144, %v3464
      %v3497 = vmul.f32 %v3145, %v3465
      %v3498 = vmul.f32 %v3146, %v3466
      %v3499 = vmul.f32 %v3147, %v3467
      %v3500 = vmul.f32 %v3148, %v3468
      %v3501 = vmul.f32 %v3149, %v3469
      %v3502 = vsel %vm1257, %v3470, 0.0
      %v3503 = vsel %vm1257, %v3472, 0.0
      %v3504 = vadd.f32 %v3502, %v3503
      %v3505 = vsel %vm1257, %v3474, 0.0
      %v3506 = vadd.f32 %v3504, %v3505
      %v3507 = vsel %vm1257, %v3476, 0.0
      %v3508 = vadd.f32 %v3506, %v3507
      %v3509 = vsel %vm1257, %v3478, 0.0
      %v3510 = vadd.f32 %v3508, %v3509
      %v3511 = vsel %vm1257, %v3480, 0.0
      %v3512 = vadd.f32 %v3510, %v3511
      %v3513 = vsel %vm1257, %v3482, 0.0
      %v3514 = vadd.f32 %v3512, %v3513
      %v3515 = vsel %vm1257, %v3484, 0.0
      %v3516 = vadd.f32 %v3514, %v3515
      %v3517 = vsel %vm1257, %v3486, 0.0
      %v3518 = vadd.f32 %v3516, %v3517
      %v3519 = vsel %vm1257, %v3488, 0.0
      %v3520 = vadd.f32 %v3518, %v3519
      %v3521 = vsel %vm1257, %v3490, 0.0
      %v3522 = vadd.f32 %v3520, %v3521
      %v3523 = vsel %vm1257, %v3492, 0.0
      %v3524 = vadd.f32 %v3522, %v3523
      %v3525 = vsel %vm1257, %v3494, 0.0
      %v3526 = vadd.f32 %v3524, %v3525
      %v3527 = vsel %vm1257, %v3496, 0.0
      %v3528 = vadd.f32 %v3526, %v3527
      %v3529 = vsel %vm1257, %v3498, 0.0
      %v3530 = vadd.f32 %v3528, %v3529
      %v3531 = vsel %vm1257, %v3500, 0.0
      %v3532 = vadd.f32 %v3530, %v3531
      %v3533 = vsel %vm1257, %v3471, 0.0
      %v3534 = vsel %vm1257, %v3473, 0.0
      %v3535 = vadd.f32 %v3533, %v3534
      %v3536 = vsel %vm1257, %v3475, 0.0
      %v3537 = vadd.f32 %v3535, %v3536
      %v3538 = vsel %vm1257, %v3477, 0.0
      %v3539 = vadd.f32 %v3537, %v3538
      %v3540 = vsel %vm1257, %v3479, 0.0
      %v3541 = vadd.f32 %v3539, %v3540
      %v3542 = vsel %vm1257, %v3481, 0.0
      %v3543 = vadd.f32 %v3541, %v3542
      %v3544 = vsel %vm1257, %v3483, 0.0
      %v3545 = vadd.f32 %v3543, %v3544
      %v3546 = vsel %vm1257, %v3485, 0.0
      %v3547 = vadd.f32 %v3545, %v3546
      %v3548 = vsel %vm1257, %v3487, 0.0
      %v3549 = vadd.f32 %v3547, %v3548
      %v3550 = vsel %vm1257, %v3489, 0.0
      %v3551 = vadd.f32 %v3549, %v3550
      %v3552 = vsel %vm1257, %v3491, 0.0
      %v3553 = vadd.f32 %v3551, %v3552
      %v3554 = vsel %vm1257, %v3493, 0.0
      %v3555 = vadd.f32 %v3553, %v3554
      %v3556 = vsel %vm1257, %v3495, 0.0
      %v3557 = vadd.f32 %v3555, %v3556
      %v3558 = vsel %vm1257, %v3497, 0.0
      %v3559 = vadd.f32 %v3557, %v3558
      %v3560 = vsel %vm1257, %v3499, 0.0
      %v3561 = vadd.f32 %v3559, %v3560
      %v3562 = vsel %vm1257, %v3501, 0.0
      %v3563 = vadd.f32 %v3561, %v3562
      %v3564 = vsel %vm1257, %v3532, 0.0
      %v3565 = vsel %vm1257, %v3563, 0.0
      %v3566 = vadd.f32 %v3564, %v3565
      %v3567 = vrot.slane %v3566, 4
      %v3568 = vadd.f32 %v3566, %v3567
      %v3569 = vrot.slane %v3568, 2
      %v3570 = vadd.f32 %v3568, %v3569
      %v3571 = vrot.slane %v3570, 1
      %v3572 = vadd.f32 %v3570, %v3571
      %v3573 = vmul.f32 %v3572, 0.00390625
      %v3574 = vld [vmem:[%s7] sm:$0xff]
      %v3575 = vld [vmem:[%s7 + $0x8] sm:$0xff]
      %v3576 = vld [vmem:[%s8] sm:$0x1]
      %v3578 = vsel %vm1257, %v3573, 0
      %3580 = vmatprep.subr.mxu0 0.0
      %3581 = vmatpush1.msra.mxu0 %v3574
      %3582 = vmatprep.subr.mxu0 0.0
      %3583 = vmatpush1.msra.mxu0 %v3575
      %3584 = vmatprep.subr.mxu0 0.0
      %3585 = vmatpush1.msra.mxu0 0.0
      %3586 = vmatprep.subr.mxu0 0.0
      %3587 = vmatpush1.msra.mxu0 0.0
      %3588 = vmatprep.subr.mxu0 0.0
      %3589 = vmatpush1.msra.mxu0 0.0
      %3590 = vmatprep.subr.mxu0 0.0
      %3591 = vmatpush1.msra.mxu0 0.0
      %3592 = vmatprep.subr.mxu0 0.0
      %3593 = vmatpush1.msra.mxu0 0.0
      %3594 = vmatprep.subr.mxu0 0.0
      %3595 = vmatpush1.msra.mxu0 0.0
      %3596 = vmatprep.subr.mxu0 0.0
      %3597 = vmatpush1.msra.mxu0 0.0
      %3598 = vmatprep.subr.mxu0 0.0
      %3599 = vmatpush1.msra.mxu0 0.0
      %3600 = vmatprep.subr.mxu0 0.0
      %3601 = vmatpush1.msra.mxu0 0.0
      %3602 = vmatprep.subr.mxu0 0.0
      %3603 = vmatpush1.msra.mxu0 0.0
      %3604 = vmatprep.subr.mxu0 0.0
      %3605 = vmatpush1.msra.mxu0 0.0
      %3606 = vmatprep.subr.mxu0 0.0
      %3607 = vmatpush1.msra.mxu0 0.0
      %3608 = vmatprep.subr.mxu0 0.0
      %3609 = vmatpush1.msra.mxu0 0.0
      %3610 = vmatprep.subr.mxu0 0.0
      %3611 = vmatpush1.msra.mxu0 0.0
      %3612 = vmatprep.subr.mxu0 0.0
      %3613 = vmatpush1.msra.mxu0 0.0
      %3614 = vmatprep.subr.mxu0 0.0
      %3615 = vmatpush1.msra.mxu0 0.0
      %3616 = vmatprep.subr.mxu0 0.0
      %3617 = vmatpush1.msra.mxu0 0.0
      %3618 = vmatprep.subr.mxu0 0.0
      %3619 = vmatpush1.msra.mxu0 0.0
      %3620 = vmatprep.subr.mxu0 0.0
      %3621 = vmatpush1.msra.mxu0 0.0
      %3622 = vmatprep.subr.mxu0 0.0
      %3623 = vmatpush1.msra.mxu0 0.0
      %3624 = vmatprep.subr.mxu0 0.0
      %3625 = vmatpush1.msra.mxu0 0.0
      %3626 = vmatprep.subr.mxu0 0.0
      %3627 = vmatpush1.msra.mxu0 0.0
      %3628 = vmatprep.subr.mxu0 0.0
      %3629 = vmatpush1.msra.mxu0 0.0
      %3630 = vmatprep.subr.mxu0 0.0
      %3631 = vmatpush1.msra.mxu0 0.0
      %3632 = vmatprep.subr.mxu0 0.0
      %3633 = vmatpush1.msra.mxu0 0.0
      %3634 = vmatprep.subr.mxu0 0.0
      %3635 = vmatpush1.msra.mxu0 0.0
      %3636 = vmatprep.subr.mxu0 0.0
      %3637 = vmatpush1.msra.mxu0 0.0
      %3638 = vmatprep.subr.mxu0 0.0
      %3639 = vmatpush1.msra.mxu0 0.0
      %3640 = vmatprep.subr.mxu0 0.0
      %3641 = vmatpush1.msra.mxu0 0.0
      %3642 = vmatprep.subr.mxu0 0.0
      %3643 = vmatpush1.msra.mxu0 0.0
      %3644 = vmatprep.mubr.f32.mxu0 0.0
      %3645 = vmatmul.mubr.f32.gmra.mrb[0].mxu0 %v3578
      %v3646 = vpop.f32.mrb[0].mxu0
      %v3647 = vadd.f32 %v3576, %v3646
      %v3648 = vpop.f32.mrb[0].mxu0
      %3649 = vdwg.mxu0
      %v3650 = vmax.f32 %v3647, 0.0
      %v3651 = vld [vmem:[%s9] sm:$0xf]
      %v3652 = vld [vmem:[%s10] sm:$0x1]
      %v3654 = vsel %vm501, %v3650, 0
      %v3657 = vsel %vm598, %v3651, 0
      %3659 = vmatprep.subr.mxu0 0.0
      %3660 = vmatpush1.msra.mxu0 %v3657
      %3661 = vmatprep.subr.mxu0 0.0
      %3662 = vmatpush1.msra.mxu0 0.0
      %3663 = vmatprep.subr.mxu0 0.0
      %3664 = vmatpush1.msra.mxu0 0.0
      %3665 = vmatprep.subr.mxu0 0.0
      %3666 = vmatpush1.msra.mxu0 0.0
      %3667 = vmatprep.subr.mxu0 0.0
      %3668 = vmatpush1.msra.mxu0 0.0
      %3669 = vmatprep.subr.mxu0 0.0
      %3670 = vmatpush1.msra.mxu0 0.0
      %3671 = vmatprep.subr.mxu0 0.0
      %3672 = vmatpush1.msra.mxu0 0.0
      %3673 = vmatprep.subr.mxu0 0.0
      %3674 = vmatpush1.msra.mxu0 0.0
      %3675 = vmatprep.subr.mxu0 0.0
      %3676 = vmatpush1.msra.mxu0 0.0
      %3677 = vmatprep.subr.mxu0 0.0
      %3678 = vmatpush1.msra.mxu0 0.0
      %3679 = vmatprep.subr.mxu0 0.0
      %3680 = vmatpush1.msra.mxu0 0.0
      %3681 = vmatprep.subr.mxu0 0.0
      %3682 = vmatpush1.msra.mxu0 0.0
      %3683 = vmatprep.subr.mxu0 0.0
      %3684 = vmatpush1.msra.mxu0 0.0
      %3685 = vmatprep.subr.mxu0 0.0
      %3686 = vmatpush1.msra.mxu0 0.0
      %3687 = vmatprep.subr.mxu0 0.0
      %3688 = vmatpush1.msra.mxu0 0.0
      %3689 = vmatprep.subr.mxu0 0.0
      %3690 = vmatpush1.msra.mxu0 0.0
      %3691 = vmatprep.subr.mxu0 0.0
      %3692 = vmatpush1.msra.mxu0 0.0
      %3693 = vmatprep.subr.mxu0 0.0
      %3694 = vmatpush1.msra.mxu0 0.0
      %3695 = vmatprep.subr.mxu0 0.0
      %3696 = vmatpush1.msra.mxu0 0.0
      %3697 = vmatprep.subr.mxu0 0.0
      %3698 = vmatpush1.msra.mxu0 0.0
      %3699 = vmatprep.subr.mxu0 0.0
      %3700 = vmatpush1.msra.mxu0 0.0
      %3701 = vmatprep.subr.mxu0 0.0
      %3702 = vmatpush1.msra.mxu0 0.0
      %3703 = vmatprep.subr.mxu0 0.0
      %3704 = vmatpush1.msra.mxu0 0.0
      %3705 = vmatprep.subr.mxu0 0.0
      %3706 = vmatpush1.msra.mxu0 0.0
      %3707 = vmatprep.subr.mxu0 0.0
      %3708 = vmatpush1.msra.mxu0 0.0
      %3709 = vmatprep.subr.mxu0 0.0
      %3710 = vmatpush1.msra.mxu0 0.0
      %3711 = vmatprep.subr.mxu0 0.0
      %3712 = vmatpush1.msra.mxu0 0.0
      %3713 = vmatprep.subr.mxu0 0.0
      %3714 = vmatpush1.msra.mxu0 0.0
      %3715 = vmatprep.subr.mxu0 0.0
      %3716 = vmatpush1.msra.mxu0 0.0
      %3717 = vmatprep.subr.mxu0 0.0
      %3718 = vmatpush1.msra.mxu0 0.0
      %3719 = vmatprep.subr.mxu0 0.0
      %3720 = vmatpush1.msra.mxu0 0.0
      %3721 = vmatprep.subr.mxu0 0.0
      %3722 = vmatpush1.msra.mxu0 0.0
      %3723 = vmatprep.mubr.f32.mxu0 0.0
      %3724 = vmatmul.mubr.f32.gmra.mrb[0].mxu0 %v3654
      %v3725 = vpop.f32.mrb[0].mxu0
      %v3726 = vadd.f32 %v3652, %v3725
      %v3727 = vpop.f32.mrb[0].mxu0
      %3728 = vdwg.mxu0
      %v3729 = vadd.f32 %v3726, 3.0
      %v3730 = vmax.f32 %v3729, 0.0
      %v3731 = vmin.f32 %v3730, 6.0
      %v3732 = vmul.f32 %v3731, 0.16666667
      %v3733 = vlaneseq
      %v3734 = vshrl.u32 %v3733, 7
      %v3735 = vsub.s32 0, %v3734
      %v3736 = vrot.slane %v3732, %v3735
      %v3737 = vmul.f32 %v3470, %v3736
      %v3738 = vmul.f32 %v3471, %v3736
      %v3739 = vmul.f32 %v3472, %v3736
      %v3740 = vmul.f32 %v3473, %v3736
      %v3741 = vmul.f32 %v3474, %v3736
      %v3742 = vmul.f32 %v3475, %v3736
      %v3743 = vmul.f32 %v3476, %v3736
      %v3744 = vmul.f32 %v3477, %v3736
      %v3745 = vmul.f32 %v3478, %v3736
      %v3746 = vmul.f32 %v3479, %v3736
      %v3747 = vmul.f32 %v3480, %v3736
      %v3748 = vmul.f32 %v3481, %v3736
      %v3749 = vmul.f32 %v3482, %v3736
      %v3750 = vmul.f32 %v3483, %v3736
      %v3751 = vmul.f32 %v3484, %v3736
      %v3752 = vmul.f32 %v3485, %v3736
      %v3753 = vmul.f32 %v3486, %v3736
      %v3754 = vmul.f32 %v3487, %v3736
      %v3755 = vmul.f32 %v3488, %v3736
      %v3756 = vmul.f32 %v3489, %v3736
      %v3757 = vmul.f32 %v3490, %v3736
      %v3758 = vmul.f32 %v3491, %v3736
      %v3759 = vmul.f32 %v3492, %v3736
      %v3760 = vmul.f32 %v3493, %v3736
      %v3761 = vmul.f32 %v3494, %v3736
      %v3762 = vmul.f32 %v3495, %v3736
      %v3763 = vmul.f32 %v3496, %v3736
      %v3764 = vmul.f32 %v3497, %v3736
      %v3765 = vmul.f32 %v3498, %v3736
      %v3766 = vmul.f32 %v3499, %v3736
      %v3767 = vmul.f32 %v3500, %v3736
      %v3768 = vmul.f32 %v3501, %v3736
      %v3769 = vld [vmem:[%s11] sm:$0xff]
      %v3770 = vld [vmem:[%s11 + $0x8] sm:$0xff]
      %v3772 = vsel %vm1257, %v3737, 0
      %v3775 = vsel %vm1257, %v3738, 0
      %v3778 = vsel %vm1257, %v3739, 0
      %v3781 = vsel %vm1257, %v3740, 0
      %v3784 = vsel %vm1257, %v3741, 0
      %v3787 = vsel %vm1257, %v3742, 0
      %v3790 = vsel %vm1257, %v3743, 0
      %v3793 = vsel %vm1257, %v3744, 0
      %v3796 = vsel %vm1257, %v3745, 0
      %v3799 = vsel %vm1257, %v3746, 0
      %v3802 = vsel %vm1257, %v3747, 0
      %v3805 = vsel %vm1257, %v3748, 0
      %v3808 = vsel %vm1257, %v3749, 0
      %v3811 = vsel %vm1257, %v3750, 0
      %v3814 = vsel %vm1257, %v3751, 0
      %v3817 = vsel %vm1257, %v3752, 0
      %v3820 = vsel %vm1257, %v3753, 0
      %v3823 = vsel %vm1257, %v3754, 0
      %v3826 = vsel %vm1257, %v3755, 0
      %v3829 = vsel %vm1257, %v3756, 0
      %v3832 = vsel %vm1257, %v3757, 0
      %v3835 = vsel %vm1257, %v3758, 0
      %v3838 = vsel %vm1257, %v3759, 0
      %v3841 = vsel %vm1257, %v3760, 0
      %v3844 = vsel %vm1257, %v3761, 0
      %v3847 = vsel %vm1257, %v3762, 0
      %v3850 = vsel %vm1257, %v3763, 0
      %v3853 = vsel %vm1257, %v3764, 0
      %v3856 = vsel %vm1257, %v3765, 0
      %v3859 = vsel %vm1257, %v3766, 0
      %v3862 = vsel %vm1257, %v3767, 0
      %v3865 = vsel %vm1257, %v3768, 0
      %3867 = vmatprep.subr.mxu0 0.0
      %3868 = vmatpush1.msra.mxu0 %v3769
      %3869 = vmatprep.subr.mxu0 0.0
      %3870 = vmatpush1.msra.mxu0 %v3770
      %3871 = vmatprep.subr.mxu0 0.0
      %3872 = vmatpush1.msra.mxu0 0.0
      %3873 = vmatprep.subr.mxu0 0.0
      %3874 = vmatpush1.msra.mxu0 0.0
      %3875 = vmatprep.subr.mxu0 0.0
      %3876 = vmatpush1.msra.mxu0 0.0
      %3877 = vmatprep.subr.mxu0 0.0
      %3878 = vmatpush1.msra.mxu0 0.0
      %3879 = vmatprep.subr.mxu0 0.0
      %3880 = vmatpush1.msra.mxu0 0.0
      %3881 = vmatprep.subr.mxu0 0.0
      %3882 = vmatpush1.msra.mxu0 0.0
      %3883 = vmatprep.subr.mxu0 0.0
      %3884 = vmatpush1.msra.mxu0 0.0
      %3885 = vmatprep.subr.mxu0 0.0
      %3886 = vmatpush1.msra.mxu0 0.0
      %3887 = vmatprep.subr.mxu0 0.0
      %3888 = vmatpush1.msra.mxu0 0.0
      %3889 = vmatprep.subr.mxu0 0.0
      %3890 = vmatpush1.msra.mxu0 0.0
      %3891 = vmatprep.subr.mxu0 0.0
      %3892 = vmatpush1.msra.mxu0 0.0
      %3893 = vmatprep.subr.mxu0 0.0
      %3894 = vmatpush1.msra.mxu0 0.0
      %3895 = vmatprep.subr.mxu0 0.0
      %3896 = vmatpush1.msra.mxu0 0.0
      %3897 = vmatprep.subr.mxu0 0.0
      %3898 = vmatpush1.msra.mxu0 0.0
      %3899 = vmatprep.subr.mxu0 0.0
      %3900 = vmatpush1.msra.mxu0 0.0
      %3901 = vmatprep.subr.mxu0 0.0
      %3902 = vmatpush1.msra.mxu0 0.0
      %3903 = vmatprep.subr.mxu0 0.0
      %3904 = vmatpush1.msra.mxu0 0.0
      %3905 = vmatprep.subr.mxu0 0.0
      %3906 = vmatpush1.msra.mxu0 0.0
      %3907 = vmatprep.subr.mxu0 0.0
      %3908 = vmatpush1.msra.mxu0 0.0
      %3909 = vmatprep.subr.mxu0 0.0
      %3910 = vmatpush1.msra.mxu0 0.0
      %3911 = vmatprep.subr.mxu0 0.0
      %3912 = vmatpush1.msra.mxu0 0.0
      %3913 = vmatprep.subr.mxu0 0.0
      %3914 = vmatpush1.msra.mxu0 0.0
      %3915 = vmatprep.subr.mxu0 0.0
      %3916 = vmatpush1.msra.mxu0 0.0
      %3917 = vmatprep.subr.mxu0 0.0
      %3918 = vmatpush1.msra.mxu0 0.0
      %3919 = vmatprep.subr.mxu0 0.0
      %3920 = vmatpush1.msra.mxu0 0.0
      %3921 = vmatprep.subr.mxu0 0.0
      %3922 = vmatpush1.msra.mxu0 0.0
      %3923 = vmatprep.subr.mxu0 0.0
      %3924 = vmatpush1.msra.mxu0 0.0
      %3925 = vmatprep.subr.mxu0 0.0
      %3926 = vmatpush1.msra.mxu0 0.0
      %3927 = vmatprep.subr.mxu0 0.0
      %3928 = vmatpush1.msra.mxu0 0.0
      %3929 = vmatprep.subr.mxu0 0.0
      %3930 = vmatpush1.msra.mxu0 0.0
      %3931 = vmatprep.mubr.f32.mxu0 0.0
      %3932 = vmatmul.mubr.f32.gmra.mrb[0].mxu0 %v3772
      %v3933 = vpop.f32.mrb[0].mxu0
      %v3934 = vadd.f32 0.0, %v3933
      %v3935 = vpop.f32.mrb[0].mxu0
      %3936 = vmatprep.mubr.f32.mxu0 0.0
      %3937 = vmatmul.mubr.f32.gmra.mrb[0].mxu0 %v3775
      %v3938 = vpop.f32.mrb[0].mxu0
      %v3939 = vadd.f32 0.0, %v3938
      %v3940 = vpop.f32.mrb[0].mxu0
      %3941 = vmatprep.mubr.f32.mxu0 0.0
      %3942 = vmatmul.mubr.f32.gmra.mrb[0].mxu0 %v3778
      %v3943 = vpop.f32.mrb[0].mxu0
      %v3944 = vadd.f32 0.0, %v3943
      %v3945 = vpop.f32.mrb[0].mxu0
      %3946 = vmatprep.mubr.f32.mxu0 0.0
      %3947 = vmatmul.mubr.f32.gmra.mrb[0].mxu0 %v3781
      %v3948 = vpop.f32.mrb[0].mxu0
      %v3949 = vadd.f32 0.0, %v3948
      %v3950 = vpop.f32.mrb[0].mxu0
      %3951 = vmatprep.mubr.f32.mxu0 0.0
      %3952 = vmatmul.mubr.f32.gmra.mrb[0].mxu0 %v3784
      %v3953 = vpop.f32.mrb[0].mxu0
      %v3954 = vadd.f32 0.0, %v3953
      %v3955 = vpop.f32.mrb[0].mxu0
      %3956 = vmatprep.mubr.f32.mxu0 0.0
      %3957 = vmatmul.mubr.f32.gmra.mrb[0].mxu0 %v3787
      %v3958 = vpop.f32.mrb[0].mxu0
      %v3959 = vadd.f32 0.0, %v3958
      %v3960 = vpop.f32.mrb[0].mxu0
      %3961 = vmatprep.mubr.f32.mxu0 0.0
      %3962 = vmatmul.mubr.f32.gmra.mrb[0].mxu0 %v3790
      %v3963 = vpop.f32.mrb[0].mxu0
      %v3964 = vadd.f32 0.0, %v3963
      %v3965 = vpop.f32.mrb[0].mxu0
      %3966 = vmatprep.mubr.f32.mxu0 0.0
      %3967 = vmatmul.mubr.f32.gmra.mrb[0].mxu0 %v3793
      %v3968 = vpop.f32.mrb[0].mxu0
      %v3969 = vadd.f32 0.0, %v3968
      %v3970 = vpop.f32.mrb[0].mxu0
      %3971 = vmatprep.mubr.f32.mxu0 0.0
      %3972 = vmatmul.mubr.f32.gmra.mrb[0].mxu0 %v3796
      %v3973 = vpop.f32.mrb[0].mxu0
      %v3974 = vadd.f32 0.0, %v3973
      %v3975 = vpop.f32.mrb[0].mxu0
      %3976 = vmatprep.mubr.f32.mxu0 0.0
      %3977 = vmatmul.mubr.f32.gmra.mrb[0].mxu0 %v3799
      %v3978 = vpop.f32.mrb[0].mxu0
      %v3979 = vadd.f32 0.0, %v3978
      %v3980 = vpop.f32.mrb[0].mxu0
      %3981 = vmatprep.mubr.f32.mxu0 0.0
      %3982 = vmatmul.mubr.f32.gmra.mrb[0].mxu0 %v3802
      %v3983 = vpop.f32.mrb[0].mxu0
      %v3984 = vadd.f32 0.0, %v3983
      %v3985 = vpop.f32.mrb[0].mxu0
      %3986 = vmatprep.mubr.f32.mxu0 0.0
      %3987 = vmatmul.mubr.f32.gmra.mrb[0].mxu0 %v3805
      %v3988 = vpop.f32.mrb[0].mxu0
      %v3989 = vadd.f32 0.0, %v3988
      %v3990 = vpop.f32.mrb[0].mxu0
      %3991 = vmatprep.mubr.f32.mxu0 0.0
      %3992 = vmatmul.mubr.f32.gmra.mrb[0].mxu0 %v3808
      %v3993 = vpop.f32.mrb[0].mxu0
      %v3994 = vadd.f32 0.0, %v3993
      %v3995 = vpop.f32.mrb[0].mxu0
      %3996 = vmatprep.mubr.f32.mxu0 0.0
      %3997 = vmatmul.mubr.f32.gmra.mrb[0].mxu0 %v3811
      %v3998 = vpop.f32.mrb[0].mxu0
      %v3999 = vadd.f32 0.0, %v3998
      %v4000 = vpop.f32.mrb[0].mxu0
      %4001 = vmatprep.mubr.f32.mxu0 0.0
      %4002 = vmatmul.mubr.f32.gmra.mrb[0].mxu0 %v3814
      %v4003 = vpop.f32.mrb[0].mxu0
      %v4004 = vadd.f32 0.0, %v4003
      %v4005 = vpop.f32.mrb[0].mxu0
      %4006 = vmatprep.mubr.f32.mxu0 0.0
      %4007 = vmatmul.mubr.f32.gmra.mrb[0].mxu0 %v3817
      %v4008 = vpop.f32.mrb[0].mxu0
      %v4009 = vadd.f32 0.0, %v4008
      %v4010 = vpop.f32.mrb[0].mxu0
      %4011 = vmatprep.mubr.f32.mxu0 0.0
      %4012 = vmatmul.mubr.f32.gmra.mrb[0].mxu0 %v3820
      %v4013 = vpop.f32.mrb[0].mxu0
      %v4014 = vadd.f32 0.0, %v4013
      %v4015 = vpop.f32.mrb[0].mxu0
      %4016 = vmatprep.mubr.f32.mxu0 0.0
      %4017 = vmatmul.mubr.f32.gmra.mrb[0].mxu0 %v3823
      %v4018 = vpop.f32.mrb[0].mxu0
      %v4019 = vadd.f32 0.0, %v4018
      %v4020 = vpop.f32.mrb[0].mxu0
      %4021 = vmatprep.mubr.f32.mxu0 0.0
      %4022 = vmatmul.mubr.f32.gmra.mrb[0].mxu0 %v3826
      %v4023 = vpop.f32.mrb[0].mxu0
      %v4024 = vadd.f32 0.0, %v4023
      %v4025 = vpop.f32.mrb[0].mxu0
      %4026 = vmatprep.mubr.f32.mxu0 0.0
      %4027 = vmatmul.mubr.f32.gmra.mrb[0].mxu0 %v3829
      %v4028 = vpop.f32.mrb[0].mxu0
      %v4029 = vadd.f32 0.0, %v4028
      %v4030 = vpop.f32.mrb[0].mxu0
      %4031 = vmatprep.mubr.f32.mxu0 0.0
      %4032 = vmatmul.mubr.f32.gmra.mrb[0].mxu0 %v3832
      %v4033 = vpop.f32.mrb[0].mxu0
      %v4034 = vadd.f32 0.0, %v4033
      %v4035 = vpop.f32.mrb[0].mxu0
      %4036 = vmatprep.mubr.f32.mxu0 0.0
      %4037 = vmatmul.mubr.f32.gmra.mrb[0].mxu0 %v3835
      %v4038 = vpop.f32.mrb[0].mxu0
      %v4039 = vadd.f32 0.0, %v4038
      %v4040 = vpop.f32.mrb[0].mxu0
      %4041 = vmatprep.mubr.f32.mxu0 0.0
      %4042 = vmatmul.mubr.f32.gmra.mrb[0].mxu0 %v3838
      %v4043 = vpop.f32.mrb[0].mxu0
      %v4044 = vadd.f32 0.0, %v4043
      %v4045 = vpop.f32.mrb[0].mxu0
      %4046 = vmatprep.mubr.f32.mxu0 0.0
      %4047 = vmatmul.mubr.f32.gmra.mrb[0].mxu0 %v3841
      %v4048 = vpop.f32.mrb[0].mxu0
      %v4049 = vadd.f32 0.0, %v4048
      %v4050 = vpop.f32.mrb[0].mxu0
      %4051 = vmatprep.mubr.f32.mxu0 0.0
      %4052 = vmatmul.mubr.f32.gmra.mrb[0].mxu0 %v3844
      %v4053 = vpop.f32.mrb[0].mxu0
      %v4054 = vadd.f32 0.0, %v4053
      %v4055 = vpop.f32.mrb[0].mxu0
      %4056 = vmatprep.mubr.f32.mxu0 0.0
      %4057 = vmatmul.mubr.f32.gmra.mrb[0].mxu0 %v3847
      %v4058 = vpop.f32.mrb[0].mxu0
      %v4059 = vadd.f32 0.0, %v4058
      %v4060 = vpop.f32.mrb[0].mxu0
      %4061 = vmatprep.mubr.f32.mxu0 0.0
      %4062 = vmatmul.mubr.f32.gmra.mrb[0].mxu0 %v3850
      %v4063 = vpop.f32.mrb[0].mxu0
      %v4064 = vadd.f32 0.0, %v4063
      %v4065 = vpop.f32.mrb[0].mxu0
      %4066 = vmatprep.mubr.f32.mxu0 0.0
      %4067 = vmatmul.mubr.f32.gmra.mrb[0].mxu0 %v3853
      %v4068 = vpop.f32.mrb[0].mxu0
      %v4069 = vadd.f32 0.0, %v4068
      %v4070 = vpop.f32.mrb[0].mxu0
      %4071 = vmatprep.mubr.f32.mxu0 0.0
      %4072 = vmatmul.mubr.f32.gmra.mrb[0].mxu0 %v3856
      %v4073 = vpop.f32.mrb[0].mxu0
      %v4074 = vadd.f32 0.0, %v4073
      %v4075 = vpop.f32.mrb[0].mxu0
      %4076 = vmatprep.mubr.f32.mxu0 0.0
      %4077 = vmatmul.mubr.f32.gmra.mrb[0].mxu0 %v3859
      %v4078 = vpop.f32.mrb[0].mxu0
      %v4079 = vadd.f32 0.0, %v4078
      %v4080 = vpop.f32.mrb[0].mxu0
      %4081 = vmatprep.mubr.f32.mxu0 0.0
      %4082 = vmatmul.mubr.f32.gmra.mrb[0].mxu0 %v3862
      %v4083 = vpop.f32.mrb[0].mxu0
      %v4084 = vadd.f32 0.0, %v4083
      %v4085 = vpop.f32.mrb[0].mxu0
      %4086 = vmatprep.mubr.f32.mxu0 0.0
      %4087 = vmatmul.mubr.f32.gmra.mrb[0].mxu0 %v3865
      %v4088 = vpop.f32.mrb[0].mxu0
      %v4089 = vadd.f32 0.0, %v4088
      %v4090 = vpop.f32.mrb[0].mxu0
      %4091 = vdwg.mxu0
      %v4092 = vld [vmem:[%s12] sm:$0x1]
      %v4094 = vlaneseq
      %v4095 = vshrl.u32 %v4094, 7
      %v4096 = vsub.s32 0, %v4095
      %v4097 = vrot.slane %v4092, %v4096
      %v4099 = vmul.f32 %v3934, %v4097
      %v4100 = vmul.f32 %v3939, %v4097
      %v4101 = vmul.f32 %v3944, %v4097
      %v4102 = vmul.f32 %v3949, %v4097
      %v4103 = vmul.f32 %v3954, %v4097
      %v4104 = vmul.f32 %v3959, %v4097
      %v4105 = vmul.f32 %v3964, %v4097
      %v4106 = vmul.f32 %v3969, %v4097
      %v4107 = vmul.f32 %v3974, %v4097
      %v4108 = vmul.f32 %v3979, %v4097
      %v4109 = vmul.f32 %v3984, %v4097
      %v4110 = vmul.f32 %v3989, %v4097
      %v4111 = vmul.f32 %v3994, %v4097
      %v4112 = vmul.f32 %v3999, %v4097
      %v4113 = vmul.f32 %v4004, %v4097
      %v4114 = vmul.f32 %v4009, %v4097
      %v4115 = vmul.f32 %v4014, %v4097
      %v4116 = vmul.f32 %v4019, %v4097
      %v4117 = vmul.f32 %v4024, %v4097
      %v4118 = vmul.f32 %v4029, %v4097
      %v4119 = vmul.f32 %v4034, %v4097
      %v4120 = vmul.f32 %v4039, %v4097
      %v4121 = vmul.f32 %v4044, %v4097
      %v4122 = vmul.f32 %v4049, %v4097
      %v4123 = vmul.f32 %v4054, %v4097
      %v4124 = vmul.f32 %v4059, %v4097
      %v4125 = vmul.f32 %v4064, %v4097
      %v4126 = vmul.f32 %v4069, %v4097
      %v4127 = vmul.f32 %v4074, %v4097
      %v4128 = vmul.f32 %v4079, %v4097
      %v4129 = vmul.f32 %v4084, %v4097
      %v4130 = vmul.f32 %v4089, %v4097
      %v4131 = vld [vmem:[%s13] sm:$0x1]
      %v4133 = vlaneseq
      %v4134 = vshrl.u32 %v4133, 7
      %v4135 = vsub.s32 0, %v4134
      %v4136 = vrot.slane %v4131, %v4135
      %v4138 = vadd.f32 %v4099, %v4136
      %v4139 = vadd.f32 %v4100, %v4136
      %v4140 = vadd.f32 %v4101, %v4136
      %v4141 = vadd.f32 %v4102, %v4136
      %v4142 = vadd.f32 %v4103, %v4136
      %v4143 = vadd.f32 %v4104, %v4136
      %v4144 = vadd.f32 %v4105, %v4136
      %v4145 = vadd.f32 %v4106, %v4136
      %v4146 = vadd.f32 %v4107, %v4136
      %v4147 = vadd.f32 %v4108, %v4136
      %v4148 = vadd.f32 %v4109, %v4136
      %v4149 = vadd.f32 %v4110, %v4136
      %v4150 = vadd.f32 %v4111, %v4136
      %v4151 = vadd.f32 %v4112, %v4136
      %v4152 = vadd.f32 %v4113, %v4136
      %v4153 = vadd.f32 %v4114, %v4136
      %v4154 = vadd.f32 %v4115, %v4136
      %v4155 = vadd.f32 %v4116, %v4136
      %v4156 = vadd.f32 %v4117, %v4136
      %v4157 = vadd.f32 %v4118, %v4136
      %v4158 = vadd.f32 %v4119, %v4136
      %v4159 = vadd.f32 %v4120, %v4136
      %v4160 = vadd.f32 %v4121, %v4136
      %v4161 = vadd.f32 %v4122, %v4136
      %v4162 = vadd.f32 %v4123, %v4136
      %v4163 = vadd.f32 %v4124, %v4136
      %v4164 = vadd.f32 %v4125, %v4136
      %v4165 = vadd.f32 %v4126, %v4136
      %v4166 = vadd.f32 %v4127, %v4136
      %v4167 = vadd.f32 %v4128, %v4136
      %v4168 = vadd.f32 %v4129, %v4136
      %v4169 = vadd.f32 %v4130, %v4136
      %v4170 = vadd.f32 %v4138, %v468
      %v4171 = vadd.f32 %v4139, %v469
      %v4172 = vadd.f32 %v4140, %v470
      %v4173 = vadd.f32 %v4141, %v471
      %v4174 = vadd.f32 %v4142, %v472
      %v4175 = vadd.f32 %v4143, %v473
      %v4176 = vadd.f32 %v4144, %v474
      %v4177 = vadd.f32 %v4145, %v475
      %v4178 = vadd.f32 %v4146, %v476
      %v4179 = vadd.f32 %v4147, %v477
      %v4180 = vadd.f32 %v4148, %v478
      %v4181 = vadd.f32 %v4149, %v479
      %v4182 = vadd.f32 %v4150, %v480
      %v4183 = vadd.f32 %v4151, %v481
      %v4184 = vadd.f32 %v4152, %v482
      %v4185 = vadd.f32 %v4153, %v483
      %v4186 = vadd.f32 %v4154, %v484
      %v4187 = vadd.f32 %v4155, %v485
      %v4188 = vadd.f32 %v4156, %v486
      %v4189 = vadd.f32 %v4157, %v487
      %v4190 = vadd.f32 %v4158, %v488
      %v4191 = vadd.f32 %v4159, %v489
      %v4192 = vadd.f32 %v4160, %v490
      %v4193 = vadd.f32 %v4161, %v491
      %v4194 = vadd.f32 %v4162, %v492
      %v4195 = vadd.f32 %v4163, %v493
      %v4196 = vadd.f32 %v4164, %v494
      %v4197 = vadd.f32 %v4165, %v495
      %v4198 = vadd.f32 %v4166, %v496
      %v4199 = vadd.f32 %v4167, %v497
      %v4200 = vadd.f32 %v4168, %v498
      %v4201 = vadd.f32 %v4169, %v499
      %4202 = vst.msk [vmem:[%s467] sm:$0xff] %vm501, %v4170
      %4203 = vst.msk [vmem:[%s467 + $0x8] sm:$0xff] %vm501, %v4171
      %4204 = vst.msk [vmem:[%s467 + $0x10] sm:$0xff] %vm501, %v4172
      %4205 = vst.msk [vmem:[%s467 + $0x18] sm:$0xff] %vm501, %v4173
      %4206 = vst.msk [vmem:[%s467 + $0x20] sm:$0xff] %vm501, %v4174
      %4207 = vst.msk [vmem:[%s467 + $0x28] sm:$0xff] %vm501, %v4175
      %4208 = vst.msk [vmem:[%s467 + $0x30] sm:$0xff] %vm501, %v4176
      %4209 = vst.msk [vmem:[%s467 + $0x38] sm:$0xff] %vm501, %v4177
      %4210 = vst.msk [vmem:[%s467 + $0x40] sm:$0xff] %vm501, %v4178
      %4211 = vst.msk [vmem:[%s467 + $0x48] sm:$0xff] %vm501, %v4179
      %4212 = vst.msk [vmem:[%s467 + $0x50] sm:$0xff] %vm501, %v4180
      %4213 = vst.msk [vmem:[%s467 + $0x58] sm:$0xff] %vm501, %v4181
      %4214 = vst.msk [vmem:[%s467 + $0x60] sm:$0xff] %vm501, %v4182
      %4215 = vst.msk [vmem:[%s467 + $0x68] sm:$0xff] %vm501, %v4183
      %4216 = vst.msk [vmem:[%s467 + $0x70] sm:$0xff] %vm501, %v4184
      %4217 = vst.msk [vmem:[%s467 + $0x78] sm:$0xff] %vm501, %v4185
      %4218 = vst.msk [vmem:[%s467 + $0x80] sm:$0xff] %vm501, %v4186
      %4219 = vst.msk [vmem:[%s467 + $0x88] sm:$0xff] %vm501, %v4187
      %4220 = vst.msk [vmem:[%s467 + $0x90] sm:$0xff] %vm501, %v4188
      %4221 = vst.msk [vmem:[%s467 + $0x98] sm:$0xff] %vm501, %v4189
      %4222 = vst.msk [vmem:[%s467 + $0xa0] sm:$0xff] %vm501, %v4190
      %4223 = vst.msk [vmem:[%s467 + $0xa8] sm:$0xff] %vm501, %v4191
      %4224 = vst.msk [vmem:[%s467 + $0xb0] sm:$0xff] %vm501, %v4192
      %4225 = vst.msk [vmem:[%s467 + $0xb8] sm:$0xff] %vm501, %v4193
      %4226 = vst.msk [vmem:[%s467 + $0xc0] sm:$0xff] %vm501, %v4194
      %4227 = vst.msk [vmem:[%s467 + $0xc8] sm:$0xff] %vm501, %v4195
      %4228 = vst.msk [vmem:[%s467 + $0xd0] sm:$0xff] %vm501, %v4196
      %4229 = vst.msk [vmem:[%s467 + $0xd8] sm:$0xff] %vm501, %v4197
      %4230 = vst.msk [vmem:[%s467 + $0xe0] sm:$0xff] %vm501, %v4198
      %4231 = vst.msk [vmem:[%s467 + $0xe8] sm:$0xff] %vm501, %v4199
      %4232 = vst.msk [vmem:[%s467 + $0xf0] sm:$0xff] %vm501, %v4200
      %4233 = vst.msk [vmem:[%s467 + $0xf8] sm:$0xff] %vm501, %v4201
      %p4234 = scmp.lt.s32.totalorder %s25, 1
      %s4235 = scalar_select %p4234, %s25, 1
      %s4236 = smul.addr %s4235, 32
      %s4237 = smul.addr %s4236, 8
      %s4238 = scalar_lea.vmem %s14, %s4237
      // Predicated region
      $region77: #{tpu_custom_call.1} parent=75 // pred_check
        %p4239 = pneg %p342
      $region78: #{tpu_custom_call.1} parent=75 // pred_check_branch
        %4241 = sbr.rel (%p4239) target = $region80
      $region79: #{tpu_custom_call.1} parent=75 // pred_region
        _
      $region80: #{tpu_custom_call.1} parent=75 // pred_fallthru
        _
    $region76: #{tpu_custom_call.1} parent=5 // pred_fallthru
      _
    %p4242 = scmp.le.s32.totalorder 2, %s20
    // Predicated region
    $region81: #{tpu_custom_call.1} parent=5 // pred_check
      %p4243 = pneg %p4242
    $region82: #{tpu_custom_call.1} parent=5 // pred_check_branch
      %4245 = sbr.rel (%p4243) target = $region84
    $region83: #{tpu_custom_call.1} parent=5 // pred_region
      %s4246 = ssub.s32 %s20, 2
      // Predicated region
      $region85: #{tpu_custom_call.1} parent=83 // pred_check
        %p4247 = pneg %p348
      $region86: #{tpu_custom_call.1} parent=83 // pred_check_branch
        %4249 = sbr.rel (%p4247) target = $region88
      $region87: #{tpu_custom_call.1} parent=83 // pred_region
        %p4250 = scmp.lt.s32.totalorder %s26, 1
        %s4251 = scalar_select %p4250, %s26, 1
        %s4252 = smul.addr %s4251, 32
        %s4253 = smul.addr %s4252, 8
        %s4254 = scalar_lea.vmem %s14, %s4253
      $region88: #{tpu_custom_call.1} parent=83 // pred_fallthru
        _
    $region84: #{tpu_custom_call.1} parent=5 // pred_fallthru
      _
  $region6: #{tpu_custom_call.1} parent=0 // loop_footer
    %s24 = sadd.s32 1, %s20
  $region7: #{tpu_custom_call.1} parent=0 // loop_footer_branch
    %19 = sbr.rel target = $region3
  $region8: #{tpu_custom_call.1} parent=0 // loop_exit
    _

</llo_original>
